<compile_context>
chip_gen: v7x
topology: tpu7x:2x2x1
jax: 0.10.0
libtpu: 0.0.40
codegen_flags: <defaults>
</compile_context>

<pallas_src>
import functools

import jax
import jax.numpy as jnp
from jax.experimental import pallas as pl
from jax.experimental.pallas import tpu as pltpu

FEAT = 256          # backbone feature width (matches former.view(B, 256))
BITS = 32           # self.bits
NCLS = 10           # Linear3 output


def _sigmoid(x):
    # Exact sigmoid via tanh: stays on the EUP, avoids the precise-divide path
    # and exp overflow for very negative inputs.
    return 0.5 * (jnp.tanh(0.5 * x) + 1.0)


def _kernel(x_ref, wct_ref, bc_ref,
            w1_ref, b1_ref, w2_ref, b2_ref, w3_ref, b3_ref,
            former_ref, feat_ref, latter_ref, result_ref,
            acc_ref, *, inv_hw):
    h = pl.program_id(1)
    n_h = pl.num_programs(1)

    @pl.when(h == 0)
    def _init():
        acc_ref[...] = jnp.zeros_like(acc_ref)

    x = x_ref[...]                         # (TB, C, HWT)  -- HW lane-dense
    wct = wct_ref[...]                     # (FEAT, C)
    C = x.shape[1]

    # 1x1 conv as C broadcast-FMAs on the VPU: z[b,f,p] = sum_c wc[c,f]*x[b,c,p]
    z = x[:, 0:1, :] * wct[None, :, 0:1]                 # (TB, FEAT, HWT)
    for c in range(1, C):
        z = z + x[:, c:c + 1, :] * wct[None, :, c:c + 1]
    z = jnp.maximum(z + bc_ref[...][None, :, :], 0.0)    # bias + ReLU

    # Partial global-average-pool: accumulate the spatial sum for this tile.
    acc_ref[...] += jnp.sum(z, axis=-1)                  # (TB, FEAT)

    # Latent head: run once per batch block, on the last spatial tile.
    @pl.when(h == n_h - 1)
    def _head():
        former = acc_ref[...] * inv_hw                   # mean over HW
        former_ref[...] = former

        features = _sigmoid(
            jnp.dot(former, w1_ref[...], preferred_element_type=jnp.float32)
            + b1_ref[...])                               # (TB, bits_pad)
        feat_ref[...] = features

        latter = (jnp.dot(features, w2_ref[...],
                          preferred_element_type=jnp.float32)
                  + b2_ref[...])                         # (TB, FEAT)
        latter_ref[...] = latter

        result_ref[...] = (jnp.dot(_sigmoid(latter), w3_ref[...],
                                   preferred_element_type=jnp.float32)
                           + b3_ref[...])                # (TB, ncls_pad)


def _largest_divisor_leq(n, cap):
    t = min(n, cap)
    while n % t:
        t -= 1
    return t


def _pick_hw_tile(hw):
    # Prefer a lane-aligned tile of the spatial axis; tiny inputs use the full
    # extent (allowed since the block then equals the array dim).
    for t in (1024, 512, 256, 128):
        if hw >= t and hw % t == 0:
            return t
    return hw


@jax.jit
def squeezenet_plus_latent(x_nchw, params):
    wc, bc, w1, b1, w2, b2, w3, b3 = params
    B, C, H, W = x_nchw.shape
    HW = H * W
    bits = w1.shape[1]
    ncls = w3.shape[1]
    bits_pad = 128 * pl.cdiv(bits, 128)
    ncls_pad = 128 * pl.cdiv(ncls, 128)

    # Tile choices.  (On v7x one may prefer >=2 batch blocks so both
    # TensorCores get work; for tiny B we just take the whole batch.)
    TB = _largest_divisor_leq(B, 8)
    HWT = _pick_hw_tile(HW)
    grid = (B // TB, HW // HWT)

    # Zero-cost layout change: NCHW -> (B, C, HW); HW is the lane dimension.
    x = x_nchw.reshape(B, C, HW).astype(jnp.float32)

    # Pre-arrange weights for the kernel.
    wct = wc.astype(jnp.float32).T                       # (FEAT, C)
    bcc = bc.astype(jnp.float32).T                       # (FEAT, 1)
    pad_c = lambda a, n: jnp.pad(a.astype(jnp.float32),
                                 ((0, 0), (0, n - a.shape[1])))
    pad_r = lambda a, n: jnp.pad(a.astype(jnp.float32),
                                 ((0, n - a.shape[0]), (0, 0)))
    w1p, b1p = pad_c(w1, bits_pad), pad_c(b1, bits_pad)
    w2p = pad_r(w2, bits_pad)        # zero rows: padded features contribute 0
    b2f = b2.astype(jnp.float32)
    w3p, b3p = pad_c(w3, ncls_pad), pad_c(b3, ncls_pad)

    const = lambda b, h: (0, 0)

    grid_spec = pltpu.PrefetchScalarGridSpec(
        num_scalar_prefetch=0,
        grid=grid,
        in_specs=[
            pl.BlockSpec((TB, C, HWT), lambda b, h: (b, 0, h)),
            pl.BlockSpec((FEAT, C), const),
            pl.BlockSpec((FEAT, 1), const),
            pl.BlockSpec((FEAT, bits_pad), const),
            pl.BlockSpec((1, bits_pad), const),
            pl.BlockSpec((bits_pad, FEAT), const),
            pl.BlockSpec((1, FEAT), const),
            pl.BlockSpec((FEAT, ncls_pad), const),
            pl.BlockSpec((1, ncls_pad), const),
        ],
        out_specs=[
            pl.BlockSpec((TB, FEAT), lambda b, h: (b, 0)),
            pl.BlockSpec((TB, bits_pad), lambda b, h: (b, 0)),
            pl.BlockSpec((TB, FEAT), lambda b, h: (b, 0)),
            pl.BlockSpec((TB, ncls_pad), lambda b, h: (b, 0)),
        ],
        scratch_shapes=[pltpu.VMEM((TB, FEAT), jnp.float32)],
    )

    out_shape = (
        jax.ShapeDtypeStruct((B, FEAT), jnp.float32),        # former
        jax.ShapeDtypeStruct((B, bits_pad), jnp.float32),    # features (padded)
        jax.ShapeDtypeStruct((B, FEAT), jnp.float32),        # latter
        jax.ShapeDtypeStruct((B, ncls_pad), jnp.float32),    # result (padded)
    )

    former, feat_p, latter, result_p = pl.pallas_call(
        functools.partial(_kernel, inv_hw=1.0 / HW),
        out_shape=out_shape,
        grid_spec=grid_spec,
        compiler_params=pltpu.CompilerParams(
            dimension_semantics=("parallel", "arbitrary")),
    )(x, wct, bcc, w1p, b1p, w2p, b2f, w3p, b3p)

    return former, feat_p[:, :bits], latter, result_p[:, :ncls]


def reference(x_nchw, params):
    """Pure-JAX reference for numerical sanity check."""
    wc, bc, w1, b1, w2, b2, w3, b3 = params
    B, C, H, W = x_nchw.shape
    x = x_nchw.reshape(B, C, H * W)
    z = jnp.maximum(jnp.einsum("bcp,cf->bpf", x, wc) + bc, 0.0)
    former = jnp.mean(z, axis=1)
    features = jax.nn.sigmoid(former @ w1 + b1)
    latter = features @ w2 + b2
    result = jax.nn.sigmoid(latter) @ w3 + b3
    return former, features, latter, result


def init_params(key, c_in, bits):
    ks = jax.random.split(key, 8)
    scale = 0.05
    wc = scale * jax.random.normal(ks[0], (c_in, FEAT), jnp.float32)
    bc = scale * jax.random.normal(ks[1], (1, FEAT), jnp.float32)
    w1 = scale * jax.random.normal(ks[2], (FEAT, bits), jnp.float32)
    b1 = scale * jax.random.normal(ks[3], (1, bits), jnp.float32)
    w2 = scale * jax.random.normal(ks[4], (bits, FEAT), jnp.float32)
    b2 = scale * jax.random.normal(ks[5], (1, FEAT), jnp.float32)
    w3 = scale * jax.random.normal(ks[6], (FEAT, NCLS), jnp.float32)
    b3 = scale * jax.random.normal(ks[7], (1, NCLS), jnp.float32)
    return (wc, bc, w1, b1, w2, b2, w3, b3)


if __name__ == "__main__":
    key = jax.random.PRNGKey(0)
    k_x, k_p = jax.random.split(key)

    B, C, H, W = 2, 4, 16, 16
    x = jax.random.normal(k_x, (B, C, H, W), jnp.float32)
    params = init_params(k_p, C, BITS)

    outs = jax.block_until_ready(squeezenet_plus_latent(x, params))

    former, features, latter, result = outs
    assert former.shape == (B, FEAT)
    assert features.shape == (B, BITS)
    assert latter.shape == (B, FEAT)
    assert result.shape == (B, NCLS)

    ref = reference(x, params)
    for got, want in zip(outs, ref):
        err = float(jnp.max(jnp.abs(got - want)))
        assert jnp.allclose(got, want, atol=1e-4, rtol=1e-4), err

    print("KERNEL_OK")
</pallas_src>

<mosaic_0001>
module attributes {stable_mosaic.version = 11 : i64} {
  func.func @_kernel(%arg0: i32, %arg1: i32, %arg2: memref<2x4x256xf32, #tpu.memory_space<vmem>>, %arg3: memref<256x4xf32, #tpu.memory_space<vmem>>, %arg4: memref<256x1xf32, #tpu.memory_space<vmem>>, %arg5: memref<256x128xf32, #tpu.memory_space<vmem>>, %arg6: memref<1x128xf32, #tpu.memory_space<vmem>>, %arg7: memref<128x256xf32, #tpu.memory_space<vmem>>, %arg8: memref<1x256xf32, #tpu.memory_space<vmem>>, %arg9: memref<256x128xf32, #tpu.memory_space<vmem>>, %arg10: memref<1x128xf32, #tpu.memory_space<vmem>>, %arg11: memref<2x256xf32, #tpu.memory_space<vmem>>, %arg12: memref<2x128xf32, #tpu.memory_space<vmem>>, %arg13: memref<2x256xf32, #tpu.memory_space<vmem>>, %arg14: memref<2x128xf32, #tpu.memory_space<vmem>>, %arg15: memref<2x256xf32, #tpu.memory_space<vmem>>) attributes {dimension_semantics = [#tpu.dimension_semantics<parallel>, #tpu.dimension_semantics<arbitrary>], iteration_bounds = array<i64: 1, 1>, scalar_prefetch = 0 : i64, scratch_operands = 1 : i64, tpu.core_type = #tpu.core_type<tc>, window_params = [{transform_indices = @transform_0, window_bounds = array<i64: 2, 4, 256>}, {pipeline_mode = #tpu.pipeline_mode<synchronous>, transform_indices = @transform_1, window_bounds = array<i64: 256, 4>}, {pipeline_mode = #tpu.pipeline_mode<synchronous>, transform_indices = @transform_2, window_bounds = array<i64: 256, 1>}, {pipeline_mode = #tpu.pipeline_mode<synchronous>, transform_indices = @transform_3, window_bounds = array<i64: 256, 128>}, {pipeline_mode = #tpu.pipeline_mode<synchronous>, transform_indices = @transform_4, window_bounds = array<i64: 1, 128>}, {pipeline_mode = #tpu.pipeline_mode<synchronous>, transform_indices = @transform_5, window_bounds = array<i64: 128, 256>}, {pipeline_mode = #tpu.pipeline_mode<synchronous>, transform_indices = @transform_6, window_bounds = array<i64: 1, 256>}, {pipeline_mode = #tpu.pipeline_mode<synchronous>, transform_indices = @transform_7, window_bounds = array<i64: 256, 128>}, {pipeline_mode = #tpu.pipeline_mode<synchronous>, transform_indices = @transform_8, window_bounds = array<i64: 1, 128>}, {transform_indices = @transform_9, window_bounds = array<i64: 2, 256>}, {transform_indices = @transform_10, window_bounds = array<i64: 2, 128>}, {transform_indices = @transform_11, window_bounds = array<i64: 2, 256>}, {transform_indices = @transform_12, window_bounds = array<i64: 2, 128>}]} {
    %c0_i32 = arith.constant 0 : i32
    %0 = arith.cmpi eq, %arg1, %c0_i32 : i32
    %1 = arith.extui %0 : i1 to i32
    %c0_i32_0 = arith.constant 0 : i32
    %2 = arith.cmpi ne, %1, %c0_i32_0 : i32
    scf.if %2 {
      %cst_14 = arith.constant 0.000000e+00 : f32
      %45 = vector.broadcast %cst_14 : f32 to vector<2x256xf32>
      %c0_15 = arith.constant 0 : index
      %c0_16 = arith.constant 0 : index
      %46 = vector.load %arg15[%c0_15, %c0_16] : memref<2x256xf32, #tpu.memory_space<vmem>>, vector<2x256xf32>
      tpu.vector_store %arg15[%c0_15, %c0_16], %45 {strides = array<i32>} : memref<2x256xf32, #tpu.memory_space<vmem>>, vector<2x256xf32>,
    } else {
    }
    %c0 = arith.constant 0 : index
    %c0_1 = arith.constant 0 : index
    %c0_2 = arith.constant 0 : index
    %3 = vector.load %arg2[%c0, %c0_1, %c0_2] : memref<2x4x256xf32, #tpu.memory_space<vmem>>, vector<2x4x256xf32>
    %c0_3 = arith.constant 0 : index
    %c0_4 = arith.constant 0 : index
    %4 = vector.load %arg3[%c0_3, %c0_4] : memref<256x4xf32, #tpu.memory_space<vmem>>, vector<256x4xf32>
    %5 = vector.extract_strided_slice %3 {offsets = [0, 0, 0], sizes = [2, 1, 256], strides = [1, 1, 1]} : vector<2x4x256xf32> to vector<2x1x256xf32>
    %6 = vector.extract_strided_slice %4 {offsets = [0, 0], sizes = [256, 1], strides = [1, 1]} : vector<256x4xf32> to vector<256x1xf32>
    %7 = vector.shape_cast %6 : vector<256x1xf32> to vector<1x256x1xf32>
    %8 = vector.broadcast %5 : vector<2x1x256xf32> to vector<2x256x256xf32>
    %9 = vector.broadcast %7 : vector<1x256x1xf32> to vector<2x256x256xf32>
    %10 = arith.mulf %8, %9 : vector<2x256x256xf32>
    %11 = vector.extract_strided_slice %3 {offsets = [0, 1, 0], sizes = [2, 1, 256], strides = [1, 1, 1]} : vector<2x4x256xf32> to vector<2x1x256xf32>
    %12 = vector.extract_strided_slice %4 {offsets = [0, 1], sizes = [256, 1], strides = [1, 1]} : vector<256x4xf32> to vector<256x1xf32>
    %13 = vector.shape_cast %12 : vector<256x1xf32> to vector<1x256x1xf32>
    %14 = vector.broadcast %11 : vector<2x1x256xf32> to vector<2x256x256xf32>
    %15 = vector.broadcast %13 : vector<1x256x1xf32> to vector<2x256x256xf32>
    %16 = arith.mulf %14, %15 : vector<2x256x256xf32>
    %17 = arith.addf %10, %16 : vector<2x256x256xf32>
    %18 = vector.extract_strided_slice %3 {offsets = [0, 2, 0], sizes = [2, 1, 256], strides = [1, 1, 1]} : vector<2x4x256xf32> to vector<2x1x256xf32>
    %19 = vector.extract_strided_slice %4 {offsets = [0, 2], sizes = [256, 1], strides = [1, 1]} : vector<256x4xf32> to vector<256x1xf32>
    %20 = vector.shape_cast %19 : vector<256x1xf32> to vector<1x256x1xf32>
    %21 = vector.broadcast %18 : vector<2x1x256xf32> to vector<2x256x256xf32>
    %22 = vector.broadcast %20 : vector<1x256x1xf32> to vector<2x256x256xf32>
    %23 = arith.mulf %21, %22 : vector<2x256x256xf32>
    %24 = arith.addf %17, %23 : vector<2x256x256xf32>
    %25 = vector.extract_strided_slice %3 {offsets = [0, 3, 0], sizes = [2, 1, 256], strides = [1, 1, 1]} : vector<2x4x256xf32> to vector<2x1x256xf32>
    %26 = vector.extract_strided_slice %4 {offsets = [0, 3], sizes = [256, 1], strides = [1, 1]} : vector<256x4xf32> to vector<256x1xf32>
    %27 = vector.shape_cast %26 : vector<256x1xf32> to vector<1x256x1xf32>
    %28 = vector.broadcast %25 : vector<2x1x256xf32> to vector<2x256x256xf32>
    %29 = vector.broadcast %27 : vector<1x256x1xf32> to vector<2x256x256xf32>
    %30 = arith.mulf %28, %29 : vector<2x256x256xf32>
    %31 = arith.addf %24, %30 : vector<2x256x256xf32>
    %c0_5 = arith.constant 0 : index
    %c0_6 = arith.constant 0 : index
    %32 = vector.load %arg4[%c0_5, %c0_6] : memref<256x1xf32, #tpu.memory_space<vmem>>, vector<256x1xf32>
    %33 = vector.shape_cast %32 : vector<256x1xf32> to vector<1x256x1xf32>
    %34 = vector.broadcast %33 : vector<1x256x1xf32> to vector<2x256x256xf32>
    %35 = arith.addf %31, %34 : vector<2x256x256xf32>
    %cst = arith.constant 0.000000e+00 : f32
    %36 = vector.broadcast %cst : f32 to vector<2x256x256xf32>
    %37 = arith.maximumf %35, %36 : vector<2x256x256xf32>
    %c0_7 = arith.constant 0 : index
    %c0_8 = arith.constant 0 : index
    %38 = vector.load %arg15[%c0_7, %c0_8] : memref<2x256xf32, #tpu.memory_space<vmem>>, vector<2x256xf32>
    %cst_9 = arith.constant dense<0.000000e+00> : vector<2x256xf32>
    %39 = vector.multi_reduction <add>, %37, %cst_9 [2] : vector<2x256x256xf32> to vector<2x256xf32>
    %40 = arith.addf %38, %39 : vector<2x256xf32>
    %c0_10 = arith.constant 0 : index
    %c0_11 = arith.constant 0 : index
    %41 = vector.load %arg15[%c0_10, %c0_11] : memref<2x256xf32, #tpu.memory_space<vmem>>, vector<2x256xf32>
    tpu.vector_store %arg15[%c0_10, %c0_11], %40 {strides = array<i32>} : memref<2x256xf32, #tpu.memory_space<vmem>>, vector<2x256xf32>,
    %c0_i32_12 = arith.constant 0 : i32
    %42 = arith.cmpi eq, %arg1, %c0_i32_12 : i32
    %43 = arith.extui %42 : i1 to i32
    %c0_i32_13 = arith.constant 0 : i32
    %44 = arith.cmpi ne, %43, %c0_i32_13 : i32
    scf.if %44 {
      %c0_14 = arith.constant 0 : index
      %c0_15 = arith.constant 0 : index
      %45 = vector.load %arg15[%c0_14, %c0_15] : memref<2x256xf32, #tpu.memory_space<vmem>>, vector<2x256xf32>
      %cst_16 = arith.constant 3.906250e-03 : f32
      %46 = vector.broadcast %cst_16 : f32 to vector<2x256xf32>
      %47 = arith.mulf %45, %46 : vector<2x256xf32>
      %c0_17 = arith.constant 0 : index
      %c0_18 = arith.constant 0 : index
      %48 = vector.load %arg11[%c0_17, %c0_18] : memref<2x256xf32, #tpu.memory_space<vmem>>, vector<2x256xf32>
      tpu.vector_store %arg11[%c0_17, %c0_18], %47 {strides = array<i32>} : memref<2x256xf32, #tpu.memory_space<vmem>>, vector<2x256xf32>,
      %c0_19 = arith.constant 0 : index
      %c0_20 = arith.constant 0 : index
      %49 = vector.load %arg5[%c0_19, %c0_20] : memref<256x128xf32, #tpu.memory_space<vmem>>, vector<256x128xf32>
      %cst_21 = arith.constant dense<0.000000e+00> : vector<2x128xf32>
      %50 = tpu.matmul %47, %49, %cst_21 {dimension_numbers = #tpu.dot_dimension_numbers<[1], [0], [0], [1], [0, 0, 1, 1], [], []>} : vector<2x256xf32>, vector<256x128xf32>, vector<2x128xf32> -> vector<2x128xf32>
      %c0_22 = arith.constant 0 : index
      %c0_23 = arith.constant 0 : index
      %51 = vector.load %arg6[%c0_22, %c0_23] : memref<1x128xf32, #tpu.memory_space<vmem>>, vector<1x128xf32>
      %52 = vector.broadcast %51 : vector<1x128xf32> to vector<2x128xf32>
      %53 = arith.addf %50, %52 : vector<2x128xf32>
      %cst_24 = arith.constant 5.000000e-01 : f32
      %54 = vector.broadcast %cst_24 : f32 to vector<2x128xf32>
      %55 = arith.mulf %54, %53 : vector<2x128xf32>
      %56 = math.tanh %55 : vector<2x128xf32>
      %cst_25 = arith.constant 1.000000e+00 : f32
      %57 = vector.broadcast %cst_25 : f32 to vector<2x128xf32>
      %58 = arith.addf %56, %57 : vector<2x128xf32>
      %cst_26 = arith.constant 5.000000e-01 : f32
      %59 = vector.broadcast %cst_26 : f32 to vector<2x128xf32>
      %60 = arith.mulf %59, %58 : vector<2x128xf32>
      %c0_27 = arith.constant 0 : index
      %c0_28 = arith.constant 0 : index
      %61 = vector.load %arg12[%c0_27, %c0_28] : memref<2x128xf32, #tpu.memory_space<vmem>>, vector<2x128xf32>
      tpu.vector_store %arg12[%c0_27, %c0_28], %60 {strides = array<i32>} : memref<2x128xf32, #tpu.memory_space<vmem>>, vector<2x128xf32>,
      %c0_29 = arith.constant 0 : index
      %c0_30 = arith.constant 0 : index
      %62 = vector.load %arg7[%c0_29, %c0_30] : memref<128x256xf32, #tpu.memory_space<vmem>>, vector<128x256xf32>
      %cst_31 = arith.constant dense<0.000000e+00> : vector<2x256xf32>
      %63 = tpu.matmul %60, %62, %cst_31 {dimension_numbers = #tpu.dot_dimension_numbers<[1], [0], [0], [1], [0, 0, 1, 1], [], []>} : vector<2x128xf32>, vector<128x256xf32>, vector<2x256xf32> -> vector<2x256xf32>
      %c0_32 = arith.constant 0 : index
      %c0_33 = arith.constant 0 : index
      %64 = vector.load %arg8[%c0_32, %c0_33] : memref<1x256xf32, #tpu.memory_space<vmem>>, vector<1x256xf32>
      %65 = vector.broadcast %64 : vector<1x256xf32> to vector<2x256xf32>
      %66 = arith.addf %63, %65 : vector<2x256xf32>
      %c0_34 = arith.constant 0 : index
      %c0_35 = arith.constant 0 : index
      %67 = vector.load %arg13[%c0_34, %c0_35] : memref<2x256xf32, #tpu.memory_space<vmem>>, vector<2x256xf32>
      tpu.vector_store %arg13[%c0_34, %c0_35], %66 {strides = array<i32>} : memref<2x256xf32, #tpu.memory_space<vmem>>, vector<2x256xf32>,
      %cst_36 = arith.constant 5.000000e-01 : f32
      %68 = vector.broadcast %cst_36 : f32 to vector<2x256xf32>
      %69 = arith.mulf %68, %66 : vector<2x256xf32>
      %70 = math.tanh %69 : vector<2x256xf32>
      %cst_37 = arith.constant 1.000000e+00 : f32
      %71 = vector.broadcast %cst_37 : f32 to vector<2x256xf32>
      %72 = arith.addf %70, %71 : vector<2x256xf32>
      %cst_38 = arith.constant 5.000000e-01 : f32
      %73 = vector.broadcast %cst_38 : f32 to vector<2x256xf32>
      %74 = arith.mulf %73, %72 : vector<2x256xf32>
      %c0_39 = arith.constant 0 : index
      %c0_40 = arith.constant 0 : index
      %75 = vector.load %arg9[%c0_39, %c0_40] : memref<256x128xf32, #tpu.memory_space<vmem>>, vector<256x128xf32>
      %cst_41 = arith.constant dense<0.000000e+00> : vector<2x128xf32>
      %76 = tpu.matmul %74, %75, %cst_41 {dimension_numbers = #tpu.dot_dimension_numbers<[1], [0], [0], [1], [0, 0, 1, 1], [], []>} : vector<2x256xf32>, vector<256x128xf32>, vector<2x128xf32> -> vector<2x128xf32>
      %c0_42 = arith.constant 0 : index
      %c0_43 = arith.constant 0 : index
      %77 = vector.load %arg10[%c0_42, %c0_43] : memref<1x128xf32, #tpu.memory_space<vmem>>, vector<1x128xf32>
      %78 = vector.broadcast %77 : vector<1x128xf32> to vector<2x128xf32>
      %79 = arith.addf %76, %78 : vector<2x128xf32>
      %c0_44 = arith.constant 0 : index
      %c0_45 = arith.constant 0 : index
      %80 = vector.load %arg14[%c0_44, %c0_45] : memref<2x128xf32, #tpu.memory_space<vmem>>, vector<2x128xf32>
      tpu.vector_store %arg14[%c0_44, %c0_45], %79 {strides = array<i32>} : memref<2x128xf32, #tpu.memory_space<vmem>>, vector<2x128xf32>,
    } else {
    }
    return
  }
  func.func @transform_0(%arg0: i32, %arg1: i32) -> (i32, i32, i32) {
    %c0_i32 = arith.constant 0 : i32
    %c0_i32_0 = arith.constant 0 : i32
    return %arg0, %c0_i32, %arg1 : i32, i32, i32
  }
  func.func @transform_1(%arg0: i32, %arg1: i32) -> (i32, i32) {
    %c0_i32 = arith.constant 0 : i32
    %c0_i32_0 = arith.constant 0 : i32
    %c0_i32_1 = arith.constant 0 : i32
    return %c0_i32, %c0_i32_0 : i32, i32
  }
  func.func @transform_2(%arg0: i32, %arg1: i32) -> (i32, i32) {
    %c0_i32 = arith.constant 0 : i32
    %c0_i32_0 = arith.constant 0 : i32
    %c0_i32_1 = arith.constant 0 : i32
    return %c0_i32, %c0_i32_0 : i32, i32
  }
  func.func @transform_3(%arg0: i32, %arg1: i32) -> (i32, i32) {
    %c0_i32 = arith.constant 0 : i32
    %c0_i32_0 = arith.constant 0 : i32
    %c0_i32_1 = arith.constant 0 : i32
    return %c0_i32, %c0_i32_0 : i32, i32
  }
  func.func @transform_4(%arg0: i32, %arg1: i32) -> (i32, i32) {
    %c0_i32 = arith.constant 0 : i32
    %c0_i32_0 = arith.constant 0 : i32
    %c0_i32_1 = arith.constant 0 : i32
    return %c0_i32, %c0_i32_0 : i32, i32
  }
  func.func @transform_5(%arg0: i32, %arg1: i32) -> (i32, i32) {
    %c0_i32 = arith.constant 0 : i32
    %c0_i32_0 = arith.constant 0 : i32
    %c0_i32_1 = arith.constant 0 : i32
    return %c0_i32, %c0_i32_0 : i32, i32
  }
  func.func @transform_6(%arg0: i32, %arg1: i32) -> (i32, i32) {
    %c0_i32 = arith.constant 0 : i32
    %c0_i32_0 = arith.constant 0 : i32
    %c0_i32_1 = arith.constant 0 : i32
    return %c0_i32, %c0_i32_0 : i32, i32
  }
  func.func @transform_7(%arg0: i32, %arg1: i32) -> (i32, i32) {
    %c0_i32 = arith.constant 0 : i32
    %c0_i32_0 = arith.constant 0 : i32
    %c0_i32_1 = arith.constant 0 : i32
    return %c0_i32, %c0_i32_0 : i32, i32
  }
  func.func @transform_8(%arg0: i32, %arg1: i32) -> (i32, i32) {
    %c0_i32 = arith.constant 0 : i32
    %c0_i32_0 = arith.constant 0 : i32
    %c0_i32_1 = arith.constant 0 : i32
    return %c0_i32, %c0_i32_0 : i32, i32
  }
  func.func @transform_9(%arg0: i32, %arg1: i32) -> (i32, i32) {
    %c0_i32 = arith.constant 0 : i32
    %c0_i32_0 = arith.constant 0 : i32
    return %arg0, %c0_i32 : i32, i32
  }
  func.func @transform_10(%arg0: i32, %arg1: i32) -> (i32, i32) {
    %c0_i32 = arith.constant 0 : i32
    %c0_i32_0 = arith.constant 0 : i32
    return %arg0, %c0_i32 : i32, i32
  }
  func.func @transform_11(%arg0: i32, %arg1: i32) -> (i32, i32) {
    %c0_i32 = arith.constant 0 : i32
    %c0_i32_0 = arith.constant 0 : i32
    return %arg0, %c0_i32 : i32, i32
  }
  func.func @transform_12(%arg0: i32, %arg1: i32) -> (i32, i32) {
    %c0_i32 = arith.constant 0 : i32
    %c0_i32_0 = arith.constant 0 : i32
    return %arg0, %c0_i32 : i32, i32
  }
}

</mosaic_0001>

<llo_original>
// kernel: squeezenet_plus_latent.1
$region0: #{squeezenet_plus_latent.1}
  #allocation0 [shape = 'u32[]', space=smem, size = 0x4, offset = 0x4, fixed_abs, tag = 'smem constant byte address 0x4 - core index']
  #allocation1 [shape = 'u32[144,128]{1,0:T(1,128)}', space=vmem, size = 0x12000, scoped, tag = 'internal scratch']
  #allocation2 [shape = 'f32[2,256]{1,0:T(2,128)}', space=vmem, size = 0x800, scoped, tag = 'scratch operand']
  %s0 = inlined_call_operand.vmem [shape: f32[2,4,256], index: 0, kind: input, shape index: {}]
  %s1 = inlined_call_operand.vmem [shape: f32[256,4], index: 1, kind: input, shape index: {}]
  %s2 = inlined_call_operand.vmem [shape: f32[256,1], index: 2, kind: input, shape index: {}]
  %s3 = inlined_call_operand.vmem [shape: f32[256,128], index: 3, kind: input, shape index: {}]
  %s4 = inlined_call_operand.vmem [shape: f32[1,128], index: 4, kind: input, shape index: {}]
  %s5 = inlined_call_operand.vmem [shape: f32[128,256], index: 5, kind: input, shape index: {}]
  %s6 = inlined_call_operand.vmem [shape: f32[1,256], index: 6, kind: input, shape index: {}]
  %s7 = inlined_call_operand.vmem [shape: f32[256,128], index: 7, kind: input, shape index: {}]
  %s8 = inlined_call_operand.vmem [shape: f32[1,128], index: 8, kind: input, shape index: {}]
  %s9 = inlined_call_operand.hbm [shape: f32[2,256], index: 9, kind: output, shape index: {0}]
  %s10 = inlined_call_operand.hbm [shape: f32[2,128], index: 10, kind: output, shape index: {1}]
  %s11 = inlined_call_operand.hbm [shape: f32[2,256], index: 11, kind: output, shape index: {2}]
  %s12 = inlined_call_operand.hbm [shape: f32[2,128], index: 12, kind: output, shape index: {3}]
  %13 = xla_tuple %s9, %s10, %s11, %s12
  %s14 = sld [smem:[#allocation0]]
  $region78: #{squeezenet_plus_latent.1} parent=0
    _
  %s16 = ssub.s32 1, %s14
  %s17 = scalar_select 0, %s16, %s14
  $region1: #{squeezenet_plus_latent.1} parent=0
    #allocation3 [shape = 'u8[2048]{0}', space=vmem, size = 0x800, scoped, tag = 'output window, operand 0, single buffered']
    #allocation4 [shape = 's32[1]{0}', space=sflag, size = 0x4, scoped, tag = 'scoped memory for squeezenet_plus_latent.1']
    #allocation5 [shape = 'u8[1024]{0}', space=vmem, size = 0x400, scoped, tag = 'output window, operand 1, single buffered']
    #allocation6 [shape = 's32[1]{0}', space=sflag, size = 0x4, scoped, tag = 'scoped memory for squeezenet_plus_latent.1']
    #allocation7 [shape = 'u8[2048]{0}', space=vmem, size = 0x800, scoped, tag = 'output window, operand 2, single buffered']
    #allocation8 [shape = 'u8[1024]{0}', space=vmem, size = 0x400, scoped, tag = 'output window, operand 3, single buffered']
    #allocation9 [shape = 's32[1]{0}', space=sflag, size = 0x4, scoped, tag = 'scoped memory for squeezenet_plus_latent.1']
    %18 = vsyncpa [#allocation4], 0
    %19 = vsyncpa [#allocation6], 0
    %20 = vsyncpa [#allocation9], 0
    // Predicated region
    $region2: #{squeezenet_plus_latent.1} parent=1 // pred_check
      _
    $region3: #{squeezenet_plus_latent.1} parent=1 // pred_check_branch
      %22 = sbr.rel (0) target = $region5
    $region4: #{squeezenet_plus_latent.1} parent=1 // pred_region
      _
    $region5: #{squeezenet_plus_latent.1} parent=1 // pred_fallthru
      _
    // Predicated region
    $region6: #{squeezenet_plus_latent.1} parent=1 // pred_check
      _
    $region7: #{squeezenet_plus_latent.1} parent=1 // pred_check_branch
      %24 = sbr.rel (0) target = $region9
    $region8: #{squeezenet_plus_latent.1} parent=1 // pred_region
      _
    $region9: #{squeezenet_plus_latent.1} parent=1 // pred_fallthru
      _
    // Predicated region
    $region10: #{squeezenet_plus_latent.1} parent=1 // pred_check
      _
    $region11: #{squeezenet_plus_latent.1} parent=1 // pred_check_branch
      %26 = sbr.rel (0) target = $region13
    $region12: #{squeezenet_plus_latent.1} parent=1 // pred_region
      _
    $region13: #{squeezenet_plus_latent.1} parent=1 // pred_fallthru
      _
    // Predicated region
    $region14: #{squeezenet_plus_latent.1} parent=1 // pred_check
      _
    $region15: #{squeezenet_plus_latent.1} parent=1 // pred_check_branch
      %28 = sbr.rel (0) target = $region17
    $region16: #{squeezenet_plus_latent.1} parent=1 // pred_region
      _
    $region17: #{squeezenet_plus_latent.1} parent=1 // pred_fallthru
      _
    // Predicated region
    $region18: #{squeezenet_plus_latent.1} parent=1 // pred_check
      _
    $region19: #{squeezenet_plus_latent.1} parent=1 // pred_check_branch
      %30 = sbr.rel (0) target = $region21
    $region20: #{squeezenet_plus_latent.1} parent=1 // pred_region
      _
    $region21: #{squeezenet_plus_latent.1} parent=1 // pred_fallthru
      _
    // Predicated region
    $region22: #{squeezenet_plus_latent.1} parent=1 // pred_check
      _
    $region23: #{squeezenet_plus_latent.1} parent=1 // pred_check_branch
      %32 = sbr.rel (0) target = $region25
    $region24: #{squeezenet_plus_latent.1} parent=1 // pred_region
      _
    $region25: #{squeezenet_plus_latent.1} parent=1 // pred_fallthru
      _
    // Predicated region
    $region26: #{squeezenet_plus_latent.1} parent=1 // pred_check
      _
    $region27: #{squeezenet_plus_latent.1} parent=1 // pred_check_branch
      %34 = sbr.rel (0) target = $region29
    $region28: #{squeezenet_plus_latent.1} parent=1 // pred_region
      _
    $region29: #{squeezenet_plus_latent.1} parent=1 // pred_fallthru
      _
    // Predicated region
    $region30: #{squeezenet_plus_latent.1} parent=1 // pred_check
      _
    $region31: #{squeezenet_plus_latent.1} parent=1 // pred_check_branch
      %36 = sbr.rel (0) target = $region33
    $region32: #{squeezenet_plus_latent.1} parent=1 // pred_region
      _
    $region33: #{squeezenet_plus_latent.1} parent=1 // pred_fallthru
      _
    // Predicated region
    $region34: #{squeezenet_plus_latent.1} parent=1 // pred_check
      _
    $region35: #{squeezenet_plus_latent.1} parent=1 // pred_check_branch
      %38 = sbr.rel (0) target = $region37
    $region36: #{squeezenet_plus_latent.1} parent=1 // pred_region
      _
    $region37: #{squeezenet_plus_latent.1} parent=1 // pred_fallthru
      _
    %p39 = scmp.eq.s32.totalorder 0, 0
    // Predicated region
    $region38: #{squeezenet_plus_latent.1} parent=1 // pred_check
      %p40 = pneg %p39
    $region39: #{squeezenet_plus_latent.1} parent=1 // pred_check_branch
      %42 = sbr.rel (%p40) target = $region41
    $region40: #{squeezenet_plus_latent.1} parent=1 // pred_region
      %43 = vst [vmem:[#allocation2] sm:$0xf] 0.0
    $region41: #{squeezenet_plus_latent.1} parent=1 // pred_fallthru
      _
    %v44 = vld [vmem:[%s0] sm:$0xff]
    %v45 = vld [vmem:[%s0 + $0x8] sm:$0xff]
    %v46 = vld [vmem:[%s1] sm:$0xff]
    %v47 = vld [vmem:[%s1 + $0x8] sm:$0xff]
    %v48 = vld [vmem:[%s1 + $0x10] sm:$0xff]
    %v49 = vld [vmem:[%s1 + $0x18] sm:$0xff]
    %v50 = vld [vmem:[%s1 + $0x20] sm:$0xff]
    %v51 = vld [vmem:[%s1 + $0x28] sm:$0xff]
    %v52 = vld [vmem:[%s1 + $0x30] sm:$0xff]
    %v53 = vld [vmem:[%s1 + $0x38] sm:$0xff]
    %v54 = vld [vmem:[%s1 + $0x40] sm:$0xff]
    %v55 = vld [vmem:[%s1 + $0x48] sm:$0xff]
    %v56 = vld [vmem:[%s1 + $0x50] sm:$0xff]
    %v57 = vld [vmem:[%s1 + $0x58] sm:$0xff]
    %v58 = vld [vmem:[%s1 + $0x60] sm:$0xff]
    %v59 = vld [vmem:[%s1 + $0x68] sm:$0xff]
    %v60 = vld [vmem:[%s1 + $0x70] sm:$0xff]
    %v61 = vld [vmem:[%s1 + $0x78] sm:$0xff]
    %v62 = vld [vmem:[%s1 + $0x80] sm:$0xff]
    %v63 = vld [vmem:[%s1 + $0x88] sm:$0xff]
    %v64 = vld [vmem:[%s1 + $0x90] sm:$0xff]
    %v65 = vld [vmem:[%s1 + $0x98] sm:$0xff]
    %v66 = vld [vmem:[%s1 + $0xa0] sm:$0xff]
    %v67 = vld [vmem:[%s1 + $0xa8] sm:$0xff]
    %v68 = vld [vmem:[%s1 + $0xb0] sm:$0xff]
    %v69 = vld [vmem:[%s1 + $0xb8] sm:$0xff]
    %v70 = vld [vmem:[%s1 + $0xc0] sm:$0xff]
    %v71 = vld [vmem:[%s1 + $0xc8] sm:$0xff]
    %v72 = vld [vmem:[%s1 + $0xd0] sm:$0xff]
    %v73 = vld [vmem:[%s1 + $0xd8] sm:$0xff]
    %v74 = vld [vmem:[%s1 + $0xe0] sm:$0xff]
    %v75 = vld [vmem:[%s1 + $0xe8] sm:$0xff]
    %v76 = vld [vmem:[%s1 + $0xf0] sm:$0xff]
    %v77 = vld [vmem:[%s1 + $0xf8] sm:$0xff]
    %v80 = vlaneseq
    %v81 = vshrl.u32 %v80, 7
    %v82 = vsub.s32 0, %v81
    %v83 = vrot.slane %v44, %v82
    %v84 = vlaneseq
    %v85 = vshrl.u32 %v84, 7
    %v86 = vsub.s32 4, %v85
    %v87 = vrot.slane %v44, %v86
    %v88 = vlaneseq
    %v89 = vshrl.u32 %v88, 7
    %v90 = vsub.s32 0, %v89
    %v91 = vrot.slane %v45, %v90
    %v92 = vlaneseq
    %v93 = vshrl.u32 %v92, 7
    %v94 = vsub.s32 4, %v93
    %v95 = vrot.slane %v45, %v94
    %v100 = vlaneseq
    %v101 = vshrl.u32 %v100, 7
    %v102 = vsub.s32 0, %v101
    %v103 = vrot.slane %v83, %v102
    %v104 = vlaneseq
    %v105 = vshrl.u32 %v104, 7
    %v106 = vsub.s32 0, %v105
    %v107 = vrot.slane %v87, %v106
    %v108 = vlaneseq
    %v109 = vshrl.u32 %v108, 7
    %v110 = vsub.s32 0, %v109
    %v111 = vrot.slane %v91, %v110
    %v112 = vlaneseq
    %v113 = vshrl.u32 %v112, 7
    %v114 = vsub.s32 0, %v113
    %v115 = vrot.slane %v95, %v114
    %117 = vset.pattern.permute.xlu0 0
    %118 = vperm.xlu0 %117, %v46
    %v119 = vpop.permute.xlu0 %118
    %122 = vset.pattern.permute.xlu0 0
    %123 = vperm.xlu0 %122, %v47
    %v124 = vpop.permute.xlu0 %123
    %127 = vset.pattern.permute.xlu0 0
    %128 = vperm.xlu0 %127, %v48
    %v129 = vpop.permute.xlu0 %128
    %132 = vset.pattern.permute.xlu0 0
    %133 = vperm.xlu0 %132, %v49
    %v134 = vpop.permute.xlu0 %133
    %137 = vset.pattern.permute.xlu0 0
    %138 = vperm.xlu0 %137, %v50
    %v139 = vpop.permute.xlu0 %138
    %142 = vset.pattern.permute.xlu0 0
    %143 = vperm.xlu0 %142, %v51
    %v144 = vpop.permute.xlu0 %143
    %147 = vset.pattern.permute.xlu0 0
    %148 = vperm.xlu0 %147, %v52
    %v149 = vpop.permute.xlu0 %148
    %152 = vset.pattern.permute.xlu0 0
    %153 = vperm.xlu0 %152, %v53
    %v154 = vpop.permute.xlu0 %153
    %157 = vset.pattern.permute.xlu0 0
    %158 = vperm.xlu0 %157, %v54
    %v159 = vpop.permute.xlu0 %158
    %162 = vset.pattern.permute.xlu0 0
    %163 = vperm.xlu0 %162, %v55
    %v164 = vpop.permute.xlu0 %163
    %167 = vset.pattern.permute.xlu0 0
    %168 = vperm.xlu0 %167, %v56
    %v169 = vpop.permute.xlu0 %168
    %172 = vset.pattern.permute.xlu0 0
    %173 = vperm.xlu0 %172, %v57
    %v174 = vpop.permute.xlu0 %173
    %177 = vset.pattern.permute.xlu0 0
    %178 = vperm.xlu0 %177, %v58
    %v179 = vpop.permute.xlu0 %178
    %182 = vset.pattern.permute.xlu0 0
    %183 = vperm.xlu0 %182, %v59
    %v184 = vpop.permute.xlu0 %183
    %187 = vset.pattern.permute.xlu0 0
    %188 = vperm.xlu0 %187, %v60
    %v189 = vpop.permute.xlu0 %188
    %192 = vset.pattern.permute.xlu0 0
    %193 = vperm.xlu0 %192, %v61
    %v194 = vpop.permute.xlu0 %193
    %197 = vset.pattern.permute.xlu0 0
    %198 = vperm.xlu0 %197, %v62
    %v199 = vpop.permute.xlu0 %198
    %202 = vset.pattern.permute.xlu0 0
    %203 = vperm.xlu0 %202, %v63
    %v204 = vpop.permute.xlu0 %203
    %207 = vset.pattern.permute.xlu0 0
    %208 = vperm.xlu0 %207, %v64
    %v209 = vpop.permute.xlu0 %208
    %212 = vset.pattern.permute.xlu0 0
    %213 = vperm.xlu0 %212, %v65
    %v214 = vpop.permute.xlu0 %213
    %217 = vset.pattern.permute.xlu0 0
    %218 = vperm.xlu0 %217, %v66
    %v219 = vpop.permute.xlu0 %218
    %222 = vset.pattern.permute.xlu0 0
    %223 = vperm.xlu0 %222, %v67
    %v224 = vpop.permute.xlu0 %223
    %227 = vset.pattern.permute.xlu0 0
    %228 = vperm.xlu0 %227, %v68
    %v229 = vpop.permute.xlu0 %228
    %232 = vset.pattern.permute.xlu0 0
    %233 = vperm.xlu0 %232, %v69
    %v234 = vpop.permute.xlu0 %233
    %237 = vset.pattern.permute.xlu0 0
    %238 = vperm.xlu0 %237, %v70
    %v239 = vpop.permute.xlu0 %238
    %242 = vset.pattern.permute.xlu0 0
    %243 = vperm.xlu0 %242, %v71
    %v244 = vpop.permute.xlu0 %243
    %247 = vset.pattern.permute.xlu0 0
    %248 = vperm.xlu0 %247, %v72
    %v249 = vpop.permute.xlu0 %248
    %252 = vset.pattern.permute.xlu0 0
    %253 = vperm.xlu0 %252, %v73
    %v254 = vpop.permute.xlu0 %253
    %257 = vset.pattern.permute.xlu0 0
    %258 = vperm.xlu0 %257, %v74
    %v259 = vpop.permute.xlu0 %258
    %262 = vset.pattern.permute.xlu0 0
    %263 = vperm.xlu0 %262, %v75
    %v264 = vpop.permute.xlu0 %263
    %267 = vset.pattern.permute.xlu0 0
    %268 = vperm.xlu0 %267, %v76
    %v269 = vpop.permute.xlu0 %268
    %272 = vset.pattern.permute.xlu0 0
    %273 = vperm.xlu0 %272, %v77
    %v274 = vpop.permute.xlu0 %273
    %v276 = vmul.f32 %v103, %v119
    %v277 = vmul.f32 %v107, %v119
    %v278 = vmul.f32 %v103, %v124
    %v279 = vmul.f32 %v107, %v124
    %v280 = vmul.f32 %v103, %v129
    %v281 = vmul.f32 %v107, %v129
    %v282 = vmul.f32 %v103, %v134
    %v283 = vmul.f32 %v107, %v134
    %v284 = vmul.f32 %v103, %v139
    %v285 = vmul.f32 %v107, %v139
    %v286 = vmul.f32 %v103, %v144
    %v287 = vmul.f32 %v107, %v144
    %v288 = vmul.f32 %v103, %v149
    %v289 = vmul.f32 %v107, %v149
    %v290 = vmul.f32 %v103, %v154
    %v291 = vmul.f32 %v107, %v154
    %v292 = vmul.f32 %v103, %v159
    %v293 = vmul.f32 %v107, %v159
    %v294 = vmul.f32 %v103, %v164
    %v295 = vmul.f32 %v107, %v164
    %v296 = vmul.f32 %v103, %v169
    %v297 = vmul.f32 %v107, %v169
    %v298 = vmul.f32 %v103, %v174
    %v299 = vmul.f32 %v107, %v174
    %v300 = vmul.f32 %v103, %v179
    %v301 = vmul.f32 %v107, %v179
    %v302 = vmul.f32 %v103, %v184
    %v303 = vmul.f32 %v107, %v184
    %v304 = vmul.f32 %v103, %v189
    %v305 = vmul.f32 %v107, %v189
    %v306 = vmul.f32 %v103, %v194
    %v307 = vmul.f32 %v107, %v194
    %v308 = vmul.f32 %v103, %v199
    %v309 = vmul.f32 %v107, %v199
    %v310 = vmul.f32 %v103, %v204
    %v311 = vmul.f32 %v107, %v204
    %v312 = vmul.f32 %v103, %v209
    %v313 = vmul.f32 %v107, %v209
    %v314 = vmul.f32 %v103, %v214
    %v315 = vmul.f32 %v107, %v214
    %v316 = vmul.f32 %v103, %v219
    %v317 = vmul.f32 %v107, %v219
    %v318 = vmul.f32 %v103, %v224
    %v319 = vmul.f32 %v107, %v224
    %v320 = vmul.f32 %v103, %v229
    %v321 = vmul.f32 %v107, %v229
    %v322 = vmul.f32 %v103, %v234
    %v323 = vmul.f32 %v107, %v234
    %v324 = vmul.f32 %v103, %v239
    %v325 = vmul.f32 %v107, %v239
    %v326 = vmul.f32 %v103, %v244
    %v327 = vmul.f32 %v107, %v244
    %v328 = vmul.f32 %v103, %v249
    %v329 = vmul.f32 %v107, %v249
    %v330 = vmul.f32 %v103, %v254
    %v331 = vmul.f32 %v107, %v254
    %v332 = vmul.f32 %v103, %v259
    %v333 = vmul.f32 %v107, %v259
    %v334 = vmul.f32 %v103, %v264
    %v335 = vmul.f32 %v107, %v264
    %v336 = vmul.f32 %v103, %v269
    %v337 = vmul.f32 %v107, %v269
    %v338 = vmul.f32 %v103, %v274
    %v339 = vmul.f32 %v107, %v274
    %v340 = vmul.f32 %v111, %v119
    %v341 = vmul.f32 %v115, %v119
    %v342 = vmul.f32 %v111, %v124
    %v343 = vmul.f32 %v115, %v124
    %v344 = vmul.f32 %v111, %v129
    %v345 = vmul.f32 %v115, %v129
    %v346 = vmul.f32 %v111, %v134
    %v347 = vmul.f32 %v115, %v134
    %v348 = vmul.f32 %v111, %v139
    %v349 = vmul.f32 %v115, %v139
    %v350 = vmul.f32 %v111, %v144
    %v351 = vmul.f32 %v115, %v144
    %v352 = vmul.f32 %v111, %v149
    %v353 = vmul.f32 %v115, %v149
    %v354 = vmul.f32 %v111, %v154
    %v355 = vmul.f32 %v115, %v154
    %v356 = vmul.f32 %v111, %v159
    %v357 = vmul.f32 %v115, %v159
    %v358 = vmul.f32 %v111, %v164
    %v359 = vmul.f32 %v115, %v164
    %v360 = vmul.f32 %v111, %v169
    %v361 = vmul.f32 %v115, %v169
    %v362 = vmul.f32 %v111, %v174
    %v363 = vmul.f32 %v115, %v174
    %v364 = vmul.f32 %v111, %v179
    %v365 = vmul.f32 %v115, %v179
    %v366 = vmul.f32 %v111, %v184
    %v367 = vmul.f32 %v115, %v184
    %v368 = vmul.f32 %v111, %v189
    %v369 = vmul.f32 %v115, %v189
    %v370 = vmul.f32 %v111, %v194
    %v371 = vmul.f32 %v115, %v194
    %v372 = vmul.f32 %v111, %v199
    %v373 = vmul.f32 %v115, %v199
    %v374 = vmul.f32 %v111, %v204
    %v375 = vmul.f32 %v115, %v204
    %v376 = vmul.f32 %v111, %v209
    %v377 = vmul.f32 %v115, %v209
    %v378 = vmul.f32 %v111, %v214
    %v379 = vmul.f32 %v115, %v214
    %v380 = vmul.f32 %v111, %v219
    %v381 = vmul.f32 %v115, %v219
    %v382 = vmul.f32 %v111, %v224
    %v383 = vmul.f32 %v115, %v224
    %v384 = vmul.f32 %v111, %v229
    %v385 = vmul.f32 %v115, %v229
    %v386 = vmul.f32 %v111, %v234
    %v387 = vmul.f32 %v115, %v234
    %v388 = vmul.f32 %v111, %v239
    %v389 = vmul.f32 %v115, %v239
    %v390 = vmul.f32 %v111, %v244
    %v391 = vmul.f32 %v115, %v244
    %v392 = vmul.f32 %v111, %v249
    %v393 = vmul.f32 %v115, %v249
    %v394 = vmul.f32 %v111, %v254
    %v395 = vmul.f32 %v115, %v254
    %v396 = vmul.f32 %v111, %v259
    %v397 = vmul.f32 %v115, %v259
    %v398 = vmul.f32 %v111, %v264
    %v399 = vmul.f32 %v115, %v264
    %v400 = vmul.f32 %v111, %v269
    %v401 = vmul.f32 %v115, %v269
    %v402 = vmul.f32 %v111, %v274
    %v403 = vmul.f32 %v115, %v274
    %v404 = vlaneseq
    %v405 = vshrl.u32 %v404, 7
    %v406 = vsub.s32 1, %v405
    %v407 = vrot.slane %v44, %v406
    %v408 = vlaneseq
    %v409 = vshrl.u32 %v408, 7
    %v410 = vsub.s32 5, %v409
    %v411 = vrot.slane %v44, %v410
    %v412 = vlaneseq
    %v413 = vshrl.u32 %v412, 7
    %v414 = vsub.s32 1, %v413
    %v415 = vrot.slane %v45, %v414
    %v416 = vlaneseq
    %v417 = vshrl.u32 %v416, 7
    %v418 = vsub.s32 5, %v417
    %v419 = vrot.slane %v45, %v418
    %v424 = vlaneseq
    %v425 = vshrl.u32 %v424, 7
    %v426 = vsub.s32 1, %v425
    %v427 = vrot.slane %v407, %v426
    %v428 = vlaneseq
    %v429 = vshrl.u32 %v428, 7
    %v430 = vsub.s32 1, %v429
    %v431 = vrot.slane %v411, %v430
    %v432 = vlaneseq
    %v433 = vshrl.u32 %v432, 7
    %v434 = vsub.s32 1, %v433
    %v435 = vrot.slane %v415, %v434
    %v436 = vlaneseq
    %v437 = vshrl.u32 %v436, 7
    %v438 = vsub.s32 1, %v437
    %v439 = vrot.slane %v419, %v438
    %440 = vset.pattern.permute.xlu0 1
    %441 = vperm.xlu0 %440, %v46
    %v442 = vpop.permute.xlu0 %441
    %444 = vset.pattern.permute.xlu0 1
    %445 = vperm.xlu0 %444, %v47
    %v446 = vpop.permute.xlu0 %445
    %448 = vset.pattern.permute.xlu0 1
    %449 = vperm.xlu0 %448, %v48
    %v450 = vpop.permute.xlu0 %449
    %452 = vset.pattern.permute.xlu0 1
    %453 = vperm.xlu0 %452, %v49
    %v454 = vpop.permute.xlu0 %453
    %456 = vset.pattern.permute.xlu0 1
    %457 = vperm.xlu0 %456, %v50
    %v458 = vpop.permute.xlu0 %457
    %460 = vset.pattern.permute.xlu0 1
    %461 = vperm.xlu0 %460, %v51
    %v462 = vpop.permute.xlu0 %461
    %464 = vset.pattern.permute.xlu0 1
    %465 = vperm.xlu0 %464, %v52
    %v466 = vpop.permute.xlu0 %465
    %468 = vset.pattern.permute.xlu0 1
    %469 = vperm.xlu0 %468, %v53
    %v470 = vpop.permute.xlu0 %469
    %472 = vset.pattern.permute.xlu0 1
    %473 = vperm.xlu0 %472, %v54
    %v474 = vpop.permute.xlu0 %473
    %476 = vset.pattern.permute.xlu0 1
    %477 = vperm.xlu0 %476, %v55
    %v478 = vpop.permute.xlu0 %477
    %480 = vset.pattern.permute.xlu0 1
    %481 = vperm.xlu0 %480, %v56
    %v482 = vpop.permute.xlu0 %481
    %484 = vset.pattern.permute.xlu0 1
    %485 = vperm.xlu0 %484, %v57
    %v486 = vpop.permute.xlu0 %485
    %488 = vset.pattern.permute.xlu0 1
    %489 = vperm.xlu0 %488, %v58
    %v490 = vpop.permute.xlu0 %489
    %492 = vset.pattern.permute.xlu0 1
    %493 = vperm.xlu0 %492, %v59
    %v494 = vpop.permute.xlu0 %493
    %496 = vset.pattern.permute.xlu0 1
    %497 = vperm.xlu0 %496, %v60
    %v498 = vpop.permute.xlu0 %497
    %500 = vset.pattern.permute.xlu0 1
    %501 = vperm.xlu0 %500, %v61
    %v502 = vpop.permute.xlu0 %501
    %504 = vset.pattern.permute.xlu0 1
    %505 = vperm.xlu0 %504, %v62
    %v506 = vpop.permute.xlu0 %505
    %508 = vset.pattern.permute.xlu0 1
    %509 = vperm.xlu0 %508, %v63
    %v510 = vpop.permute.xlu0 %509
    %512 = vset.pattern.permute.xlu0 1
    %513 = vperm.xlu0 %512, %v64
    %v514 = vpop.permute.xlu0 %513
    %516 = vset.pattern.permute.xlu0 1
    %517 = vperm.xlu0 %516, %v65
    %v518 = vpop.permute.xlu0 %517
    %520 = vset.pattern.permute.xlu0 1
    %521 = vperm.xlu0 %520, %v66
    %v522 = vpop.permute.xlu0 %521
    %524 = vset.pattern.permute.xlu0 1
    %525 = vperm.xlu0 %524, %v67
    %v526 = vpop.permute.xlu0 %525
    %528 = vset.pattern.permute.xlu0 1
    %529 = vperm.xlu0 %528, %v68
    %v530 = vpop.permute.xlu0 %529
    %532 = vset.pattern.permute.xlu0 1
    %533 = vperm.xlu0 %532, %v69
    %v534 = vpop.permute.xlu0 %533
    %536 = vset.pattern.permute.xlu0 1
    %537 = vperm.xlu0 %536, %v70
    %v538 = vpop.permute.xlu0 %537
    %540 = vset.pattern.permute.xlu0 1
    %541 = vperm.xlu0 %540, %v71
    %v542 = vpop.permute.xlu0 %541
    %544 = vset.pattern.permute.xlu0 1
    %545 = vperm.xlu0 %544, %v72
    %v546 = vpop.permute.xlu0 %545
    %548 = vset.pattern.permute.xlu0 1
    %549 = vperm.xlu0 %548, %v73
    %v550 = vpop.permute.xlu0 %549
    %552 = vset.pattern.permute.xlu0 1
    %553 = vperm.xlu0 %552, %v74
    %v554 = vpop.permute.xlu0 %553
    %556 = vset.pattern.permute.xlu0 1
    %557 = vperm.xlu0 %556, %v75
    %v558 = vpop.permute.xlu0 %557
    %560 = vset.pattern.permute.xlu0 1
    %561 = vperm.xlu0 %560, %v76
    %v562 = vpop.permute.xlu0 %561
    %564 = vset.pattern.permute.xlu0 1
    %565 = vperm.xlu0 %564, %v77
    %v566 = vpop.permute.xlu0 %565
    %v568 = vmul.f32 %v427, %v442
    %v569 = vmul.f32 %v431, %v442
    %v570 = vmul.f32 %v427, %v446
    %v571 = vmul.f32 %v431, %v446
    %v572 = vmul.f32 %v427, %v450
    %v573 = vmul.f32 %v431, %v450
    %v574 = vmul.f32 %v427, %v454
    %v575 = vmul.f32 %v431, %v454
    %v576 = vmul.f32 %v427, %v458
    %v577 = vmul.f32 %v431, %v458
    %v578 = vmul.f32 %v427, %v462
    %v579 = vmul.f32 %v431, %v462
    %v580 = vmul.f32 %v427, %v466
    %v581 = vmul.f32 %v431, %v466
    %v582 = vmul.f32 %v427, %v470
    %v583 = vmul.f32 %v431, %v470
    %v584 = vmul.f32 %v427, %v474
    %v585 = vmul.f32 %v431, %v474
    %v586 = vmul.f32 %v427, %v478
    %v587 = vmul.f32 %v431, %v478
    %v588 = vmul.f32 %v427, %v482
    %v589 = vmul.f32 %v431, %v482
    %v590 = vmul.f32 %v427, %v486
    %v591 = vmul.f32 %v431, %v486
    %v592 = vmul.f32 %v427, %v490
    %v593 = vmul.f32 %v431, %v490
    %v594 = vmul.f32 %v427, %v494
    %v595 = vmul.f32 %v431, %v494
    %v596 = vmul.f32 %v427, %v498
    %v597 = vmul.f32 %v431, %v498
    %v598 = vmul.f32 %v427, %v502
    %v599 = vmul.f32 %v431, %v502
    %v600 = vmul.f32 %v427, %v506
    %v601 = vmul.f32 %v431, %v506
    %v602 = vmul.f32 %v427, %v510
    %v603 = vmul.f32 %v431, %v510
    %v604 = vmul.f32 %v427, %v514
    %v605 = vmul.f32 %v431, %v514
    %v606 = vmul.f32 %v427, %v518
    %v607 = vmul.f32 %v431, %v518
    %v608 = vmul.f32 %v427, %v522
    %v609 = vmul.f32 %v431, %v522
    %v610 = vmul.f32 %v427, %v526
    %v611 = vmul.f32 %v431, %v526
    %v612 = vmul.f32 %v427, %v530
    %v613 = vmul.f32 %v431, %v530
    %v614 = vmul.f32 %v427, %v534
    %v615 = vmul.f32 %v431, %v534
    %v616 = vmul.f32 %v427, %v538
    %v617 = vmul.f32 %v431, %v538
    %v618 = vmul.f32 %v427, %v542
    %v619 = vmul.f32 %v431, %v542
    %v620 = vmul.f32 %v427, %v546
    %v621 = vmul.f32 %v431, %v546
    %v622 = vmul.f32 %v427, %v550
    %v623 = vmul.f32 %v431, %v550
    %v624 = vmul.f32 %v427, %v554
    %v625 = vmul.f32 %v431, %v554
    %v626 = vmul.f32 %v427, %v558
    %v627 = vmul.f32 %v431, %v558
    %v628 = vmul.f32 %v427, %v562
    %v629 = vmul.f32 %v431, %v562
    %v630 = vmul.f32 %v427, %v566
    %v631 = vmul.f32 %v431, %v566
    %v632 = vmul.f32 %v435, %v442
    %v633 = vmul.f32 %v439, %v442
    %v634 = vmul.f32 %v435, %v446
    %v635 = vmul.f32 %v439, %v446
    %v636 = vmul.f32 %v435, %v450
    %v637 = vmul.f32 %v439, %v450
    %v638 = vmul.f32 %v435, %v454
    %v639 = vmul.f32 %v439, %v454
    %v640 = vmul.f32 %v435, %v458
    %v641 = vmul.f32 %v439, %v458
    %v642 = vmul.f32 %v435, %v462
    %v643 = vmul.f32 %v439, %v462
    %v644 = vmul.f32 %v435, %v466
    %v645 = vmul.f32 %v439, %v466
    %v646 = vmul.f32 %v435, %v470
    %v647 = vmul.f32 %v439, %v470
    %v648 = vmul.f32 %v435, %v474
    %v649 = vmul.f32 %v439, %v474
    %v650 = vmul.f32 %v435, %v478
    %v651 = vmul.f32 %v439, %v478
    %v652 = vmul.f32 %v435, %v482
    %v653 = vmul.f32 %v439, %v482
    %v654 = vmul.f32 %v435, %v486
    %v655 = vmul.f32 %v439, %v486
    %v656 = vmul.f32 %v435, %v490
    %v657 = vmul.f32 %v439, %v490
    %v658 = vmul.f32 %v435, %v494
    %v659 = vmul.f32 %v439, %v494
    %v660 = vmul.f32 %v435, %v498
    %v661 = vmul.f32 %v439, %v498
    %v662 = vmul.f32 %v435, %v502
    %v663 = vmul.f32 %v439, %v502
    %v664 = vmul.f32 %v435, %v506
    %v665 = vmul.f32 %v439, %v506
    %v666 = vmul.f32 %v435, %v510
    %v667 = vmul.f32 %v439, %v510
    %v668 = vmul.f32 %v435, %v514
    %v669 = vmul.f32 %v439, %v514
    %v670 = vmul.f32 %v435, %v518
    %v671 = vmul.f32 %v439, %v518
    %v672 = vmul.f32 %v435, %v522
    %v673 = vmul.f32 %v439, %v522
    %v674 = vmul.f32 %v435, %v526
    %v675 = vmul.f32 %v439, %v526
    %v676 = vmul.f32 %v435, %v530
    %v677 = vmul.f32 %v439, %v530
    %v678 = vmul.f32 %v435, %v534
    %v679 = vmul.f32 %v439, %v534
    %v680 = vmul.f32 %v435, %v538
    %v681 = vmul.f32 %v439, %v538
    %v682 = vmul.f32 %v435, %v542
    %v683 = vmul.f32 %v439, %v542
    %v684 = vmul.f32 %v435, %v546
    %v685 = vmul.f32 %v439, %v546
    %v686 = vmul.f32 %v435, %v550
    %v687 = vmul.f32 %v439, %v550
    %v688 = vmul.f32 %v435, %v554
    %v689 = vmul.f32 %v439, %v554
    %v690 = vmul.f32 %v435, %v558
    %v691 = vmul.f32 %v439, %v558
    %v692 = vmul.f32 %v435, %v562
    %v693 = vmul.f32 %v439, %v562
    %v694 = vmul.f32 %v435, %v566
    %v695 = vmul.f32 %v439, %v566
    %v696 = vadd.f32 %v276, %v568
    %v697 = vadd.f32 %v277, %v569
    %v698 = vadd.f32 %v278, %v570
    %v699 = vadd.f32 %v279, %v571
    %v700 = vadd.f32 %v280, %v572
    %v701 = vadd.f32 %v281, %v573
    %v702 = vadd.f32 %v282, %v574
    %v703 = vadd.f32 %v283, %v575
    %v704 = vadd.f32 %v284, %v576
    %v705 = vadd.f32 %v285, %v577
    %v706 = vadd.f32 %v286, %v578
    %v707 = vadd.f32 %v287, %v579
    %v708 = vadd.f32 %v288, %v580
    %v709 = vadd.f32 %v289, %v581
    %v710 = vadd.f32 %v290, %v582
    %v711 = vadd.f32 %v291, %v583
    %v712 = vadd.f32 %v292, %v584
    %v713 = vadd.f32 %v293, %v585
    %v714 = vadd.f32 %v294, %v586
    %v715 = vadd.f32 %v295, %v587
    %v716 = vadd.f32 %v296, %v588
    %v717 = vadd.f32 %v297, %v589
    %v718 = vadd.f32 %v298, %v590
    %v719 = vadd.f32 %v299, %v591
    %v720 = vadd.f32 %v300, %v592
    %v721 = vadd.f32 %v301, %v593
    %v722 = vadd.f32 %v302, %v594
    %v723 = vadd.f32 %v303, %v595
    %v724 = vadd.f32 %v304, %v596
    %v725 = vadd.f32 %v305, %v597
    %v726 = vadd.f32 %v306, %v598
    %v727 = vadd.f32 %v307, %v599
    %v728 = vadd.f32 %v308, %v600
    %v729 = vadd.f32 %v309, %v601
    %v730 = vadd.f32 %v310, %v602
    %v731 = vadd.f32 %v311, %v603
    %v732 = vadd.f32 %v312, %v604
    %v733 = vadd.f32 %v313, %v605
    %v734 = vadd.f32 %v314, %v606
    %v735 = vadd.f32 %v315, %v607
    %v736 = vadd.f32 %v316, %v608
    %v737 = vadd.f32 %v317, %v609
    %v738 = vadd.f32 %v318, %v610
    %v739 = vadd.f32 %v319, %v611
    %v740 = vadd.f32 %v320, %v612
    %v741 = vadd.f32 %v321, %v613
    %v742 = vadd.f32 %v322, %v614
    %v743 = vadd.f32 %v323, %v615
    %v744 = vadd.f32 %v324, %v616
    %v745 = vadd.f32 %v325, %v617
    %v746 = vadd.f32 %v326, %v618
    %v747 = vadd.f32 %v327, %v619
    %v748 = vadd.f32 %v328, %v620
    %v749 = vadd.f32 %v329, %v621
    %v750 = vadd.f32 %v330, %v622
    %v751 = vadd.f32 %v331, %v623
    %v752 = vadd.f32 %v332, %v624
    %v753 = vadd.f32 %v333, %v625
    %v754 = vadd.f32 %v334, %v626
    %v755 = vadd.f32 %v335, %v627
    %v756 = vadd.f32 %v336, %v628
    %v757 = vadd.f32 %v337, %v629
    %v758 = vadd.f32 %v338, %v630
    %v759 = vadd.f32 %v339, %v631
    %v760 = vadd.f32 %v340, %v632
    %v761 = vadd.f32 %v341, %v633
    %v762 = vadd.f32 %v342, %v634
    %v763 = vadd.f32 %v343, %v635
    %v764 = vadd.f32 %v344, %v636
    %v765 = vadd.f32 %v345, %v637
    %v766 = vadd.f32 %v346, %v638
    %v767 = vadd.f32 %v347, %v639
    %v768 = vadd.f32 %v348, %v640
    %v769 = vadd.f32 %v349, %v641
    %v770 = vadd.f32 %v350, %v642
    %v771 = vadd.f32 %v351, %v643
    %v772 = vadd.f32 %v352, %v644
    %v773 = vadd.f32 %v353, %v645
    %v774 = vadd.f32 %v354, %v646
    %v775 = vadd.f32 %v355, %v647
    %v776 = vadd.f32 %v356, %v648
    %v777 = vadd.f32 %v357, %v649
    %v778 = vadd.f32 %v358, %v650
    %v779 = vadd.f32 %v359, %v651
    %v780 = vadd.f32 %v360, %v652
    %v781 = vadd.f32 %v361, %v653
    %v782 = vadd.f32 %v362, %v654
    %v783 = vadd.f32 %v363, %v655
    %v784 = vadd.f32 %v364, %v656
    %v785 = vadd.f32 %v365, %v657
    %v786 = vadd.f32 %v366, %v658
    %v787 = vadd.f32 %v367, %v659
    %v788 = vadd.f32 %v368, %v660
    %v789 = vadd.f32 %v369, %v661
    %v790 = vadd.f32 %v370, %v662
    %v791 = vadd.f32 %v371, %v663
    %v792 = vadd.f32 %v372, %v664
    %v793 = vadd.f32 %v373, %v665
    %v794 = vadd.f32 %v374, %v666
    %v795 = vadd.f32 %v375, %v667
    %v796 = vadd.f32 %v376, %v668
    %v797 = vadd.f32 %v377, %v669
    %v798 = vadd.f32 %v378, %v670
    %v799 = vadd.f32 %v379, %v671
    %v800 = vadd.f32 %v380, %v672
    %v801 = vadd.f32 %v381, %v673
    %v802 = vadd.f32 %v382, %v674
    %v803 = vadd.f32 %v383, %v675
    %v804 = vadd.f32 %v384, %v676
    %v805 = vadd.f32 %v385, %v677
    %v806 = vadd.f32 %v386, %v678
    %v807 = vadd.f32 %v387, %v679
    %v808 = vadd.f32 %v388, %v680
    %v809 = vadd.f32 %v389, %v681
    %v810 = vadd.f32 %v390, %v682
    %v811 = vadd.f32 %v391, %v683
    %v812 = vadd.f32 %v392, %v684
    %v813 = vadd.f32 %v393, %v685
    %v814 = vadd.f32 %v394, %v686
    %v815 = vadd.f32 %v395, %v687
    %v816 = vadd.f32 %v396, %v688
    %v817 = vadd.f32 %v397, %v689
    %v818 = vadd.f32 %v398, %v690
    %v819 = vadd.f32 %v399, %v691
    %v820 = vadd.f32 %v400, %v692
    %v821 = vadd.f32 %v401, %v693
    %v822 = vadd.f32 %v402, %v694
    %v823 = vadd.f32 %v403, %v695
    %v824 = vlaneseq
    %v825 = vshrl.u32 %v824, 7
    %v826 = vsub.s32 2, %v825
    %v827 = vrot.slane %v44, %v826
    %v828 = vlaneseq
    %v829 = vshrl.u32 %v828, 7
    %v830 = vsub.s32 6, %v829
    %v831 = vrot.slane %v44, %v830
    %v832 = vlaneseq
    %v833 = vshrl.u32 %v832, 7
    %v834 = vsub.s32 2, %v833
    %v835 = vrot.slane %v45, %v834
    %v836 = vlaneseq
    %v837 = vshrl.u32 %v836, 7
    %v838 = vsub.s32 6, %v837
    %v839 = vrot.slane %v45, %v838
    %v844 = vlaneseq
    %v845 = vshrl.u32 %v844, 7
    %v846 = vsub.s32 2, %v845
    %v847 = vrot.slane %v827, %v846
    %v848 = vlaneseq
    %v849 = vshrl.u32 %v848, 7
    %v850 = vsub.s32 2, %v849
    %v851 = vrot.slane %v831, %v850
    %v852 = vlaneseq
    %v853 = vshrl.u32 %v852, 7
    %v854 = vsub.s32 2, %v853
    %v855 = vrot.slane %v835, %v854
    %v856 = vlaneseq
    %v857 = vshrl.u32 %v856, 7
    %v858 = vsub.s32 2, %v857
    %v859 = vrot.slane %v839, %v858
    %860 = vset.pattern.permute.xlu0 2
    %861 = vperm.xlu0 %860, %v46
    %v862 = vpop.permute.xlu0 %861
    %864 = vset.pattern.permute.xlu0 2
    %865 = vperm.xlu0 %864, %v47
    %v866 = vpop.permute.xlu0 %865
    %868 = vset.pattern.permute.xlu0 2
    %869 = vperm.xlu0 %868, %v48
    %v870 = vpop.permute.xlu0 %869
    %872 = vset.pattern.permute.xlu0 2
    %873 = vperm.xlu0 %872, %v49
    %v874 = vpop.permute.xlu0 %873
    %876 = vset.pattern.permute.xlu0 2
    %877 = vperm.xlu0 %876, %v50
    %v878 = vpop.permute.xlu0 %877
    %880 = vset.pattern.permute.xlu0 2
    %881 = vperm.xlu0 %880, %v51
    %v882 = vpop.permute.xlu0 %881
    %884 = vset.pattern.permute.xlu0 2
    %885 = vperm.xlu0 %884, %v52
    %v886 = vpop.permute.xlu0 %885
    %888 = vset.pattern.permute.xlu0 2
    %889 = vperm.xlu0 %888, %v53
    %v890 = vpop.permute.xlu0 %889
    %892 = vset.pattern.permute.xlu0 2
    %893 = vperm.xlu0 %892, %v54
    %v894 = vpop.permute.xlu0 %893
    %896 = vset.pattern.permute.xlu0 2
    %897 = vperm.xlu0 %896, %v55
    %v898 = vpop.permute.xlu0 %897
    %900 = vset.pattern.permute.xlu0 2
    %901 = vperm.xlu0 %900, %v56
    %v902 = vpop.permute.xlu0 %901
    %904 = vset.pattern.permute.xlu0 2
    %905 = vperm.xlu0 %904, %v57
    %v906 = vpop.permute.xlu0 %905
    %908 = vset.pattern.permute.xlu0 2
    %909 = vperm.xlu0 %908, %v58
    %v910 = vpop.permute.xlu0 %909
    %912 = vset.pattern.permute.xlu0 2
    %913 = vperm.xlu0 %912, %v59
    %v914 = vpop.permute.xlu0 %913
    %916 = vset.pattern.permute.xlu0 2
    %917 = vperm.xlu0 %916, %v60
    %v918 = vpop.permute.xlu0 %917
    %920 = vset.pattern.permute.xlu0 2
    %921 = vperm.xlu0 %920, %v61
    %v922 = vpop.permute.xlu0 %921
    %924 = vset.pattern.permute.xlu0 2
    %925 = vperm.xlu0 %924, %v62
    %v926 = vpop.permute.xlu0 %925
    %928 = vset.pattern.permute.xlu0 2
    %929 = vperm.xlu0 %928, %v63
    %v930 = vpop.permute.xlu0 %929
    %932 = vset.pattern.permute.xlu0 2
    %933 = vperm.xlu0 %932, %v64
    %v934 = vpop.permute.xlu0 %933
    %936 = vset.pattern.permute.xlu0 2
    %937 = vperm.xlu0 %936, %v65
    %v938 = vpop.permute.xlu0 %937
    %940 = vset.pattern.permute.xlu0 2
    %941 = vperm.xlu0 %940, %v66
    %v942 = vpop.permute.xlu0 %941
    %944 = vset.pattern.permute.xlu0 2
    %945 = vperm.xlu0 %944, %v67
    %v946 = vpop.permute.xlu0 %945
    %948 = vset.pattern.permute.xlu0 2
    %949 = vperm.xlu0 %948, %v68
    %v950 = vpop.permute.xlu0 %949
    %952 = vset.pattern.permute.xlu0 2
    %953 = vperm.xlu0 %952, %v69
    %v954 = vpop.permute.xlu0 %953
    %956 = vset.pattern.permute.xlu0 2
    %957 = vperm.xlu0 %956, %v70
    %v958 = vpop.permute.xlu0 %957
    %960 = vset.pattern.permute.xlu0 2
    %961 = vperm.xlu0 %960, %v71
    %v962 = vpop.permute.xlu0 %961
    %964 = vset.pattern.permute.xlu0 2
    %965 = vperm.xlu0 %964, %v72
    %v966 = vpop.permute.xlu0 %965
    %968 = vset.pattern.permute.xlu0 2
    %969 = vperm.xlu0 %968, %v73
    %v970 = vpop.permute.xlu0 %969
    %972 = vset.pattern.permute.xlu0 2
    %973 = vperm.xlu0 %972, %v74
    %v974 = vpop.permute.xlu0 %973
    %976 = vset.pattern.permute.xlu0 2
    %977 = vperm.xlu0 %976, %v75
    %v978 = vpop.permute.xlu0 %977
    %980 = vset.pattern.permute.xlu0 2
    %981 = vperm.xlu0 %980, %v76
    %v982 = vpop.permute.xlu0 %981
    %984 = vset.pattern.permute.xlu0 2
    %985 = vperm.xlu0 %984, %v77
    %v986 = vpop.permute.xlu0 %985
    %v988 = vmul.f32 %v847, %v862
    %v989 = vmul.f32 %v851, %v862
    %v990 = vmul.f32 %v847, %v866
    %v991 = vmul.f32 %v851, %v866
    %v992 = vmul.f32 %v847, %v870
    %v993 = vmul.f32 %v851, %v870
    %v994 = vmul.f32 %v847, %v874
    %v995 = vmul.f32 %v851, %v874
    %v996 = vmul.f32 %v847, %v878
    %v997 = vmul.f32 %v851, %v878
    %v998 = vmul.f32 %v847, %v882
    %v999 = vmul.f32 %v851, %v882
    %v1000 = vmul.f32 %v847, %v886
    %v1001 = vmul.f32 %v851, %v886
    %v1002 = vmul.f32 %v847, %v890
    %v1003 = vmul.f32 %v851, %v890
    %v1004 = vmul.f32 %v847, %v894
    %v1005 = vmul.f32 %v851, %v894
    %v1006 = vmul.f32 %v847, %v898
    %v1007 = vmul.f32 %v851, %v898
    %v1008 = vmul.f32 %v847, %v902
    %v1009 = vmul.f32 %v851, %v902
    %v1010 = vmul.f32 %v847, %v906
    %v1011 = vmul.f32 %v851, %v906
    %v1012 = vmul.f32 %v847, %v910
    %v1013 = vmul.f32 %v851, %v910
    %v1014 = vmul.f32 %v847, %v914
    %v1015 = vmul.f32 %v851, %v914
    %v1016 = vmul.f32 %v847, %v918
    %v1017 = vmul.f32 %v851, %v918
    %v1018 = vmul.f32 %v847, %v922
    %v1019 = vmul.f32 %v851, %v922
    %v1020 = vmul.f32 %v847, %v926
    %v1021 = vmul.f32 %v851, %v926
    %v1022 = vmul.f32 %v847, %v930
    %v1023 = vmul.f32 %v851, %v930
    %v1024 = vmul.f32 %v847, %v934
    %v1025 = vmul.f32 %v851, %v934
    %v1026 = vmul.f32 %v847, %v938
    %v1027 = vmul.f32 %v851, %v938
    %v1028 = vmul.f32 %v847, %v942
    %v1029 = vmul.f32 %v851, %v942
    %v1030 = vmul.f32 %v847, %v946
    %v1031 = vmul.f32 %v851, %v946
    %v1032 = vmul.f32 %v847, %v950
    %v1033 = vmul.f32 %v851, %v950
    %v1034 = vmul.f32 %v847, %v954
    %v1035 = vmul.f32 %v851, %v954
    %v1036 = vmul.f32 %v847, %v958
    %v1037 = vmul.f32 %v851, %v958
    %v1038 = vmul.f32 %v847, %v962
    %v1039 = vmul.f32 %v851, %v962
    %v1040 = vmul.f32 %v847, %v966
    %v1041 = vmul.f32 %v851, %v966
    %v1042 = vmul.f32 %v847, %v970
    %v1043 = vmul.f32 %v851, %v970
    %v1044 = vmul.f32 %v847, %v974
    %v1045 = vmul.f32 %v851, %v974
    %v1046 = vmul.f32 %v847, %v978
    %v1047 = vmul.f32 %v851, %v978
    %v1048 = vmul.f32 %v847, %v982
    %v1049 = vmul.f32 %v851, %v982
    %v1050 = vmul.f32 %v847, %v986
    %v1051 = vmul.f32 %v851, %v986
    %v1052 = vmul.f32 %v855, %v862
    %v1053 = vmul.f32 %v859, %v862
    %v1054 = vmul.f32 %v855, %v866
    %v1055 = vmul.f32 %v859, %v866
    %v1056 = vmul.f32 %v855, %v870
    %v1057 = vmul.f32 %v859, %v870
    %v1058 = vmul.f32 %v855, %v874
    %v1059 = vmul.f32 %v859, %v874
    %v1060 = vmul.f32 %v855, %v878
    %v1061 = vmul.f32 %v859, %v878
    %v1062 = vmul.f32 %v855, %v882
    %v1063 = vmul.f32 %v859, %v882
    %v1064 = vmul.f32 %v855, %v886
    %v1065 = vmul.f32 %v859, %v886
    %v1066 = vmul.f32 %v855, %v890
    %v1067 = vmul.f32 %v859, %v890
    %v1068 = vmul.f32 %v855, %v894
    %v1069 = vmul.f32 %v859, %v894
    %v1070 = vmul.f32 %v855, %v898
    %v1071 = vmul.f32 %v859, %v898
    %v1072 = vmul.f32 %v855, %v902
    %v1073 = vmul.f32 %v859, %v902
    %v1074 = vmul.f32 %v855, %v906
    %v1075 = vmul.f32 %v859, %v906
    %v1076 = vmul.f32 %v855, %v910
    %v1077 = vmul.f32 %v859, %v910
    %v1078 = vmul.f32 %v855, %v914
    %v1079 = vmul.f32 %v859, %v914
    %v1080 = vmul.f32 %v855, %v918
    %v1081 = vmul.f32 %v859, %v918
    %v1082 = vmul.f32 %v855, %v922
    %v1083 = vmul.f32 %v859, %v922
    %v1084 = vmul.f32 %v855, %v926
    %v1085 = vmul.f32 %v859, %v926
    %v1086 = vmul.f32 %v855, %v930
    %v1087 = vmul.f32 %v859, %v930
    %v1088 = vmul.f32 %v855, %v934
    %v1089 = vmul.f32 %v859, %v934
    %v1090 = vmul.f32 %v855, %v938
    %v1091 = vmul.f32 %v859, %v938
    %v1092 = vmul.f32 %v855, %v942
    %v1093 = vmul.f32 %v859, %v942
    %v1094 = vmul.f32 %v855, %v946
    %v1095 = vmul.f32 %v859, %v946
    %v1096 = vmul.f32 %v855, %v950
    %v1097 = vmul.f32 %v859, %v950
    %v1098 = vmul.f32 %v855, %v954
    %v1099 = vmul.f32 %v859, %v954
    %v1100 = vmul.f32 %v855, %v958
    %v1101 = vmul.f32 %v859, %v958
    %v1102 = vmul.f32 %v855, %v962
    %v1103 = vmul.f32 %v859, %v962
    %v1104 = vmul.f32 %v855, %v966
    %v1105 = vmul.f32 %v859, %v966
    %v1106 = vmul.f32 %v855, %v970
    %v1107 = vmul.f32 %v859, %v970
    %v1108 = vmul.f32 %v855, %v974
    %v1109 = vmul.f32 %v859, %v974
    %v1110 = vmul.f32 %v855, %v978
    %v1111 = vmul.f32 %v859, %v978
    %v1112 = vmul.f32 %v855, %v982
    %v1113 = vmul.f32 %v859, %v982
    %v1114 = vmul.f32 %v855, %v986
    %v1115 = vmul.f32 %v859, %v986
    %v1116 = vadd.f32 %v696, %v988
    %v1117 = vadd.f32 %v697, %v989
    %v1118 = vadd.f32 %v698, %v990
    %v1119 = vadd.f32 %v699, %v991
    %v1120 = vadd.f32 %v700, %v992
    %v1121 = vadd.f32 %v701, %v993
    %v1122 = vadd.f32 %v702, %v994
    %v1123 = vadd.f32 %v703, %v995
    %v1124 = vadd.f32 %v704, %v996
    %v1125 = vadd.f32 %v705, %v997
    %v1126 = vadd.f32 %v706, %v998
    %v1127 = vadd.f32 %v707, %v999
    %v1128 = vadd.f32 %v708, %v1000
    %v1129 = vadd.f32 %v709, %v1001
    %v1130 = vadd.f32 %v710, %v1002
    %v1131 = vadd.f32 %v711, %v1003
    %v1132 = vadd.f32 %v712, %v1004
    %v1133 = vadd.f32 %v713, %v1005
    %v1134 = vadd.f32 %v714, %v1006
    %v1135 = vadd.f32 %v715, %v1007
    %v1136 = vadd.f32 %v716, %v1008
    %v1137 = vadd.f32 %v717, %v1009
    %v1138 = vadd.f32 %v718, %v1010
    %v1139 = vadd.f32 %v719, %v1011
    %v1140 = vadd.f32 %v720, %v1012
    %v1141 = vadd.f32 %v721, %v1013
    %v1142 = vadd.f32 %v722, %v1014
    %v1143 = vadd.f32 %v723, %v1015
    %v1144 = vadd.f32 %v724, %v1016
    %v1145 = vadd.f32 %v725, %v1017
    %v1146 = vadd.f32 %v726, %v1018
    %v1147 = vadd.f32 %v727, %v1019
    %v1148 = vadd.f32 %v728, %v1020
    %v1149 = vadd.f32 %v729, %v1021
    %v1150 = vadd.f32 %v730, %v1022
    %v1151 = vadd.f32 %v731, %v1023
    %v1152 = vadd.f32 %v732, %v1024
    %v1153 = vadd.f32 %v733, %v1025
    %v1154 = vadd.f32 %v734, %v1026
    %v1155 = vadd.f32 %v735, %v1027
    %v1156 = vadd.f32 %v736, %v1028
    %v1157 = vadd.f32 %v737, %v1029
    %v1158 = vadd.f32 %v738, %v1030
    %v1159 = vadd.f32 %v739, %v1031
    %v1160 = vadd.f32 %v740, %v1032
    %v1161 = vadd.f32 %v741, %v1033
    %v1162 = vadd.f32 %v742, %v1034
    %v1163 = vadd.f32 %v743, %v1035
    %v1164 = vadd.f32 %v744, %v1036
    %v1165 = vadd.f32 %v745, %v1037
    %v1166 = vadd.f32 %v746, %v1038
    %v1167 = vadd.f32 %v747, %v1039
    %v1168 = vadd.f32 %v748, %v1040
    %v1169 = vadd.f32 %v749, %v1041
    %v1170 = vadd.f32 %v750, %v1042
    %v1171 = vadd.f32 %v751, %v1043
    %v1172 = vadd.f32 %v752, %v1044
    %v1173 = vadd.f32 %v753, %v1045
    %v1174 = vadd.f32 %v754, %v1046
    %v1175 = vadd.f32 %v755, %v1047
    %v1176 = vadd.f32 %v756, %v1048
    %v1177 = vadd.f32 %v757, %v1049
    %v1178 = vadd.f32 %v758, %v1050
    %v1179 = vadd.f32 %v759, %v1051
    %v1180 = vadd.f32 %v760, %v1052
    %v1181 = vadd.f32 %v761, %v1053
    %v1182 = vadd.f32 %v762, %v1054
    %v1183 = vadd.f32 %v763, %v1055
    %v1184 = vadd.f32 %v764, %v1056
    %v1185 = vadd.f32 %v765, %v1057
    %v1186 = vadd.f32 %v766, %v1058
    %v1187 = vadd.f32 %v767, %v1059
    %v1188 = vadd.f32 %v768, %v1060
    %v1189 = vadd.f32 %v769, %v1061
    %v1190 = vadd.f32 %v770, %v1062
    %v1191 = vadd.f32 %v771, %v1063
    %v1192 = vadd.f32 %v772, %v1064
    %v1193 = vadd.f32 %v773, %v1065
    %v1194 = vadd.f32 %v774, %v1066
    %v1195 = vadd.f32 %v775, %v1067
    %v1196 = vadd.f32 %v776, %v1068
    %v1197 = vadd.f32 %v777, %v1069
    %v1198 = vadd.f32 %v778, %v1070
    %v1199 = vadd.f32 %v779, %v1071
    %v1200 = vadd.f32 %v780, %v1072
    %v1201 = vadd.f32 %v781, %v1073
    %v1202 = vadd.f32 %v782, %v1074
    %v1203 = vadd.f32 %v783, %v1075
    %v1204 = vadd.f32 %v784, %v1076
    %v1205 = vadd.f32 %v785, %v1077
    %v1206 = vadd.f32 %v786, %v1078
    %v1207 = vadd.f32 %v787, %v1079
    %v1208 = vadd.f32 %v788, %v1080
    %v1209 = vadd.f32 %v789, %v1081
    %v1210 = vadd.f32 %v790, %v1082
    %v1211 = vadd.f32 %v791, %v1083
    %v1212 = vadd.f32 %v792, %v1084
    %v1213 = vadd.f32 %v793, %v1085
    %v1214 = vadd.f32 %v794, %v1086
    %v1215 = vadd.f32 %v795, %v1087
    %v1216 = vadd.f32 %v796, %v1088
    %v1217 = vadd.f32 %v797, %v1089
    %v1218 = vadd.f32 %v798, %v1090
    %v1219 = vadd.f32 %v799, %v1091
    %v1220 = vadd.f32 %v800, %v1092
    %v1221 = vadd.f32 %v801, %v1093
    %v1222 = vadd.f32 %v802, %v1094
    %v1223 = vadd.f32 %v803, %v1095
    %v1224 = vadd.f32 %v804, %v1096
    %v1225 = vadd.f32 %v805, %v1097
    %v1226 = vadd.f32 %v806, %v1098
    %v1227 = vadd.f32 %v807, %v1099
    %v1228 = vadd.f32 %v808, %v1100
    %v1229 = vadd.f32 %v809, %v1101
    %v1230 = vadd.f32 %v810, %v1102
    %v1231 = vadd.f32 %v811, %v1103
    %v1232 = vadd.f32 %v812, %v1104
    %v1233 = vadd.f32 %v813, %v1105
    %v1234 = vadd.f32 %v814, %v1106
    %v1235 = vadd.f32 %v815, %v1107
    %v1236 = vadd.f32 %v816, %v1108
    %v1237 = vadd.f32 %v817, %v1109
    %v1238 = vadd.f32 %v818, %v1110
    %v1239 = vadd.f32 %v819, %v1111
    %v1240 = vadd.f32 %v820, %v1112
    %v1241 = vadd.f32 %v821, %v1113
    %v1242 = vadd.f32 %v822, %v1114
    %v1243 = vadd.f32 %v823, %v1115
    %v1244 = vlaneseq
    %v1245 = vshrl.u32 %v1244, 7
    %v1246 = vsub.s32 3, %v1245
    %v1247 = vrot.slane %v44, %v1246
    %v1248 = vlaneseq
    %v1249 = vshrl.u32 %v1248, 7
    %v1250 = vsub.s32 7, %v1249
    %v1251 = vrot.slane %v44, %v1250
    %v1252 = vlaneseq
    %v1253 = vshrl.u32 %v1252, 7
    %v1254 = vsub.s32 3, %v1253
    %v1255 = vrot.slane %v45, %v1254
    %v1256 = vlaneseq
    %v1257 = vshrl.u32 %v1256, 7
    %v1258 = vsub.s32 7, %v1257
    %v1259 = vrot.slane %v45, %v1258
    %v1264 = vlaneseq
    %v1265 = vshrl.u32 %v1264, 7
    %v1266 = vsub.s32 3, %v1265
    %v1267 = vrot.slane %v1247, %v1266
    %v1268 = vlaneseq
    %v1269 = vshrl.u32 %v1268, 7
    %v1270 = vsub.s32 3, %v1269
    %v1271 = vrot.slane %v1251, %v1270
    %v1272 = vlaneseq
    %v1273 = vshrl.u32 %v1272, 7
    %v1274 = vsub.s32 3, %v1273
    %v1275 = vrot.slane %v1255, %v1274
    %v1276 = vlaneseq
    %v1277 = vshrl.u32 %v1276, 7
    %v1278 = vsub.s32 3, %v1277
    %v1279 = vrot.slane %v1259, %v1278
    %1280 = vset.pattern.permute.xlu0 3
    %1281 = vperm.xlu0 %1280, %v46
    %v1282 = vpop.permute.xlu0 %1281
    %1284 = vset.pattern.permute.xlu0 3
    %1285 = vperm.xlu0 %1284, %v47
    %v1286 = vpop.permute.xlu0 %1285
    %1288 = vset.pattern.permute.xlu0 3
    %1289 = vperm.xlu0 %1288, %v48
    %v1290 = vpop.permute.xlu0 %1289
    %1292 = vset.pattern.permute.xlu0 3
    %1293 = vperm.xlu0 %1292, %v49
    %v1294 = vpop.permute.xlu0 %1293
    %1296 = vset.pattern.permute.xlu0 3
    %1297 = vperm.xlu0 %1296, %v50
    %v1298 = vpop.permute.xlu0 %1297
    %1300 = vset.pattern.permute.xlu0 3
    %1301 = vperm.xlu0 %1300, %v51
    %v1302 = vpop.permute.xlu0 %1301
    %1304 = vset.pattern.permute.xlu0 3
    %1305 = vperm.xlu0 %1304, %v52
    %v1306 = vpop.permute.xlu0 %1305
    %1308 = vset.pattern.permute.xlu0 3
    %1309 = vperm.xlu0 %1308, %v53
    %v1310 = vpop.permute.xlu0 %1309
    %1312 = vset.pattern.permute.xlu0 3
    %1313 = vperm.xlu0 %1312, %v54
    %v1314 = vpop.permute.xlu0 %1313
    %1316 = vset.pattern.permute.xlu0 3
    %1317 = vperm.xlu0 %1316, %v55
    %v1318 = vpop.permute.xlu0 %1317
    %1320 = vset.pattern.permute.xlu0 3
    %1321 = vperm.xlu0 %1320, %v56
    %v1322 = vpop.permute.xlu0 %1321
    %1324 = vset.pattern.permute.xlu0 3
    %1325 = vperm.xlu0 %1324, %v57
    %v1326 = vpop.permute.xlu0 %1325
    %1328 = vset.pattern.permute.xlu0 3
    %1329 = vperm.xlu0 %1328, %v58
    %v1330 = vpop.permute.xlu0 %1329
    %1332 = vset.pattern.permute.xlu0 3
    %1333 = vperm.xlu0 %1332, %v59
    %v1334 = vpop.permute.xlu0 %1333
    %1336 = vset.pattern.permute.xlu0 3
    %1337 = vperm.xlu0 %1336, %v60
    %v1338 = vpop.permute.xlu0 %1337
    %1340 = vset.pattern.permute.xlu0 3
    %1341 = vperm.xlu0 %1340, %v61
    %v1342 = vpop.permute.xlu0 %1341
    %1344 = vset.pattern.permute.xlu0 3
    %1345 = vperm.xlu0 %1344, %v62
    %v1346 = vpop.permute.xlu0 %1345
    %1348 = vset.pattern.permute.xlu0 3
    %1349 = vperm.xlu0 %1348, %v63
    %v1350 = vpop.permute.xlu0 %1349
    %1352 = vset.pattern.permute.xlu0 3
    %1353 = vperm.xlu0 %1352, %v64
    %v1354 = vpop.permute.xlu0 %1353
    %1356 = vset.pattern.permute.xlu0 3
    %1357 = vperm.xlu0 %1356, %v65
    %v1358 = vpop.permute.xlu0 %1357
    %1360 = vset.pattern.permute.xlu0 3
    %1361 = vperm.xlu0 %1360, %v66
    %v1362 = vpop.permute.xlu0 %1361
    %1364 = vset.pattern.permute.xlu0 3
    %1365 = vperm.xlu0 %1364, %v67
    %v1366 = vpop.permute.xlu0 %1365
    %1368 = vset.pattern.permute.xlu0 3
    %1369 = vperm.xlu0 %1368, %v68
    %v1370 = vpop.permute.xlu0 %1369
    %1372 = vset.pattern.permute.xlu0 3
    %1373 = vperm.xlu0 %1372, %v69
    %v1374 = vpop.permute.xlu0 %1373
    %1376 = vset.pattern.permute.xlu0 3
    %1377 = vperm.xlu0 %1376, %v70
    %v1378 = vpop.permute.xlu0 %1377
    %1380 = vset.pattern.permute.xlu0 3
    %1381 = vperm.xlu0 %1380, %v71
    %v1382 = vpop.permute.xlu0 %1381
    %1384 = vset.pattern.permute.xlu0 3
    %1385 = vperm.xlu0 %1384, %v72
    %v1386 = vpop.permute.xlu0 %1385
    %1388 = vset.pattern.permute.xlu0 3
    %1389 = vperm.xlu0 %1388, %v73
    %v1390 = vpop.permute.xlu0 %1389
    %1392 = vset.pattern.permute.xlu0 3
    %1393 = vperm.xlu0 %1392, %v74
    %v1394 = vpop.permute.xlu0 %1393
    %1396 = vset.pattern.permute.xlu0 3
    %1397 = vperm.xlu0 %1396, %v75
    %v1398 = vpop.permute.xlu0 %1397
    %1400 = vset.pattern.permute.xlu0 3
    %1401 = vperm.xlu0 %1400, %v76
    %v1402 = vpop.permute.xlu0 %1401
    %1404 = vset.pattern.permute.xlu0 3
    %1405 = vperm.xlu0 %1404, %v77
    %v1406 = vpop.permute.xlu0 %1405
    %v1408 = vmul.f32 %v1267, %v1282
    %v1409 = vmul.f32 %v1271, %v1282
    %v1410 = vmul.f32 %v1267, %v1286
    %v1411 = vmul.f32 %v1271, %v1286
    %v1412 = vmul.f32 %v1267, %v1290
    %v1413 = vmul.f32 %v1271, %v1290
    %v1414 = vmul.f32 %v1267, %v1294
    %v1415 = vmul.f32 %v1271, %v1294
    %v1416 = vmul.f32 %v1267, %v1298
    %v1417 = vmul.f32 %v1271, %v1298
    %v1418 = vmul.f32 %v1267, %v1302
    %v1419 = vmul.f32 %v1271, %v1302
    %v1420 = vmul.f32 %v1267, %v1306
    %v1421 = vmul.f32 %v1271, %v1306
    %v1422 = vmul.f32 %v1267, %v1310
    %v1423 = vmul.f32 %v1271, %v1310
    %v1424 = vmul.f32 %v1267, %v1314
    %v1425 = vmul.f32 %v1271, %v1314
    %v1426 = vmul.f32 %v1267, %v1318
    %v1427 = vmul.f32 %v1271, %v1318
    %v1428 = vmul.f32 %v1267, %v1322
    %v1429 = vmul.f32 %v1271, %v1322
    %v1430 = vmul.f32 %v1267, %v1326
    %v1431 = vmul.f32 %v1271, %v1326
    %v1432 = vmul.f32 %v1267, %v1330
    %v1433 = vmul.f32 %v1271, %v1330
    %v1434 = vmul.f32 %v1267, %v1334
    %v1435 = vmul.f32 %v1271, %v1334
    %v1436 = vmul.f32 %v1267, %v1338
    %v1437 = vmul.f32 %v1271, %v1338
    %v1438 = vmul.f32 %v1267, %v1342
    %v1439 = vmul.f32 %v1271, %v1342
    %v1440 = vmul.f32 %v1267, %v1346
    %v1441 = vmul.f32 %v1271, %v1346
    %v1442 = vmul.f32 %v1267, %v1350
    %v1443 = vmul.f32 %v1271, %v1350
    %v1444 = vmul.f32 %v1267, %v1354
    %v1445 = vmul.f32 %v1271, %v1354
    %v1446 = vmul.f32 %v1267, %v1358
    %v1447 = vmul.f32 %v1271, %v1358
    %v1448 = vmul.f32 %v1267, %v1362
    %v1449 = vmul.f32 %v1271, %v1362
    %v1450 = vmul.f32 %v1267, %v1366
    %v1451 = vmul.f32 %v1271, %v1366
    %v1452 = vmul.f32 %v1267, %v1370
    %v1453 = vmul.f32 %v1271, %v1370
    %v1454 = vmul.f32 %v1267, %v1374
    %v1455 = vmul.f32 %v1271, %v1374
    %v1456 = vmul.f32 %v1267, %v1378
    %v1457 = vmul.f32 %v1271, %v1378
    %v1458 = vmul.f32 %v1267, %v1382
    %v1459 = vmul.f32 %v1271, %v1382
    %v1460 = vmul.f32 %v1267, %v1386
    %v1461 = vmul.f32 %v1271, %v1386
    %v1462 = vmul.f32 %v1267, %v1390
    %v1463 = vmul.f32 %v1271, %v1390
    %v1464 = vmul.f32 %v1267, %v1394
    %v1465 = vmul.f32 %v1271, %v1394
    %v1466 = vmul.f32 %v1267, %v1398
    %v1467 = vmul.f32 %v1271, %v1398
    %v1468 = vmul.f32 %v1267, %v1402
    %v1469 = vmul.f32 %v1271, %v1402
    %v1470 = vmul.f32 %v1267, %v1406
    %v1471 = vmul.f32 %v1271, %v1406
    %v1472 = vmul.f32 %v1275, %v1282
    %v1473 = vmul.f32 %v1279, %v1282
    %v1474 = vmul.f32 %v1275, %v1286
    %v1475 = vmul.f32 %v1279, %v1286
    %v1476 = vmul.f32 %v1275, %v1290
    %v1477 = vmul.f32 %v1279, %v1290
    %v1478 = vmul.f32 %v1275, %v1294
    %v1479 = vmul.f32 %v1279, %v1294
    %v1480 = vmul.f32 %v1275, %v1298
    %v1481 = vmul.f32 %v1279, %v1298
    %v1482 = vmul.f32 %v1275, %v1302
    %v1483 = vmul.f32 %v1279, %v1302
    %v1484 = vmul.f32 %v1275, %v1306
    %v1485 = vmul.f32 %v1279, %v1306
    %v1486 = vmul.f32 %v1275, %v1310
    %v1487 = vmul.f32 %v1279, %v1310
    %v1488 = vmul.f32 %v1275, %v1314
    %v1489 = vmul.f32 %v1279, %v1314
    %v1490 = vmul.f32 %v1275, %v1318
    %v1491 = vmul.f32 %v1279, %v1318
    %v1492 = vmul.f32 %v1275, %v1322
    %v1493 = vmul.f32 %v1279, %v1322
    %v1494 = vmul.f32 %v1275, %v1326
    %v1495 = vmul.f32 %v1279, %v1326
    %v1496 = vmul.f32 %v1275, %v1330
    %v1497 = vmul.f32 %v1279, %v1330
    %v1498 = vmul.f32 %v1275, %v1334
    %v1499 = vmul.f32 %v1279, %v1334
    %v1500 = vmul.f32 %v1275, %v1338
    %v1501 = vmul.f32 %v1279, %v1338
    %v1502 = vmul.f32 %v1275, %v1342
    %v1503 = vmul.f32 %v1279, %v1342
    %v1504 = vmul.f32 %v1275, %v1346
    %v1505 = vmul.f32 %v1279, %v1346
    %v1506 = vmul.f32 %v1275, %v1350
    %v1507 = vmul.f32 %v1279, %v1350
    %v1508 = vmul.f32 %v1275, %v1354
    %v1509 = vmul.f32 %v1279, %v1354
    %v1510 = vmul.f32 %v1275, %v1358
    %v1511 = vmul.f32 %v1279, %v1358
    %v1512 = vmul.f32 %v1275, %v1362
    %v1513 = vmul.f32 %v1279, %v1362
    %v1514 = vmul.f32 %v1275, %v1366
    %v1515 = vmul.f32 %v1279, %v1366
    %v1516 = vmul.f32 %v1275, %v1370
    %v1517 = vmul.f32 %v1279, %v1370
    %v1518 = vmul.f32 %v1275, %v1374
    %v1519 = vmul.f32 %v1279, %v1374
    %v1520 = vmul.f32 %v1275, %v1378
    %v1521 = vmul.f32 %v1279, %v1378
    %v1522 = vmul.f32 %v1275, %v1382
    %v1523 = vmul.f32 %v1279, %v1382
    %v1524 = vmul.f32 %v1275, %v1386
    %v1525 = vmul.f32 %v1279, %v1386
    %v1526 = vmul.f32 %v1275, %v1390
    %v1527 = vmul.f32 %v1279, %v1390
    %v1528 = vmul.f32 %v1275, %v1394
    %v1529 = vmul.f32 %v1279, %v1394
    %v1530 = vmul.f32 %v1275, %v1398
    %v1531 = vmul.f32 %v1279, %v1398
    %v1532 = vmul.f32 %v1275, %v1402
    %v1533 = vmul.f32 %v1279, %v1402
    %v1534 = vmul.f32 %v1275, %v1406
    %v1535 = vmul.f32 %v1279, %v1406
    %v1536 = vadd.f32 %v1116, %v1408
    %v1537 = vadd.f32 %v1117, %v1409
    %v1538 = vadd.f32 %v1118, %v1410
    %v1539 = vadd.f32 %v1119, %v1411
    %v1540 = vadd.f32 %v1120, %v1412
    %v1541 = vadd.f32 %v1121, %v1413
    %v1542 = vadd.f32 %v1122, %v1414
    %v1543 = vadd.f32 %v1123, %v1415
    %v1544 = vadd.f32 %v1124, %v1416
    %v1545 = vadd.f32 %v1125, %v1417
    %v1546 = vadd.f32 %v1126, %v1418
    %v1547 = vadd.f32 %v1127, %v1419
    %v1548 = vadd.f32 %v1128, %v1420
    %v1549 = vadd.f32 %v1129, %v1421
    %v1550 = vadd.f32 %v1130, %v1422
    %v1551 = vadd.f32 %v1131, %v1423
    %v1552 = vadd.f32 %v1132, %v1424
    %v1553 = vadd.f32 %v1133, %v1425
    %v1554 = vadd.f32 %v1134, %v1426
    %v1555 = vadd.f32 %v1135, %v1427
    %v1556 = vadd.f32 %v1136, %v1428
    %v1557 = vadd.f32 %v1137, %v1429
    %v1558 = vadd.f32 %v1138, %v1430
    %v1559 = vadd.f32 %v1139, %v1431
    %v1560 = vadd.f32 %v1140, %v1432
    %v1561 = vadd.f32 %v1141, %v1433
    %v1562 = vadd.f32 %v1142, %v1434
    %v1563 = vadd.f32 %v1143, %v1435
    %v1564 = vadd.f32 %v1144, %v1436
    %v1565 = vadd.f32 %v1145, %v1437
    %v1566 = vadd.f32 %v1146, %v1438
    %v1567 = vadd.f32 %v1147, %v1439
    %v1568 = vadd.f32 %v1148, %v1440
    %v1569 = vadd.f32 %v1149, %v1441
    %v1570 = vadd.f32 %v1150, %v1442
    %v1571 = vadd.f32 %v1151, %v1443
    %v1572 = vadd.f32 %v1152, %v1444
    %v1573 = vadd.f32 %v1153, %v1445
    %v1574 = vadd.f32 %v1154, %v1446
    %v1575 = vadd.f32 %v1155, %v1447
    %v1576 = vadd.f32 %v1156, %v1448
    %v1577 = vadd.f32 %v1157, %v1449
    %v1578 = vadd.f32 %v1158, %v1450
    %v1579 = vadd.f32 %v1159, %v1451
    %v1580 = vadd.f32 %v1160, %v1452
    %v1581 = vadd.f32 %v1161, %v1453
    %v1582 = vadd.f32 %v1162, %v1454
    %v1583 = vadd.f32 %v1163, %v1455
    %v1584 = vadd.f32 %v1164, %v1456
    %v1585 = vadd.f32 %v1165, %v1457
    %v1586 = vadd.f32 %v1166, %v1458
    %v1587 = vadd.f32 %v1167, %v1459
    %v1588 = vadd.f32 %v1168, %v1460
    %v1589 = vadd.f32 %v1169, %v1461
    %v1590 = vadd.f32 %v1170, %v1462
    %v1591 = vadd.f32 %v1171, %v1463
    %v1592 = vadd.f32 %v1172, %v1464
    %v1593 = vadd.f32 %v1173, %v1465
    %v1594 = vadd.f32 %v1174, %v1466
    %v1595 = vadd.f32 %v1175, %v1467
    %v1596 = vadd.f32 %v1176, %v1468
    %v1597 = vadd.f32 %v1177, %v1469
    %v1598 = vadd.f32 %v1178, %v1470
    %v1599 = vadd.f32 %v1179, %v1471
    %v1600 = vadd.f32 %v1180, %v1472
    %v1601 = vadd.f32 %v1181, %v1473
    %v1602 = vadd.f32 %v1182, %v1474
    %v1603 = vadd.f32 %v1183, %v1475
    %v1604 = vadd.f32 %v1184, %v1476
    %v1605 = vadd.f32 %v1185, %v1477
    %v1606 = vadd.f32 %v1186, %v1478
    %v1607 = vadd.f32 %v1187, %v1479
    %v1608 = vadd.f32 %v1188, %v1480
    %v1609 = vadd.f32 %v1189, %v1481
    %v1610 = vadd.f32 %v1190, %v1482
    %v1611 = vadd.f32 %v1191, %v1483
    %v1612 = vadd.f32 %v1192, %v1484
    %v1613 = vadd.f32 %v1193, %v1485
    %v1614 = vadd.f32 %v1194, %v1486
    %v1615 = vadd.f32 %v1195, %v1487
    %v1616 = vadd.f32 %v1196, %v1488
    %v1617 = vadd.f32 %v1197, %v1489
    %v1618 = vadd.f32 %v1198, %v1490
    %v1619 = vadd.f32 %v1199, %v1491
    %v1620 = vadd.f32 %v1200, %v1492
    %v1621 = vadd.f32 %v1201, %v1493
    %v1622 = vadd.f32 %v1202, %v1494
    %v1623 = vadd.f32 %v1203, %v1495
    %v1624 = vadd.f32 %v1204, %v1496
    %v1625 = vadd.f32 %v1205, %v1497
    %v1626 = vadd.f32 %v1206, %v1498
    %v1627 = vadd.f32 %v1207, %v1499
    %v1628 = vadd.f32 %v1208, %v1500
    %v1629 = vadd.f32 %v1209, %v1501
    %v1630 = vadd.f32 %v1210, %v1502
    %v1631 = vadd.f32 %v1211, %v1503
    %v1632 = vadd.f32 %v1212, %v1504
    %v1633 = vadd.f32 %v1213, %v1505
    %v1634 = vadd.f32 %v1214, %v1506
    %v1635 = vadd.f32 %v1215, %v1507
    %v1636 = vadd.f32 %v1216, %v1508
    %v1637 = vadd.f32 %v1217, %v1509
    %v1638 = vadd.f32 %v1218, %v1510
    %v1639 = vadd.f32 %v1219, %v1511
    %v1640 = vadd.f32 %v1220, %v1512
    %v1641 = vadd.f32 %v1221, %v1513
    %v1642 = vadd.f32 %v1222, %v1514
    %v1643 = vadd.f32 %v1223, %v1515
    %v1644 = vadd.f32 %v1224, %v1516
    %v1645 = vadd.f32 %v1225, %v1517
    %v1646 = vadd.f32 %v1226, %v1518
    %v1647 = vadd.f32 %v1227, %v1519
    %v1648 = vadd.f32 %v1228, %v1520
    %v1649 = vadd.f32 %v1229, %v1521
    %v1650 = vadd.f32 %v1230, %v1522
    %v1651 = vadd.f32 %v1231, %v1523
    %v1652 = vadd.f32 %v1232, %v1524
    %v1653 = vadd.f32 %v1233, %v1525
    %v1654 = vadd.f32 %v1234, %v1526
    %v1655 = vadd.f32 %v1235, %v1527
    %v1656 = vadd.f32 %v1236, %v1528
    %v1657 = vadd.f32 %v1237, %v1529
    %v1658 = vadd.f32 %v1238, %v1530
    %v1659 = vadd.f32 %v1239, %v1531
    %v1660 = vadd.f32 %v1240, %v1532
    %v1661 = vadd.f32 %v1241, %v1533
    %v1662 = vadd.f32 %v1242, %v1534
    %v1663 = vadd.f32 %v1243, %v1535
    %v1664 = vld [vmem:[%s2] sm:$0xff]
    %v1665 = vld [vmem:[%s2 + $0x8] sm:$0xff]
    %v1666 = vld [vmem:[%s2 + $0x10] sm:$0xff]
    %v1667 = vld [vmem:[%s2 + $0x18] sm:$0xff]
    %v1668 = vld [vmem:[%s2 + $0x20] sm:$0xff]
    %v1669 = vld [vmem:[%s2 + $0x28] sm:$0xff]
    %v1670 = vld [vmem:[%s2 + $0x30] sm:$0xff]
    %v1671 = vld [vmem:[%s2 + $0x38] sm:$0xff]
    %v1672 = vld [vmem:[%s2 + $0x40] sm:$0xff]
    %v1673 = vld [vmem:[%s2 + $0x48] sm:$0xff]
    %v1674 = vld [vmem:[%s2 + $0x50] sm:$0xff]
    %v1675 = vld [vmem:[%s2 + $0x58] sm:$0xff]
    %v1676 = vld [vmem:[%s2 + $0x60] sm:$0xff]
    %v1677 = vld [vmem:[%s2 + $0x68] sm:$0xff]
    %v1678 = vld [vmem:[%s2 + $0x70] sm:$0xff]
    %v1679 = vld [vmem:[%s2 + $0x78] sm:$0xff]
    %v1680 = vld [vmem:[%s2 + $0x80] sm:$0xff]
    %v1681 = vld [vmem:[%s2 + $0x88] sm:$0xff]
    %v1682 = vld [vmem:[%s2 + $0x90] sm:$0xff]
    %v1683 = vld [vmem:[%s2 + $0x98] sm:$0xff]
    %v1684 = vld [vmem:[%s2 + $0xa0] sm:$0xff]
    %v1685 = vld [vmem:[%s2 + $0xa8] sm:$0xff]
    %v1686 = vld [vmem:[%s2 + $0xb0] sm:$0xff]
    %v1687 = vld [vmem:[%s2 + $0xb8] sm:$0xff]
    %v1688 = vld [vmem:[%s2 + $0xc0] sm:$0xff]
    %v1689 = vld [vmem:[%s2 + $0xc8] sm:$0xff]
    %v1690 = vld [vmem:[%s2 + $0xd0] sm:$0xff]
    %v1691 = vld [vmem:[%s2 + $0xd8] sm:$0xff]
    %v1692 = vld [vmem:[%s2 + $0xe0] sm:$0xff]
    %v1693 = vld [vmem:[%s2 + $0xe8] sm:$0xff]
    %v1694 = vld [vmem:[%s2 + $0xf0] sm:$0xff]
    %v1695 = vld [vmem:[%s2 + $0xf8] sm:$0xff]
    %1697 = vset.pattern.permute.xlu0 0
    %1698 = vperm.xlu0 %1697, %v1664
    %v1699 = vpop.permute.xlu0 %1698
    %1702 = vset.pattern.permute.xlu0 0
    %1703 = vperm.xlu0 %1702, %v1665
    %v1704 = vpop.permute.xlu0 %1703
    %1707 = vset.pattern.permute.xlu0 0
    %1708 = vperm.xlu0 %1707, %v1666
    %v1709 = vpop.permute.xlu0 %1708
    %1712 = vset.pattern.permute.xlu0 0
    %1713 = vperm.xlu0 %1712, %v1667
    %v1714 = vpop.permute.xlu0 %1713
    %1717 = vset.pattern.permute.xlu0 0
    %1718 = vperm.xlu0 %1717, %v1668
    %v1719 = vpop.permute.xlu0 %1718
    %1722 = vset.pattern.permute.xlu0 0
    %1723 = vperm.xlu0 %1722, %v1669
    %v1724 = vpop.permute.xlu0 %1723
    %1727 = vset.pattern.permute.xlu0 0
    %1728 = vperm.xlu0 %1727, %v1670
    %v1729 = vpop.permute.xlu0 %1728
    %1732 = vset.pattern.permute.xlu0 0
    %1733 = vperm.xlu0 %1732, %v1671
    %v1734 = vpop.permute.xlu0 %1733
    %1737 = vset.pattern.permute.xlu0 0
    %1738 = vperm.xlu0 %1737, %v1672
    %v1739 = vpop.permute.xlu0 %1738
    %1742 = vset.pattern.permute.xlu0 0
    %1743 = vperm.xlu0 %1742, %v1673
    %v1744 = vpop.permute.xlu0 %1743
    %1747 = vset.pattern.permute.xlu0 0
    %1748 = vperm.xlu0 %1747, %v1674
    %v1749 = vpop.permute.xlu0 %1748
    %1752 = vset.pattern.permute.xlu0 0
    %1753 = vperm.xlu0 %1752, %v1675
    %v1754 = vpop.permute.xlu0 %1753
    %1757 = vset.pattern.permute.xlu0 0
    %1758 = vperm.xlu0 %1757, %v1676
    %v1759 = vpop.permute.xlu0 %1758
    %1762 = vset.pattern.permute.xlu0 0
    %1763 = vperm.xlu0 %1762, %v1677
    %v1764 = vpop.permute.xlu0 %1763
    %1767 = vset.pattern.permute.xlu0 0
    %1768 = vperm.xlu0 %1767, %v1678
    %v1769 = vpop.permute.xlu0 %1768
    %1772 = vset.pattern.permute.xlu0 0
    %1773 = vperm.xlu0 %1772, %v1679
    %v1774 = vpop.permute.xlu0 %1773
    %1777 = vset.pattern.permute.xlu0 0
    %1778 = vperm.xlu0 %1777, %v1680
    %v1779 = vpop.permute.xlu0 %1778
    %1782 = vset.pattern.permute.xlu0 0
    %1783 = vperm.xlu0 %1782, %v1681
    %v1784 = vpop.permute.xlu0 %1783
    %1787 = vset.pattern.permute.xlu0 0
    %1788 = vperm.xlu0 %1787, %v1682
    %v1789 = vpop.permute.xlu0 %1788
    %1792 = vset.pattern.permute.xlu0 0
    %1793 = vperm.xlu0 %1792, %v1683
    %v1794 = vpop.permute.xlu0 %1793
    %1797 = vset.pattern.permute.xlu0 0
    %1798 = vperm.xlu0 %1797, %v1684
    %v1799 = vpop.permute.xlu0 %1798
    %1802 = vset.pattern.permute.xlu0 0
    %1803 = vperm.xlu0 %1802, %v1685
    %v1804 = vpop.permute.xlu0 %1803
    %1807 = vset.pattern.permute.xlu0 0
    %1808 = vperm.xlu0 %1807, %v1686
    %v1809 = vpop.permute.xlu0 %1808
    %1812 = vset.pattern.permute.xlu0 0
    %1813 = vperm.xlu0 %1812, %v1687
    %v1814 = vpop.permute.xlu0 %1813
    %1817 = vset.pattern.permute.xlu0 0
    %1818 = vperm.xlu0 %1817, %v1688
    %v1819 = vpop.permute.xlu0 %1818
    %1822 = vset.pattern.permute.xlu0 0
    %1823 = vperm.xlu0 %1822, %v1689
    %v1824 = vpop.permute.xlu0 %1823
    %1827 = vset.pattern.permute.xlu0 0
    %1828 = vperm.xlu0 %1827, %v1690
    %v1829 = vpop.permute.xlu0 %1828
    %1832 = vset.pattern.permute.xlu0 0
    %1833 = vperm.xlu0 %1832, %v1691
    %v1834 = vpop.permute.xlu0 %1833
    %1837 = vset.pattern.permute.xlu0 0
    %1838 = vperm.xlu0 %1837, %v1692
    %v1839 = vpop.permute.xlu0 %1838
    %1842 = vset.pattern.permute.xlu0 0
    %1843 = vperm.xlu0 %1842, %v1693
    %v1844 = vpop.permute.xlu0 %1843
    %1847 = vset.pattern.permute.xlu0 0
    %1848 = vperm.xlu0 %1847, %v1694
    %v1849 = vpop.permute.xlu0 %1848
    %1852 = vset.pattern.permute.xlu0 0
    %1853 = vperm.xlu0 %1852, %v1695
    %v1854 = vpop.permute.xlu0 %1853
    %v1856 = vadd.f32 %v1536, %v1699
    %v1857 = vadd.f32 %v1537, %v1699
    %v1858 = vadd.f32 %v1538, %v1704
    %v1859 = vadd.f32 %v1539, %v1704
    %v1860 = vadd.f32 %v1540, %v1709
    %v1861 = vadd.f32 %v1541, %v1709
    %v1862 = vadd.f32 %v1542, %v1714
    %v1863 = vadd.f32 %v1543, %v1714
    %v1864 = vadd.f32 %v1544, %v1719
    %v1865 = vadd.f32 %v1545, %v1719
    %v1866 = vadd.f32 %v1546, %v1724
    %v1867 = vadd.f32 %v1547, %v1724
    %v1868 = vadd.f32 %v1548, %v1729
    %v1869 = vadd.f32 %v1549, %v1729
    %v1870 = vadd.f32 %v1550, %v1734
    %v1871 = vadd.f32 %v1551, %v1734
    %v1872 = vadd.f32 %v1552, %v1739
    %v1873 = vadd.f32 %v1553, %v1739
    %v1874 = vadd.f32 %v1554, %v1744
    %v1875 = vadd.f32 %v1555, %v1744
    %v1876 = vadd.f32 %v1556, %v1749
    %v1877 = vadd.f32 %v1557, %v1749
    %v1878 = vadd.f32 %v1558, %v1754
    %v1879 = vadd.f32 %v1559, %v1754
    %v1880 = vadd.f32 %v1560, %v1759
    %v1881 = vadd.f32 %v1561, %v1759
    %v1882 = vadd.f32 %v1562, %v1764
    %v1883 = vadd.f32 %v1563, %v1764
    %v1884 = vadd.f32 %v1564, %v1769
    %v1885 = vadd.f32 %v1565, %v1769
    %v1886 = vadd.f32 %v1566, %v1774
    %v1887 = vadd.f32 %v1567, %v1774
    %v1888 = vadd.f32 %v1568, %v1779
    %v1889 = vadd.f32 %v1569, %v1779
    %v1890 = vadd.f32 %v1570, %v1784
    %v1891 = vadd.f32 %v1571, %v1784
    %v1892 = vadd.f32 %v1572, %v1789
    %v1893 = vadd.f32 %v1573, %v1789
    %v1894 = vadd.f32 %v1574, %v1794
    %v1895 = vadd.f32 %v1575, %v1794
    %v1896 = vadd.f32 %v1576, %v1799
    %v1897 = vadd.f32 %v1577, %v1799
    %v1898 = vadd.f32 %v1578, %v1804
    %v1899 = vadd.f32 %v1579, %v1804
    %v1900 = vadd.f32 %v1580, %v1809
    %v1901 = vadd.f32 %v1581, %v1809
    %v1902 = vadd.f32 %v1582, %v1814
    %v1903 = vadd.f32 %v1583, %v1814
    %v1904 = vadd.f32 %v1584, %v1819
    %v1905 = vadd.f32 %v1585, %v1819
    %v1906 = vadd.f32 %v1586, %v1824
    %v1907 = vadd.f32 %v1587, %v1824
    %v1908 = vadd.f32 %v1588, %v1829
    %v1909 = vadd.f32 %v1589, %v1829
    %v1910 = vadd.f32 %v1590, %v1834
    %v1911 = vadd.f32 %v1591, %v1834
    %v1912 = vadd.f32 %v1592, %v1839
    %v1913 = vadd.f32 %v1593, %v1839
    %v1914 = vadd.f32 %v1594, %v1844
    %v1915 = vadd.f32 %v1595, %v1844
    %v1916 = vadd.f32 %v1596, %v1849
    %v1917 = vadd.f32 %v1597, %v1849
    %v1918 = vadd.f32 %v1598, %v1854
    %v1919 = vadd.f32 %v1599, %v1854
    %v1920 = vadd.f32 %v1600, %v1699
    %v1921 = vadd.f32 %v1601, %v1699
    %v1922 = vadd.f32 %v1602, %v1704
    %v1923 = vadd.f32 %v1603, %v1704
    %v1924 = vadd.f32 %v1604, %v1709
    %v1925 = vadd.f32 %v1605, %v1709
    %v1926 = vadd.f32 %v1606, %v1714
    %v1927 = vadd.f32 %v1607, %v1714
    %v1928 = vadd.f32 %v1608, %v1719
    %v1929 = vadd.f32 %v1609, %v1719
    %v1930 = vadd.f32 %v1610, %v1724
    %v1931 = vadd.f32 %v1611, %v1724
    %v1932 = vadd.f32 %v1612, %v1729
    %v1933 = vadd.f32 %v1613, %v1729
    %v1934 = vadd.f32 %v1614, %v1734
    %v1935 = vadd.f32 %v1615, %v1734
    %v1936 = vadd.f32 %v1616, %v1739
    %v1937 = vadd.f32 %v1617, %v1739
    %v1938 = vadd.f32 %v1618, %v1744
    %v1939 = vadd.f32 %v1619, %v1744
    %v1940 = vadd.f32 %v1620, %v1749
    %v1941 = vadd.f32 %v1621, %v1749
    %v1942 = vadd.f32 %v1622, %v1754
    %v1943 = vadd.f32 %v1623, %v1754
    %v1944 = vadd.f32 %v1624, %v1759
    %v1945 = vadd.f32 %v1625, %v1759
    %v1946 = vadd.f32 %v1626, %v1764
    %v1947 = vadd.f32 %v1627, %v1764
    %v1948 = vadd.f32 %v1628, %v1769
    %v1949 = vadd.f32 %v1629, %v1769
    %v1950 = vadd.f32 %v1630, %v1774
    %v1951 = vadd.f32 %v1631, %v1774
    %v1952 = vadd.f32 %v1632, %v1779
    %v1953 = vadd.f32 %v1633, %v1779
    %v1954 = vadd.f32 %v1634, %v1784
    %v1955 = vadd.f32 %v1635, %v1784
    %v1956 = vadd.f32 %v1636, %v1789
    %v1957 = vadd.f32 %v1637, %v1789
    %v1958 = vadd.f32 %v1638, %v1794
    %v1959 = vadd.f32 %v1639, %v1794
    %v1960 = vadd.f32 %v1640, %v1799
    %v1961 = vadd.f32 %v1641, %v1799
    %v1962 = vadd.f32 %v1642, %v1804
    %v1963 = vadd.f32 %v1643, %v1804
    %v1964 = vadd.f32 %v1644, %v1809
    %v1965 = vadd.f32 %v1645, %v1809
    %v1966 = vadd.f32 %v1646, %v1814
    %v1967 = vadd.f32 %v1647, %v1814
    %v1968 = vadd.f32 %v1648, %v1819
    %v1969 = vadd.f32 %v1649, %v1819
    %v1970 = vadd.f32 %v1650, %v1824
    %v1971 = vadd.f32 %v1651, %v1824
    %v1972 = vadd.f32 %v1652, %v1829
    %v1973 = vadd.f32 %v1653, %v1829
    %v1974 = vadd.f32 %v1654, %v1834
    %v1975 = vadd.f32 %v1655, %v1834
    %v1976 = vadd.f32 %v1656, %v1839
    %v1977 = vadd.f32 %v1657, %v1839
    %v1978 = vadd.f32 %v1658, %v1844
    %v1979 = vadd.f32 %v1659, %v1844
    %v1980 = vadd.f32 %v1660, %v1849
    %v1981 = vadd.f32 %v1661, %v1849
    %v1982 = vadd.f32 %v1662, %v1854
    %v1983 = vadd.f32 %v1663, %v1854
    %v1984 = vmax.f32 %v1856, 0.0
    %v1985 = vmax.f32 %v1857, 0.0
    %v1986 = vmax.f32 %v1858, 0.0
    %v1987 = vmax.f32 %v1859, 0.0
    %v1988 = vmax.f32 %v1860, 0.0
    %v1989 = vmax.f32 %v1861, 0.0
    %v1990 = vmax.f32 %v1862, 0.0
    %v1991 = vmax.f32 %v1863, 0.0
    %v1992 = vmax.f32 %v1864, 0.0
    %v1993 = vmax.f32 %v1865, 0.0
    %v1994 = vmax.f32 %v1866, 0.0
    %v1995 = vmax.f32 %v1867, 0.0
    %v1996 = vmax.f32 %v1868, 0.0
    %v1997 = vmax.f32 %v1869, 0.0
    %v1998 = vmax.f32 %v1870, 0.0
    %v1999 = vmax.f32 %v1871, 0.0
    %v2000 = vmax.f32 %v1872, 0.0
    %v2001 = vmax.f32 %v1873, 0.0
    %v2002 = vmax.f32 %v1874, 0.0
    %v2003 = vmax.f32 %v1875, 0.0
    %v2004 = vmax.f32 %v1876, 0.0
    %v2005 = vmax.f32 %v1877, 0.0
    %v2006 = vmax.f32 %v1878, 0.0
    %v2007 = vmax.f32 %v1879, 0.0
    %v2008 = vmax.f32 %v1880, 0.0
    %v2009 = vmax.f32 %v1881, 0.0
    %v2010 = vmax.f32 %v1882, 0.0
    %v2011 = vmax.f32 %v1883, 0.0
    %v2012 = vmax.f32 %v1884, 0.0
    %v2013 = vmax.f32 %v1885, 0.0
    %v2014 = vmax.f32 %v1886, 0.0
    %v2015 = vmax.f32 %v1887, 0.0
    %v2016 = vmax.f32 %v1888, 0.0
    %v2017 = vmax.f32 %v1889, 0.0
    %v2018 = vmax.f32 %v1890, 0.0
    %v2019 = vmax.f32 %v1891, 0.0
    %v2020 = vmax.f32 %v1892, 0.0
    %v2021 = vmax.f32 %v1893, 0.0
    %v2022 = vmax.f32 %v1894, 0.0
    %v2023 = vmax.f32 %v1895, 0.0
    %v2024 = vmax.f32 %v1896, 0.0
    %v2025 = vmax.f32 %v1897, 0.0
    %v2026 = vmax.f32 %v1898, 0.0
    %v2027 = vmax.f32 %v1899, 0.0
    %v2028 = vmax.f32 %v1900, 0.0
    %v2029 = vmax.f32 %v1901, 0.0
    %v2030 = vmax.f32 %v1902, 0.0
    %v2031 = vmax.f32 %v1903, 0.0
    %v2032 = vmax.f32 %v1904, 0.0
    %v2033 = vmax.f32 %v1905, 0.0
    %v2034 = vmax.f32 %v1906, 0.0
    %v2035 = vmax.f32 %v1907, 0.0
    %v2036 = vmax.f32 %v1908, 0.0
    %v2037 = vmax.f32 %v1909, 0.0
    %v2038 = vmax.f32 %v1910, 0.0
    %v2039 = vmax.f32 %v1911, 0.0
    %v2040 = vmax.f32 %v1912, 0.0
    %v2041 = vmax.f32 %v1913, 0.0
    %v2042 = vmax.f32 %v1914, 0.0
    %v2043 = vmax.f32 %v1915, 0.0
    %v2044 = vmax.f32 %v1916, 0.0
    %v2045 = vmax.f32 %v1917, 0.0
    %v2046 = vmax.f32 %v1918, 0.0
    %v2047 = vmax.f32 %v1919, 0.0
    %v2048 = vmax.f32 %v1920, 0.0
    %v2049 = vmax.f32 %v1921, 0.0
    %v2050 = vmax.f32 %v1922, 0.0
    %v2051 = vmax.f32 %v1923, 0.0
    %v2052 = vmax.f32 %v1924, 0.0
    %v2053 = vmax.f32 %v1925, 0.0
    %v2054 = vmax.f32 %v1926, 0.0
    %v2055 = vmax.f32 %v1927, 0.0
    %v2056 = vmax.f32 %v1928, 0.0
    %v2057 = vmax.f32 %v1929, 0.0
    %v2058 = vmax.f32 %v1930, 0.0
    %v2059 = vmax.f32 %v1931, 0.0
    %v2060 = vmax.f32 %v1932, 0.0
    %v2061 = vmax.f32 %v1933, 0.0
    %v2062 = vmax.f32 %v1934, 0.0
    %v2063 = vmax.f32 %v1935, 0.0
    %v2064 = vmax.f32 %v1936, 0.0
    %v2065 = vmax.f32 %v1937, 0.0
    %v2066 = vmax.f32 %v1938, 0.0
    %v2067 = vmax.f32 %v1939, 0.0
    %v2068 = vmax.f32 %v1940, 0.0
    %v2069 = vmax.f32 %v1941, 0.0
    %v2070 = vmax.f32 %v1942, 0.0
    %v2071 = vmax.f32 %v1943, 0.0
    %v2072 = vmax.f32 %v1944, 0.0
    %v2073 = vmax.f32 %v1945, 0.0
    %v2074 = vmax.f32 %v1946, 0.0
    %v2075 = vmax.f32 %v1947, 0.0
    %v2076 = vmax.f32 %v1948, 0.0
    %v2077 = vmax.f32 %v1949, 0.0
    %v2078 = vmax.f32 %v1950, 0.0
    %v2079 = vmax.f32 %v1951, 0.0
    %v2080 = vmax.f32 %v1952, 0.0
    %v2081 = vmax.f32 %v1953, 0.0
    %v2082 = vmax.f32 %v1954, 0.0
    %v2083 = vmax.f32 %v1955, 0.0
    %v2084 = vmax.f32 %v1956, 0.0
    %v2085 = vmax.f32 %v1957, 0.0
    %v2086 = vmax.f32 %v1958, 0.0
    %v2087 = vmax.f32 %v1959, 0.0
    %v2088 = vmax.f32 %v1960, 0.0
    %v2089 = vmax.f32 %v1961, 0.0
    %v2090 = vmax.f32 %v1962, 0.0
    %v2091 = vmax.f32 %v1963, 0.0
    %v2092 = vmax.f32 %v1964, 0.0
    %v2093 = vmax.f32 %v1965, 0.0
    %v2094 = vmax.f32 %v1966, 0.0
    %v2095 = vmax.f32 %v1967, 0.0
    %v2096 = vmax.f32 %v1968, 0.0
    %v2097 = vmax.f32 %v1969, 0.0
    %v2098 = vmax.f32 %v1970, 0.0
    %v2099 = vmax.f32 %v1971, 0.0
    %v2100 = vmax.f32 %v1972, 0.0
    %v2101 = vmax.f32 %v1973, 0.0
    %v2102 = vmax.f32 %v1974, 0.0
    %v2103 = vmax.f32 %v1975, 0.0
    %v2104 = vmax.f32 %v1976, 0.0
    %v2105 = vmax.f32 %v1977, 0.0
    %v2106 = vmax.f32 %v1978, 0.0
    %v2107 = vmax.f32 %v1979, 0.0
    %v2108 = vmax.f32 %v1980, 0.0
    %v2109 = vmax.f32 %v1981, 0.0
    %v2110 = vmax.f32 %v1982, 0.0
    %v2111 = vmax.f32 %v1983, 0.0
    %v2112 = vld [vmem:[#allocation2] sm:$0xf]
    %v2113 = vadd.f32 %v1984, %v1985
    %2114 = vadd.xlane.f32.xlu0 %v2113
    %v2115 = vpop.xlane.xlu0 %2114
    %v2116 = vadd.f32 %v1986, %v1987
    %2117 = vadd.xlane.f32.xlu0 %v2116
    %v2118 = vpop.xlane.xlu0 %2117
    %v2119 = vadd.f32 %v1988, %v1989
    %2120 = vadd.xlane.f32.xlu0 %v2119
    %v2121 = vpop.xlane.xlu0 %2120
    %v2122 = vadd.f32 %v1990, %v1991
    %2123 = vadd.xlane.f32.xlu0 %v2122
    %v2124 = vpop.xlane.xlu0 %2123
    %v2125 = vadd.f32 %v1992, %v1993
    %2126 = vadd.xlane.f32.xlu0 %v2125
    %v2127 = vpop.xlane.xlu0 %2126
    %v2128 = vadd.f32 %v1994, %v1995
    %2129 = vadd.xlane.f32.xlu0 %v2128
    %v2130 = vpop.xlane.xlu0 %2129
    %v2131 = vadd.f32 %v1996, %v1997
    %2132 = vadd.xlane.f32.xlu0 %v2131
    %v2133 = vpop.xlane.xlu0 %2132
    %v2134 = vadd.f32 %v1998, %v1999
    %2135 = vadd.xlane.f32.xlu0 %v2134
    %v2136 = vpop.xlane.xlu0 %2135
    %v2137 = vadd.f32 %v2000, %v2001
    %2138 = vadd.xlane.f32.xlu0 %v2137
    %v2139 = vpop.xlane.xlu0 %2138
    %v2140 = vadd.f32 %v2002, %v2003
    %2141 = vadd.xlane.f32.xlu0 %v2140
    %v2142 = vpop.xlane.xlu0 %2141
    %v2143 = vadd.f32 %v2004, %v2005
    %2144 = vadd.xlane.f32.xlu0 %v2143
    %v2145 = vpop.xlane.xlu0 %2144
    %v2146 = vadd.f32 %v2006, %v2007
    %2147 = vadd.xlane.f32.xlu0 %v2146
    %v2148 = vpop.xlane.xlu0 %2147
    %v2149 = vadd.f32 %v2008, %v2009
    %2150 = vadd.xlane.f32.xlu0 %v2149
    %v2151 = vpop.xlane.xlu0 %2150
    %v2152 = vadd.f32 %v2010, %v2011
    %2153 = vadd.xlane.f32.xlu0 %v2152
    %v2154 = vpop.xlane.xlu0 %2153
    %v2155 = vadd.f32 %v2012, %v2013
    %2156 = vadd.xlane.f32.xlu0 %v2155
    %v2157 = vpop.xlane.xlu0 %2156
    %v2158 = vadd.f32 %v2014, %v2015
    %2159 = vadd.xlane.f32.xlu0 %v2158
    %v2160 = vpop.xlane.xlu0 %2159
    %v2161 = vadd.f32 %v2016, %v2017
    %2162 = vadd.xlane.f32.xlu0 %v2161
    %v2163 = vpop.xlane.xlu0 %2162
    %v2164 = vadd.f32 %v2018, %v2019
    %2165 = vadd.xlane.f32.xlu0 %v2164
    %v2166 = vpop.xlane.xlu0 %2165
    %v2167 = vadd.f32 %v2020, %v2021
    %2168 = vadd.xlane.f32.xlu0 %v2167
    %v2169 = vpop.xlane.xlu0 %2168
    %v2170 = vadd.f32 %v2022, %v2023
    %2171 = vadd.xlane.f32.xlu0 %v2170
    %v2172 = vpop.xlane.xlu0 %2171
    %v2173 = vadd.f32 %v2024, %v2025
    %2174 = vadd.xlane.f32.xlu0 %v2173
    %v2175 = vpop.xlane.xlu0 %2174
    %v2176 = vadd.f32 %v2026, %v2027
    %2177 = vadd.xlane.f32.xlu0 %v2176
    %v2178 = vpop.xlane.xlu0 %2177
    %v2179 = vadd.f32 %v2028, %v2029
    %2180 = vadd.xlane.f32.xlu0 %v2179
    %v2181 = vpop.xlane.xlu0 %2180
    %v2182 = vadd.f32 %v2030, %v2031
    %2183 = vadd.xlane.f32.xlu0 %v2182
    %v2184 = vpop.xlane.xlu0 %2183
    %v2185 = vadd.f32 %v2032, %v2033
    %2186 = vadd.xlane.f32.xlu0 %v2185
    %v2187 = vpop.xlane.xlu0 %2186
    %v2188 = vadd.f32 %v2034, %v2035
    %2189 = vadd.xlane.f32.xlu0 %v2188
    %v2190 = vpop.xlane.xlu0 %2189
    %v2191 = vadd.f32 %v2036, %v2037
    %2192 = vadd.xlane.f32.xlu0 %v2191
    %v2193 = vpop.xlane.xlu0 %2192
    %v2194 = vadd.f32 %v2038, %v2039
    %2195 = vadd.xlane.f32.xlu0 %v2194
    %v2196 = vpop.xlane.xlu0 %2195
    %v2197 = vadd.f32 %v2040, %v2041
    %2198 = vadd.xlane.f32.xlu0 %v2197
    %v2199 = vpop.xlane.xlu0 %2198
    %v2200 = vadd.f32 %v2042, %v2043
    %2201 = vadd.xlane.f32.xlu0 %v2200
    %v2202 = vpop.xlane.xlu0 %2201
    %v2203 = vadd.f32 %v2044, %v2045
    %2204 = vadd.xlane.f32.xlu0 %v2203
    %v2205 = vpop.xlane.xlu0 %2204
    %v2206 = vadd.f32 %v2046, %v2047
    %2207 = vadd.xlane.f32.xlu0 %v2206
    %v2208 = vpop.xlane.xlu0 %2207
    %v2209 = vadd.f32 %v2048, %v2049
    %2210 = vadd.xlane.f32.xlu0 %v2209
    %v2211 = vpop.xlane.xlu0 %2210
    %v2212 = vadd.f32 %v2050, %v2051
    %2213 = vadd.xlane.f32.xlu0 %v2212
    %v2214 = vpop.xlane.xlu0 %2213
    %v2215 = vadd.f32 %v2052, %v2053
    %2216 = vadd.xlane.f32.xlu0 %v2215
    %v2217 = vpop.xlane.xlu0 %2216
    %v2218 = vadd.f32 %v2054, %v2055
    %2219 = vadd.xlane.f32.xlu0 %v2218
    %v2220 = vpop.xlane.xlu0 %2219
    %v2221 = vadd.f32 %v2056, %v2057
    %2222 = vadd.xlane.f32.xlu0 %v2221
    %v2223 = vpop.xlane.xlu0 %2222
    %v2224 = vadd.f32 %v2058, %v2059
    %2225 = vadd.xlane.f32.xlu0 %v2224
    %v2226 = vpop.xlane.xlu0 %2225
    %v2227 = vadd.f32 %v2060, %v2061
    %2228 = vadd.xlane.f32.xlu0 %v2227
    %v2229 = vpop.xlane.xlu0 %2228
    %v2230 = vadd.f32 %v2062, %v2063
    %2231 = vadd.xlane.f32.xlu0 %v2230
    %v2232 = vpop.xlane.xlu0 %2231
    %v2233 = vadd.f32 %v2064, %v2065
    %2234 = vadd.xlane.f32.xlu0 %v2233
    %v2235 = vpop.xlane.xlu0 %2234
    %v2236 = vadd.f32 %v2066, %v2067
    %2237 = vadd.xlane.f32.xlu0 %v2236
    %v2238 = vpop.xlane.xlu0 %2237
    %v2239 = vadd.f32 %v2068, %v2069
    %2240 = vadd.xlane.f32.xlu0 %v2239
    %v2241 = vpop.xlane.xlu0 %2240
    %v2242 = vadd.f32 %v2070, %v2071
    %2243 = vadd.xlane.f32.xlu0 %v2242
    %v2244 = vpop.xlane.xlu0 %2243
    %v2245 = vadd.f32 %v2072, %v2073
    %2246 = vadd.xlane.f32.xlu0 %v2245
    %v2247 = vpop.xlane.xlu0 %2246
    %v2248 = vadd.f32 %v2074, %v2075
    %2249 = vadd.xlane.f32.xlu0 %v2248
    %v2250 = vpop.xlane.xlu0 %2249
    %v2251 = vadd.f32 %v2076, %v2077
    %2252 = vadd.xlane.f32.xlu0 %v2251
    %v2253 = vpop.xlane.xlu0 %2252
    %v2254 = vadd.f32 %v2078, %v2079
    %2255 = vadd.xlane.f32.xlu0 %v2254
    %v2256 = vpop.xlane.xlu0 %2255
    %v2257 = vadd.f32 %v2080, %v2081
    %2258 = vadd.xlane.f32.xlu0 %v2257
    %v2259 = vpop.xlane.xlu0 %2258
    %v2260 = vadd.f32 %v2082, %v2083
    %2261 = vadd.xlane.f32.xlu0 %v2260
    %v2262 = vpop.xlane.xlu0 %2261
    %v2263 = vadd.f32 %v2084, %v2085
    %2264 = vadd.xlane.f32.xlu0 %v2263
    %v2265 = vpop.xlane.xlu0 %2264
    %v2266 = vadd.f32 %v2086, %v2087
    %2267 = vadd.xlane.f32.xlu0 %v2266
    %v2268 = vpop.xlane.xlu0 %2267
    %v2269 = vadd.f32 %v2088, %v2089
    %2270 = vadd.xlane.f32.xlu0 %v2269
    %v2271 = vpop.xlane.xlu0 %2270
    %v2272 = vadd.f32 %v2090, %v2091
    %2273 = vadd.xlane.f32.xlu0 %v2272
    %v2274 = vpop.xlane.xlu0 %2273
    %v2275 = vadd.f32 %v2092, %v2093
    %2276 = vadd.xlane.f32.xlu0 %v2275
    %v2277 = vpop.xlane.xlu0 %2276
    %v2278 = vadd.f32 %v2094, %v2095
    %2279 = vadd.xlane.f32.xlu0 %v2278
    %v2280 = vpop.xlane.xlu0 %2279
    %v2281 = vadd.f32 %v2096, %v2097
    %2282 = vadd.xlane.f32.xlu0 %v2281
    %v2283 = vpop.xlane.xlu0 %2282
    %v2284 = vadd.f32 %v2098, %v2099
    %2285 = vadd.xlane.f32.xlu0 %v2284
    %v2286 = vpop.xlane.xlu0 %2285
    %v2287 = vadd.f32 %v2100, %v2101
    %2288 = vadd.xlane.f32.xlu0 %v2287
    %v2289 = vpop.xlane.xlu0 %2288
    %v2290 = vadd.f32 %v2102, %v2103
    %2291 = vadd.xlane.f32.xlu0 %v2290
    %v2292 = vpop.xlane.xlu0 %2291
    %v2293 = vadd.f32 %v2104, %v2105
    %2294 = vadd.xlane.f32.xlu0 %v2293
    %v2295 = vpop.xlane.xlu0 %2294
    %v2296 = vadd.f32 %v2106, %v2107
    %2297 = vadd.xlane.f32.xlu0 %v2296
    %v2298 = vpop.xlane.xlu0 %2297
    %v2299 = vadd.f32 %v2108, %v2109
    %2300 = vadd.xlane.f32.xlu0 %v2299
    %v2301 = vpop.xlane.xlu0 %2300
    %v2302 = vadd.f32 %v2110, %v2111
    %2303 = vadd.xlane.f32.xlu0 %v2302
    %v2304 = vpop.xlane.xlu0 %2303
    %v2370 = vunpack.c.l.s4 269488144
    %v2371 = vunpack.c.0.s8 %v2370
    %v2372 = vlaneseq
    %v2373 = vshrl.u32 %v2372, 7
    %v2374 = vsub.s32 %v2371, %v2373
    %v2375 = vrot.slane %v2115, %v2374
    %v2377 = vunpack.c.l.s4 842150450
    %v2378 = vunpack.c.0.s8 %v2377
    %v2379 = vlaneseq
    %v2380 = vshrl.u32 %v2379, 7
    %v2381 = vsub.s32 %v2378, %v2380
    %v2382 = vrot.slane %v2115, %v2381
    %v2384 = vunpack.c.l.s4 1414812756
    %v2385 = vunpack.c.0.s8 %v2384
    %v2386 = vlaneseq
    %v2387 = vshrl.u32 %v2386, 7
    %v2388 = vsub.s32 %v2385, %v2387
    %v2389 = vrot.slane %v2115, %v2388
    %v2391 = vunpack.c.l.s4 1987475062
    %v2392 = vunpack.c.0.s8 %v2391
    %v2393 = vlaneseq
    %v2394 = vshrl.u32 %v2393, 7
    %v2395 = vsub.s32 %v2392, %v2394
    %v2396 = vrot.slane %v2115, %v2395
    %v2398 = vunpack.c.l.s4 269488144
    %v2399 = vunpack.c.0.s8 %v2398
    %v2400 = vlaneseq
    %v2401 = vshrl.u32 %v2400, 7
    %v2402 = vsub.s32 %v2399, %v2401
    %v2403 = vrot.slane %v2118, %v2402
    %v2405 = vunpack.c.l.s4 842150450
    %v2406 = vunpack.c.0.s8 %v2405
    %v2407 = vlaneseq
    %v2408 = vshrl.u32 %v2407, 7
    %v2409 = vsub.s32 %v2406, %v2408
    %v2410 = vrot.slane %v2118, %v2409
    %v2412 = vunpack.c.l.s4 1414812756
    %v2413 = vunpack.c.0.s8 %v2412
    %v2414 = vlaneseq
    %v2415 = vshrl.u32 %v2414, 7
    %v2416 = vsub.s32 %v2413, %v2415
    %v2417 = vrot.slane %v2118, %v2416
    %v2419 = vunpack.c.l.s4 1987475062
    %v2420 = vunpack.c.0.s8 %v2419
    %v2421 = vlaneseq
    %v2422 = vshrl.u32 %v2421, 7
    %v2423 = vsub.s32 %v2420, %v2422
    %v2424 = vrot.slane %v2118, %v2423
    %v2426 = vunpack.c.l.s4 269488144
    %v2427 = vunpack.c.0.s8 %v2426
    %v2428 = vlaneseq
    %v2429 = vshrl.u32 %v2428, 7
    %v2430 = vsub.s32 %v2427, %v2429
    %v2431 = vrot.slane %v2121, %v2430
    %v2433 = vunpack.c.l.s4 842150450
    %v2434 = vunpack.c.0.s8 %v2433
    %v2435 = vlaneseq
    %v2436 = vshrl.u32 %v2435, 7
    %v2437 = vsub.s32 %v2434, %v2436
    %v2438 = vrot.slane %v2121, %v2437
    %v2440 = vunpack.c.l.s4 1414812756
    %v2441 = vunpack.c.0.s8 %v2440
    %v2442 = vlaneseq
    %v2443 = vshrl.u32 %v2442, 7
    %v2444 = vsub.s32 %v2441, %v2443
    %v2445 = vrot.slane %v2121, %v2444
    %v2447 = vunpack.c.l.s4 1987475062
    %v2448 = vunpack.c.0.s8 %v2447
    %v2449 = vlaneseq
    %v2450 = vshrl.u32 %v2449, 7
    %v2451 = vsub.s32 %v2448, %v2450
    %v2452 = vrot.slane %v2121, %v2451
    %v2454 = vunpack.c.l.s4 269488144
    %v2455 = vunpack.c.0.s8 %v2454
    %v2456 = vlaneseq
    %v2457 = vshrl.u32 %v2456, 7
    %v2458 = vsub.s32 %v2455, %v2457
    %v2459 = vrot.slane %v2124, %v2458
    %v2461 = vunpack.c.l.s4 842150450
    %v2462 = vunpack.c.0.s8 %v2461
    %v2463 = vlaneseq
    %v2464 = vshrl.u32 %v2463, 7
    %v2465 = vsub.s32 %v2462, %v2464
    %v2466 = vrot.slane %v2124, %v2465
    %v2468 = vunpack.c.l.s4 1414812756
    %v2469 = vunpack.c.0.s8 %v2468
    %v2470 = vlaneseq
    %v2471 = vshrl.u32 %v2470, 7
    %v2472 = vsub.s32 %v2469, %v2471
    %v2473 = vrot.slane %v2124, %v2472
    %v2475 = vunpack.c.l.s4 1987475062
    %v2476 = vunpack.c.0.s8 %v2475
    %v2477 = vlaneseq
    %v2478 = vshrl.u32 %v2477, 7
    %v2479 = vsub.s32 %v2476, %v2478
    %v2480 = vrot.slane %v2124, %v2479
    %v2482 = vunpack.c.l.s4 269488144
    %v2483 = vunpack.c.0.s8 %v2482
    %v2484 = vlaneseq
    %v2485 = vshrl.u32 %v2484, 7
    %v2486 = vsub.s32 %v2483, %v2485
    %v2487 = vrot.slane %v2127, %v2486
    %v2489 = vunpack.c.l.s4 842150450
    %v2490 = vunpack.c.0.s8 %v2489
    %v2491 = vlaneseq
    %v2492 = vshrl.u32 %v2491, 7
    %v2493 = vsub.s32 %v2490, %v2492
    %v2494 = vrot.slane %v2127, %v2493
    %v2496 = vunpack.c.l.s4 1414812756
    %v2497 = vunpack.c.0.s8 %v2496
    %v2498 = vlaneseq
    %v2499 = vshrl.u32 %v2498, 7
    %v2500 = vsub.s32 %v2497, %v2499
    %v2501 = vrot.slane %v2127, %v2500
    %v2503 = vunpack.c.l.s4 1987475062
    %v2504 = vunpack.c.0.s8 %v2503
    %v2505 = vlaneseq
    %v2506 = vshrl.u32 %v2505, 7
    %v2507 = vsub.s32 %v2504, %v2506
    %v2508 = vrot.slane %v2127, %v2507
    %v2510 = vunpack.c.l.s4 269488144
    %v2511 = vunpack.c.0.s8 %v2510
    %v2512 = vlaneseq
    %v2513 = vshrl.u32 %v2512, 7
    %v2514 = vsub.s32 %v2511, %v2513
    %v2515 = vrot.slane %v2130, %v2514
    %v2517 = vunpack.c.l.s4 842150450
    %v2518 = vunpack.c.0.s8 %v2517
    %v2519 = vlaneseq
    %v2520 = vshrl.u32 %v2519, 7
    %v2521 = vsub.s32 %v2518, %v2520
    %v2522 = vrot.slane %v2130, %v2521
    %v2524 = vunpack.c.l.s4 1414812756
    %v2525 = vunpack.c.0.s8 %v2524
    %v2526 = vlaneseq
    %v2527 = vshrl.u32 %v2526, 7
    %v2528 = vsub.s32 %v2525, %v2527
    %v2529 = vrot.slane %v2130, %v2528
    %v2531 = vunpack.c.l.s4 1987475062
    %v2532 = vunpack.c.0.s8 %v2531
    %v2533 = vlaneseq
    %v2534 = vshrl.u32 %v2533, 7
    %v2535 = vsub.s32 %v2532, %v2534
    %v2536 = vrot.slane %v2130, %v2535
    %v2538 = vunpack.c.l.s4 269488144
    %v2539 = vunpack.c.0.s8 %v2538
    %v2540 = vlaneseq
    %v2541 = vshrl.u32 %v2540, 7
    %v2542 = vsub.s32 %v2539, %v2541
    %v2543 = vrot.slane %v2133, %v2542
    %v2545 = vunpack.c.l.s4 842150450
    %v2546 = vunpack.c.0.s8 %v2545
    %v2547 = vlaneseq
    %v2548 = vshrl.u32 %v2547, 7
    %v2549 = vsub.s32 %v2546, %v2548
    %v2550 = vrot.slane %v2133, %v2549
    %v2552 = vunpack.c.l.s4 1414812756
    %v2553 = vunpack.c.0.s8 %v2552
    %v2554 = vlaneseq
    %v2555 = vshrl.u32 %v2554, 7
    %v2556 = vsub.s32 %v2553, %v2555
    %v2557 = vrot.slane %v2133, %v2556
    %v2559 = vunpack.c.l.s4 1987475062
    %v2560 = vunpack.c.0.s8 %v2559
    %v2561 = vlaneseq
    %v2562 = vshrl.u32 %v2561, 7
    %v2563 = vsub.s32 %v2560, %v2562
    %v2564 = vrot.slane %v2133, %v2563
    %v2566 = vunpack.c.l.s4 269488144
    %v2567 = vunpack.c.0.s8 %v2566
    %v2568 = vlaneseq
    %v2569 = vshrl.u32 %v2568, 7
    %v2570 = vsub.s32 %v2567, %v2569
    %v2571 = vrot.slane %v2136, %v2570
    %v2573 = vunpack.c.l.s4 842150450
    %v2574 = vunpack.c.0.s8 %v2573
    %v2575 = vlaneseq
    %v2576 = vshrl.u32 %v2575, 7
    %v2577 = vsub.s32 %v2574, %v2576
    %v2578 = vrot.slane %v2136, %v2577
    %v2580 = vunpack.c.l.s4 1414812756
    %v2581 = vunpack.c.0.s8 %v2580
    %v2582 = vlaneseq
    %v2583 = vshrl.u32 %v2582, 7
    %v2584 = vsub.s32 %v2581, %v2583
    %v2585 = vrot.slane %v2136, %v2584
    %v2587 = vunpack.c.l.s4 1987475062
    %v2588 = vunpack.c.0.s8 %v2587
    %v2589 = vlaneseq
    %v2590 = vshrl.u32 %v2589, 7
    %v2591 = vsub.s32 %v2588, %v2590
    %v2592 = vrot.slane %v2136, %v2591
    %v2594 = vunpack.c.l.s4 269488144
    %v2595 = vunpack.c.0.s8 %v2594
    %v2596 = vlaneseq
    %v2597 = vshrl.u32 %v2596, 7
    %v2598 = vsub.s32 %v2595, %v2597
    %v2599 = vrot.slane %v2139, %v2598
    %v2601 = vunpack.c.l.s4 842150450
    %v2602 = vunpack.c.0.s8 %v2601
    %v2603 = vlaneseq
    %v2604 = vshrl.u32 %v2603, 7
    %v2605 = vsub.s32 %v2602, %v2604
    %v2606 = vrot.slane %v2139, %v2605
    %v2608 = vunpack.c.l.s4 1414812756
    %v2609 = vunpack.c.0.s8 %v2608
    %v2610 = vlaneseq
    %v2611 = vshrl.u32 %v2610, 7
    %v2612 = vsub.s32 %v2609, %v2611
    %v2613 = vrot.slane %v2139, %v2612
    %v2615 = vunpack.c.l.s4 1987475062
    %v2616 = vunpack.c.0.s8 %v2615
    %v2617 = vlaneseq
    %v2618 = vshrl.u32 %v2617, 7
    %v2619 = vsub.s32 %v2616, %v2618
    %v2620 = vrot.slane %v2139, %v2619
    %v2622 = vunpack.c.l.s4 269488144
    %v2623 = vunpack.c.0.s8 %v2622
    %v2624 = vlaneseq
    %v2625 = vshrl.u32 %v2624, 7
    %v2626 = vsub.s32 %v2623, %v2625
    %v2627 = vrot.slane %v2142, %v2626
    %v2629 = vunpack.c.l.s4 842150450
    %v2630 = vunpack.c.0.s8 %v2629
    %v2631 = vlaneseq
    %v2632 = vshrl.u32 %v2631, 7
    %v2633 = vsub.s32 %v2630, %v2632
    %v2634 = vrot.slane %v2142, %v2633
    %v2636 = vunpack.c.l.s4 1414812756
    %v2637 = vunpack.c.0.s8 %v2636
    %v2638 = vlaneseq
    %v2639 = vshrl.u32 %v2638, 7
    %v2640 = vsub.s32 %v2637, %v2639
    %v2641 = vrot.slane %v2142, %v2640
    %v2643 = vunpack.c.l.s4 1987475062
    %v2644 = vunpack.c.0.s8 %v2643
    %v2645 = vlaneseq
    %v2646 = vshrl.u32 %v2645, 7
    %v2647 = vsub.s32 %v2644, %v2646
    %v2648 = vrot.slane %v2142, %v2647
    %v2650 = vunpack.c.l.s4 269488144
    %v2651 = vunpack.c.0.s8 %v2650
    %v2652 = vlaneseq
    %v2653 = vshrl.u32 %v2652, 7
    %v2654 = vsub.s32 %v2651, %v2653
    %v2655 = vrot.slane %v2145, %v2654
    %v2657 = vunpack.c.l.s4 842150450
    %v2658 = vunpack.c.0.s8 %v2657
    %v2659 = vlaneseq
    %v2660 = vshrl.u32 %v2659, 7
    %v2661 = vsub.s32 %v2658, %v2660
    %v2662 = vrot.slane %v2145, %v2661
    %v2664 = vunpack.c.l.s4 1414812756
    %v2665 = vunpack.c.0.s8 %v2664
    %v2666 = vlaneseq
    %v2667 = vshrl.u32 %v2666, 7
    %v2668 = vsub.s32 %v2665, %v2667
    %v2669 = vrot.slane %v2145, %v2668
    %v2671 = vunpack.c.l.s4 1987475062
    %v2672 = vunpack.c.0.s8 %v2671
    %v2673 = vlaneseq
    %v2674 = vshrl.u32 %v2673, 7
    %v2675 = vsub.s32 %v2672, %v2674
    %v2676 = vrot.slane %v2145, %v2675
    %v2678 = vunpack.c.l.s4 269488144
    %v2679 = vunpack.c.0.s8 %v2678
    %v2680 = vlaneseq
    %v2681 = vshrl.u32 %v2680, 7
    %v2682 = vsub.s32 %v2679, %v2681
    %v2683 = vrot.slane %v2148, %v2682
    %v2685 = vunpack.c.l.s4 842150450
    %v2686 = vunpack.c.0.s8 %v2685
    %v2687 = vlaneseq
    %v2688 = vshrl.u32 %v2687, 7
    %v2689 = vsub.s32 %v2686, %v2688
    %v2690 = vrot.slane %v2148, %v2689
    %v2692 = vunpack.c.l.s4 1414812756
    %v2693 = vunpack.c.0.s8 %v2692
    %v2694 = vlaneseq
    %v2695 = vshrl.u32 %v2694, 7
    %v2696 = vsub.s32 %v2693, %v2695
    %v2697 = vrot.slane %v2148, %v2696
    %v2699 = vunpack.c.l.s4 1987475062
    %v2700 = vunpack.c.0.s8 %v2699
    %v2701 = vlaneseq
    %v2702 = vshrl.u32 %v2701, 7
    %v2703 = vsub.s32 %v2700, %v2702
    %v2704 = vrot.slane %v2148, %v2703
    %v2706 = vunpack.c.l.s4 269488144
    %v2707 = vunpack.c.0.s8 %v2706
    %v2708 = vlaneseq
    %v2709 = vshrl.u32 %v2708, 7
    %v2710 = vsub.s32 %v2707, %v2709
    %v2711 = vrot.slane %v2151, %v2710
    %v2713 = vunpack.c.l.s4 842150450
    %v2714 = vunpack.c.0.s8 %v2713
    %v2715 = vlaneseq
    %v2716 = vshrl.u32 %v2715, 7
    %v2717 = vsub.s32 %v2714, %v2716
    %v2718 = vrot.slane %v2151, %v2717
    %v2720 = vunpack.c.l.s4 1414812756
    %v2721 = vunpack.c.0.s8 %v2720
    %v2722 = vlaneseq
    %v2723 = vshrl.u32 %v2722, 7
    %v2724 = vsub.s32 %v2721, %v2723
    %v2725 = vrot.slane %v2151, %v2724
    %v2727 = vunpack.c.l.s4 1987475062
    %v2728 = vunpack.c.0.s8 %v2727
    %v2729 = vlaneseq
    %v2730 = vshrl.u32 %v2729, 7
    %v2731 = vsub.s32 %v2728, %v2730
    %v2732 = vrot.slane %v2151, %v2731
    %v2734 = vunpack.c.l.s4 269488144
    %v2735 = vunpack.c.0.s8 %v2734
    %v2736 = vlaneseq
    %v2737 = vshrl.u32 %v2736, 7
    %v2738 = vsub.s32 %v2735, %v2737
    %v2739 = vrot.slane %v2154, %v2738
    %v2741 = vunpack.c.l.s4 842150450
    %v2742 = vunpack.c.0.s8 %v2741
    %v2743 = vlaneseq
    %v2744 = vshrl.u32 %v2743, 7
    %v2745 = vsub.s32 %v2742, %v2744
    %v2746 = vrot.slane %v2154, %v2745
    %v2748 = vunpack.c.l.s4 1414812756
    %v2749 = vunpack.c.0.s8 %v2748
    %v2750 = vlaneseq
    %v2751 = vshrl.u32 %v2750, 7
    %v2752 = vsub.s32 %v2749, %v2751
    %v2753 = vrot.slane %v2154, %v2752
    %v2755 = vunpack.c.l.s4 1987475062
    %v2756 = vunpack.c.0.s8 %v2755
    %v2757 = vlaneseq
    %v2758 = vshrl.u32 %v2757, 7
    %v2759 = vsub.s32 %v2756, %v2758
    %v2760 = vrot.slane %v2154, %v2759
    %v2762 = vunpack.c.l.s4 269488144
    %v2763 = vunpack.c.0.s8 %v2762
    %v2764 = vlaneseq
    %v2765 = vshrl.u32 %v2764, 7
    %v2766 = vsub.s32 %v2763, %v2765
    %v2767 = vrot.slane %v2157, %v2766
    %v2769 = vunpack.c.l.s4 842150450
    %v2770 = vunpack.c.0.s8 %v2769
    %v2771 = vlaneseq
    %v2772 = vshrl.u32 %v2771, 7
    %v2773 = vsub.s32 %v2770, %v2772
    %v2774 = vrot.slane %v2157, %v2773
    %v2776 = vunpack.c.l.s4 1414812756
    %v2777 = vunpack.c.0.s8 %v2776
    %v2778 = vlaneseq
    %v2779 = vshrl.u32 %v2778, 7
    %v2780 = vsub.s32 %v2777, %v2779
    %v2781 = vrot.slane %v2157, %v2780
    %v2783 = vunpack.c.l.s4 1987475062
    %v2784 = vunpack.c.0.s8 %v2783
    %v2785 = vlaneseq
    %v2786 = vshrl.u32 %v2785, 7
    %v2787 = vsub.s32 %v2784, %v2786
    %v2788 = vrot.slane %v2157, %v2787
    %v2790 = vunpack.c.l.s4 269488144
    %v2791 = vunpack.c.0.s8 %v2790
    %v2792 = vlaneseq
    %v2793 = vshrl.u32 %v2792, 7
    %v2794 = vsub.s32 %v2791, %v2793
    %v2795 = vrot.slane %v2160, %v2794
    %v2797 = vunpack.c.l.s4 842150450
    %v2798 = vunpack.c.0.s8 %v2797
    %v2799 = vlaneseq
    %v2800 = vshrl.u32 %v2799, 7
    %v2801 = vsub.s32 %v2798, %v2800
    %v2802 = vrot.slane %v2160, %v2801
    %v2804 = vunpack.c.l.s4 1414812756
    %v2805 = vunpack.c.0.s8 %v2804
    %v2806 = vlaneseq
    %v2807 = vshrl.u32 %v2806, 7
    %v2808 = vsub.s32 %v2805, %v2807
    %v2809 = vrot.slane %v2160, %v2808
    %v2811 = vunpack.c.l.s4 1987475062
    %v2812 = vunpack.c.0.s8 %v2811
    %v2813 = vlaneseq
    %v2814 = vshrl.u32 %v2813, 7
    %v2815 = vsub.s32 %v2812, %v2814
    %v2816 = vrot.slane %v2160, %v2815
    %v2818 = vunpack.c.l.s4 269488144
    %v2819 = vunpack.c.0.s8 %v2818
    %v2820 = vlaneseq
    %v2821 = vshrl.u32 %v2820, 7
    %v2822 = vsub.s32 %v2819, %v2821
    %v2823 = vrot.slane %v2163, %v2822
    %v2825 = vunpack.c.l.s4 842150450
    %v2826 = vunpack.c.0.s8 %v2825
    %v2827 = vlaneseq
    %v2828 = vshrl.u32 %v2827, 7
    %v2829 = vsub.s32 %v2826, %v2828
    %v2830 = vrot.slane %v2163, %v2829
    %v2832 = vunpack.c.l.s4 1414812756
    %v2833 = vunpack.c.0.s8 %v2832
    %v2834 = vlaneseq
    %v2835 = vshrl.u32 %v2834, 7
    %v2836 = vsub.s32 %v2833, %v2835
    %v2837 = vrot.slane %v2163, %v2836
    %v2839 = vunpack.c.l.s4 1987475062
    %v2840 = vunpack.c.0.s8 %v2839
    %v2841 = vlaneseq
    %v2842 = vshrl.u32 %v2841, 7
    %v2843 = vsub.s32 %v2840, %v2842
    %v2844 = vrot.slane %v2163, %v2843
    %v2846 = vunpack.c.l.s4 269488144
    %v2847 = vunpack.c.0.s8 %v2846
    %v2848 = vlaneseq
    %v2849 = vshrl.u32 %v2848, 7
    %v2850 = vsub.s32 %v2847, %v2849
    %v2851 = vrot.slane %v2166, %v2850
    %v2853 = vunpack.c.l.s4 842150450
    %v2854 = vunpack.c.0.s8 %v2853
    %v2855 = vlaneseq
    %v2856 = vshrl.u32 %v2855, 7
    %v2857 = vsub.s32 %v2854, %v2856
    %v2858 = vrot.slane %v2166, %v2857
    %v2860 = vunpack.c.l.s4 1414812756
    %v2861 = vunpack.c.0.s8 %v2860
    %v2862 = vlaneseq
    %v2863 = vshrl.u32 %v2862, 7
    %v2864 = vsub.s32 %v2861, %v2863
    %v2865 = vrot.slane %v2166, %v2864
    %v2867 = vunpack.c.l.s4 1987475062
    %v2868 = vunpack.c.0.s8 %v2867
    %v2869 = vlaneseq
    %v2870 = vshrl.u32 %v2869, 7
    %v2871 = vsub.s32 %v2868, %v2870
    %v2872 = vrot.slane %v2166, %v2871
    %v2874 = vunpack.c.l.s4 269488144
    %v2875 = vunpack.c.0.s8 %v2874
    %v2876 = vlaneseq
    %v2877 = vshrl.u32 %v2876, 7
    %v2878 = vsub.s32 %v2875, %v2877
    %v2879 = vrot.slane %v2169, %v2878
    %v2881 = vunpack.c.l.s4 842150450
    %v2882 = vunpack.c.0.s8 %v2881
    %v2883 = vlaneseq
    %v2884 = vshrl.u32 %v2883, 7
    %v2885 = vsub.s32 %v2882, %v2884
    %v2886 = vrot.slane %v2169, %v2885
    %v2888 = vunpack.c.l.s4 1414812756
    %v2889 = vunpack.c.0.s8 %v2888
    %v2890 = vlaneseq
    %v2891 = vshrl.u32 %v2890, 7
    %v2892 = vsub.s32 %v2889, %v2891
    %v2893 = vrot.slane %v2169, %v2892
    %v2895 = vunpack.c.l.s4 1987475062
    %v2896 = vunpack.c.0.s8 %v2895
    %v2897 = vlaneseq
    %v2898 = vshrl.u32 %v2897, 7
    %v2899 = vsub.s32 %v2896, %v2898
    %v2900 = vrot.slane %v2169, %v2899
    %v2902 = vunpack.c.l.s4 269488144
    %v2903 = vunpack.c.0.s8 %v2902
    %v2904 = vlaneseq
    %v2905 = vshrl.u32 %v2904, 7
    %v2906 = vsub.s32 %v2903, %v2905
    %v2907 = vrot.slane %v2172, %v2906
    %v2909 = vunpack.c.l.s4 842150450
    %v2910 = vunpack.c.0.s8 %v2909
    %v2911 = vlaneseq
    %v2912 = vshrl.u32 %v2911, 7
    %v2913 = vsub.s32 %v2910, %v2912
    %v2914 = vrot.slane %v2172, %v2913
    %v2916 = vunpack.c.l.s4 1414812756
    %v2917 = vunpack.c.0.s8 %v2916
    %v2918 = vlaneseq
    %v2919 = vshrl.u32 %v2918, 7
    %v2920 = vsub.s32 %v2917, %v2919
    %v2921 = vrot.slane %v2172, %v2920
    %v2923 = vunpack.c.l.s4 1987475062
    %v2924 = vunpack.c.0.s8 %v2923
    %v2925 = vlaneseq
    %v2926 = vshrl.u32 %v2925, 7
    %v2927 = vsub.s32 %v2924, %v2926
    %v2928 = vrot.slane %v2172, %v2927
    %v2930 = vunpack.c.l.s4 269488144
    %v2931 = vunpack.c.0.s8 %v2930
    %v2932 = vlaneseq
    %v2933 = vshrl.u32 %v2932, 7
    %v2934 = vsub.s32 %v2931, %v2933
    %v2935 = vrot.slane %v2175, %v2934
    %v2937 = vunpack.c.l.s4 842150450
    %v2938 = vunpack.c.0.s8 %v2937
    %v2939 = vlaneseq
    %v2940 = vshrl.u32 %v2939, 7
    %v2941 = vsub.s32 %v2938, %v2940
    %v2942 = vrot.slane %v2175, %v2941
    %v2944 = vunpack.c.l.s4 1414812756
    %v2945 = vunpack.c.0.s8 %v2944
    %v2946 = vlaneseq
    %v2947 = vshrl.u32 %v2946, 7
    %v2948 = vsub.s32 %v2945, %v2947
    %v2949 = vrot.slane %v2175, %v2948
    %v2951 = vunpack.c.l.s4 1987475062
    %v2952 = vunpack.c.0.s8 %v2951
    %v2953 = vlaneseq
    %v2954 = vshrl.u32 %v2953, 7
    %v2955 = vsub.s32 %v2952, %v2954
    %v2956 = vrot.slane %v2175, %v2955
    %v2958 = vunpack.c.l.s4 269488144
    %v2959 = vunpack.c.0.s8 %v2958
    %v2960 = vlaneseq
    %v2961 = vshrl.u32 %v2960, 7
    %v2962 = vsub.s32 %v2959, %v2961
    %v2963 = vrot.slane %v2178, %v2962
    %v2965 = vunpack.c.l.s4 842150450
    %v2966 = vunpack.c.0.s8 %v2965
    %v2967 = vlaneseq
    %v2968 = vshrl.u32 %v2967, 7
    %v2969 = vsub.s32 %v2966, %v2968
    %v2970 = vrot.slane %v2178, %v2969
    %v2972 = vunpack.c.l.s4 1414812756
    %v2973 = vunpack.c.0.s8 %v2972
    %v2974 = vlaneseq
    %v2975 = vshrl.u32 %v2974, 7
    %v2976 = vsub.s32 %v2973, %v2975
    %v2977 = vrot.slane %v2178, %v2976
    %v2979 = vunpack.c.l.s4 1987475062
    %v2980 = vunpack.c.0.s8 %v2979
    %v2981 = vlaneseq
    %v2982 = vshrl.u32 %v2981, 7
    %v2983 = vsub.s32 %v2980, %v2982
    %v2984 = vrot.slane %v2178, %v2983
    %v2986 = vunpack.c.l.s4 269488144
    %v2987 = vunpack.c.0.s8 %v2986
    %v2988 = vlaneseq
    %v2989 = vshrl.u32 %v2988, 7
    %v2990 = vsub.s32 %v2987, %v2989
    %v2991 = vrot.slane %v2181, %v2990
    %v2993 = vunpack.c.l.s4 842150450
    %v2994 = vunpack.c.0.s8 %v2993
    %v2995 = vlaneseq
    %v2996 = vshrl.u32 %v2995, 7
    %v2997 = vsub.s32 %v2994, %v2996
    %v2998 = vrot.slane %v2181, %v2997
    %v3000 = vunpack.c.l.s4 1414812756
    %v3001 = vunpack.c.0.s8 %v3000
    %v3002 = vlaneseq
    %v3003 = vshrl.u32 %v3002, 7
    %v3004 = vsub.s32 %v3001, %v3003
    %v3005 = vrot.slane %v2181, %v3004
    %v3007 = vunpack.c.l.s4 1987475062
    %v3008 = vunpack.c.0.s8 %v3007
    %v3009 = vlaneseq
    %v3010 = vshrl.u32 %v3009, 7
    %v3011 = vsub.s32 %v3008, %v3010
    %v3012 = vrot.slane %v2181, %v3011
    %v3014 = vunpack.c.l.s4 269488144
    %v3015 = vunpack.c.0.s8 %v3014
    %v3016 = vlaneseq
    %v3017 = vshrl.u32 %v3016, 7
    %v3018 = vsub.s32 %v3015, %v3017
    %v3019 = vrot.slane %v2184, %v3018
    %v3021 = vunpack.c.l.s4 842150450
    %v3022 = vunpack.c.0.s8 %v3021
    %v3023 = vlaneseq
    %v3024 = vshrl.u32 %v3023, 7
    %v3025 = vsub.s32 %v3022, %v3024
    %v3026 = vrot.slane %v2184, %v3025
    %v3028 = vunpack.c.l.s4 1414812756
    %v3029 = vunpack.c.0.s8 %v3028
    %v3030 = vlaneseq
    %v3031 = vshrl.u32 %v3030, 7
    %v3032 = vsub.s32 %v3029, %v3031
    %v3033 = vrot.slane %v2184, %v3032
    %v3035 = vunpack.c.l.s4 1987475062
    %v3036 = vunpack.c.0.s8 %v3035
    %v3037 = vlaneseq
    %v3038 = vshrl.u32 %v3037, 7
    %v3039 = vsub.s32 %v3036, %v3038
    %v3040 = vrot.slane %v2184, %v3039
    %v3042 = vunpack.c.l.s4 269488144
    %v3043 = vunpack.c.0.s8 %v3042
    %v3044 = vlaneseq
    %v3045 = vshrl.u32 %v3044, 7
    %v3046 = vsub.s32 %v3043, %v3045
    %v3047 = vrot.slane %v2187, %v3046
    %v3049 = vunpack.c.l.s4 842150450
    %v3050 = vunpack.c.0.s8 %v3049
    %v3051 = vlaneseq
    %v3052 = vshrl.u32 %v3051, 7
    %v3053 = vsub.s32 %v3050, %v3052
    %v3054 = vrot.slane %v2187, %v3053
    %v3056 = vunpack.c.l.s4 1414812756
    %v3057 = vunpack.c.0.s8 %v3056
    %v3058 = vlaneseq
    %v3059 = vshrl.u32 %v3058, 7
    %v3060 = vsub.s32 %v3057, %v3059
    %v3061 = vrot.slane %v2187, %v3060
    %v3063 = vunpack.c.l.s4 1987475062
    %v3064 = vunpack.c.0.s8 %v3063
    %v3065 = vlaneseq
    %v3066 = vshrl.u32 %v3065, 7
    %v3067 = vsub.s32 %v3064, %v3066
    %v3068 = vrot.slane %v2187, %v3067
    %v3070 = vunpack.c.l.s4 269488144
    %v3071 = vunpack.c.0.s8 %v3070
    %v3072 = vlaneseq
    %v3073 = vshrl.u32 %v3072, 7
    %v3074 = vsub.s32 %v3071, %v3073
    %v3075 = vrot.slane %v2190, %v3074
    %v3077 = vunpack.c.l.s4 842150450
    %v3078 = vunpack.c.0.s8 %v3077
    %v3079 = vlaneseq
    %v3080 = vshrl.u32 %v3079, 7
    %v3081 = vsub.s32 %v3078, %v3080
    %v3082 = vrot.slane %v2190, %v3081
    %v3084 = vunpack.c.l.s4 1414812756
    %v3085 = vunpack.c.0.s8 %v3084
    %v3086 = vlaneseq
    %v3087 = vshrl.u32 %v3086, 7
    %v3088 = vsub.s32 %v3085, %v3087
    %v3089 = vrot.slane %v2190, %v3088
    %v3091 = vunpack.c.l.s4 1987475062
    %v3092 = vunpack.c.0.s8 %v3091
    %v3093 = vlaneseq
    %v3094 = vshrl.u32 %v3093, 7
    %v3095 = vsub.s32 %v3092, %v3094
    %v3096 = vrot.slane %v2190, %v3095
    %v3098 = vunpack.c.l.s4 269488144
    %v3099 = vunpack.c.0.s8 %v3098
    %v3100 = vlaneseq
    %v3101 = vshrl.u32 %v3100, 7
    %v3102 = vsub.s32 %v3099, %v3101
    %v3103 = vrot.slane %v2193, %v3102
    %v3105 = vunpack.c.l.s4 842150450
    %v3106 = vunpack.c.0.s8 %v3105
    %v3107 = vlaneseq
    %v3108 = vshrl.u32 %v3107, 7
    %v3109 = vsub.s32 %v3106, %v3108
    %v3110 = vrot.slane %v2193, %v3109
    %v3112 = vunpack.c.l.s4 1414812756
    %v3113 = vunpack.c.0.s8 %v3112
    %v3114 = vlaneseq
    %v3115 = vshrl.u32 %v3114, 7
    %v3116 = vsub.s32 %v3113, %v3115
    %v3117 = vrot.slane %v2193, %v3116
    %v3119 = vunpack.c.l.s4 1987475062
    %v3120 = vunpack.c.0.s8 %v3119
    %v3121 = vlaneseq
    %v3122 = vshrl.u32 %v3121, 7
    %v3123 = vsub.s32 %v3120, %v3122
    %v3124 = vrot.slane %v2193, %v3123
    %v3126 = vunpack.c.l.s4 269488144
    %v3127 = vunpack.c.0.s8 %v3126
    %v3128 = vlaneseq
    %v3129 = vshrl.u32 %v3128, 7
    %v3130 = vsub.s32 %v3127, %v3129
    %v3131 = vrot.slane %v2196, %v3130
    %v3133 = vunpack.c.l.s4 842150450
    %v3134 = vunpack.c.0.s8 %v3133
    %v3135 = vlaneseq
    %v3136 = vshrl.u32 %v3135, 7
    %v3137 = vsub.s32 %v3134, %v3136
    %v3138 = vrot.slane %v2196, %v3137
    %v3140 = vunpack.c.l.s4 1414812756
    %v3141 = vunpack.c.0.s8 %v3140
    %v3142 = vlaneseq
    %v3143 = vshrl.u32 %v3142, 7
    %v3144 = vsub.s32 %v3141, %v3143
    %v3145 = vrot.slane %v2196, %v3144
    %v3147 = vunpack.c.l.s4 1987475062
    %v3148 = vunpack.c.0.s8 %v3147
    %v3149 = vlaneseq
    %v3150 = vshrl.u32 %v3149, 7
    %v3151 = vsub.s32 %v3148, %v3150
    %v3152 = vrot.slane %v2196, %v3151
    %v3154 = vunpack.c.l.s4 269488144
    %v3155 = vunpack.c.0.s8 %v3154
    %v3156 = vlaneseq
    %v3157 = vshrl.u32 %v3156, 7
    %v3158 = vsub.s32 %v3155, %v3157
    %v3159 = vrot.slane %v2199, %v3158
    %v3161 = vunpack.c.l.s4 842150450
    %v3162 = vunpack.c.0.s8 %v3161
    %v3163 = vlaneseq
    %v3164 = vshrl.u32 %v3163, 7
    %v3165 = vsub.s32 %v3162, %v3164
    %v3166 = vrot.slane %v2199, %v3165
    %v3168 = vunpack.c.l.s4 1414812756
    %v3169 = vunpack.c.0.s8 %v3168
    %v3170 = vlaneseq
    %v3171 = vshrl.u32 %v3170, 7
    %v3172 = vsub.s32 %v3169, %v3171
    %v3173 = vrot.slane %v2199, %v3172
    %v3175 = vunpack.c.l.s4 1987475062
    %v3176 = vunpack.c.0.s8 %v3175
    %v3177 = vlaneseq
    %v3178 = vshrl.u32 %v3177, 7
    %v3179 = vsub.s32 %v3176, %v3178
    %v3180 = vrot.slane %v2199, %v3179
    %v3182 = vunpack.c.l.s4 269488144
    %v3183 = vunpack.c.0.s8 %v3182
    %v3184 = vlaneseq
    %v3185 = vshrl.u32 %v3184, 7
    %v3186 = vsub.s32 %v3183, %v3185
    %v3187 = vrot.slane %v2202, %v3186
    %v3189 = vunpack.c.l.s4 842150450
    %v3190 = vunpack.c.0.s8 %v3189
    %v3191 = vlaneseq
    %v3192 = vshrl.u32 %v3191, 7
    %v3193 = vsub.s32 %v3190, %v3192
    %v3194 = vrot.slane %v2202, %v3193
    %v3196 = vunpack.c.l.s4 1414812756
    %v3197 = vunpack.c.0.s8 %v3196
    %v3198 = vlaneseq
    %v3199 = vshrl.u32 %v3198, 7
    %v3200 = vsub.s32 %v3197, %v3199
    %v3201 = vrot.slane %v2202, %v3200
    %v3203 = vunpack.c.l.s4 1987475062
    %v3204 = vunpack.c.0.s8 %v3203
    %v3205 = vlaneseq
    %v3206 = vshrl.u32 %v3205, 7
    %v3207 = vsub.s32 %v3204, %v3206
    %v3208 = vrot.slane %v2202, %v3207
    %v3210 = vunpack.c.l.s4 269488144
    %v3211 = vunpack.c.0.s8 %v3210
    %v3212 = vlaneseq
    %v3213 = vshrl.u32 %v3212, 7
    %v3214 = vsub.s32 %v3211, %v3213
    %v3215 = vrot.slane %v2205, %v3214
    %v3217 = vunpack.c.l.s4 842150450
    %v3218 = vunpack.c.0.s8 %v3217
    %v3219 = vlaneseq
    %v3220 = vshrl.u32 %v3219, 7
    %v3221 = vsub.s32 %v3218, %v3220
    %v3222 = vrot.slane %v2205, %v3221
    %v3224 = vunpack.c.l.s4 1414812756
    %v3225 = vunpack.c.0.s8 %v3224
    %v3226 = vlaneseq
    %v3227 = vshrl.u32 %v3226, 7
    %v3228 = vsub.s32 %v3225, %v3227
    %v3229 = vrot.slane %v2205, %v3228
    %v3231 = vunpack.c.l.s4 1987475062
    %v3232 = vunpack.c.0.s8 %v3231
    %v3233 = vlaneseq
    %v3234 = vshrl.u32 %v3233, 7
    %v3235 = vsub.s32 %v3232, %v3234
    %v3236 = vrot.slane %v2205, %v3235
    %v3238 = vunpack.c.l.s4 269488144
    %v3239 = vunpack.c.0.s8 %v3238
    %v3240 = vlaneseq
    %v3241 = vshrl.u32 %v3240, 7
    %v3242 = vsub.s32 %v3239, %v3241
    %v3243 = vrot.slane %v2208, %v3242
    %v3245 = vunpack.c.l.s4 842150450
    %v3246 = vunpack.c.0.s8 %v3245
    %v3247 = vlaneseq
    %v3248 = vshrl.u32 %v3247, 7
    %v3249 = vsub.s32 %v3246, %v3248
    %v3250 = vrot.slane %v2208, %v3249
    %v3252 = vunpack.c.l.s4 1414812756
    %v3253 = vunpack.c.0.s8 %v3252
    %v3254 = vlaneseq
    %v3255 = vshrl.u32 %v3254, 7
    %v3256 = vsub.s32 %v3253, %v3255
    %v3257 = vrot.slane %v2208, %v3256
    %v3259 = vunpack.c.l.s4 1987475062
    %v3260 = vunpack.c.0.s8 %v3259
    %v3261 = vlaneseq
    %v3262 = vshrl.u32 %v3261, 7
    %v3263 = vsub.s32 %v3260, %v3262
    %v3264 = vrot.slane %v2208, %v3263
    %v3266 = vunpack.c.l.s4 269488144
    %v3267 = vunpack.c.0.s8 %v3266
    %v3268 = vlaneseq
    %v3269 = vshrl.u32 %v3268, 7
    %v3270 = vsub.s32 %v3267, %v3269
    %v3271 = vrot.slane %v2211, %v3270
    %v3273 = vunpack.c.l.s4 842150450
    %v3274 = vunpack.c.0.s8 %v3273
    %v3275 = vlaneseq
    %v3276 = vshrl.u32 %v3275, 7
    %v3277 = vsub.s32 %v3274, %v3276
    %v3278 = vrot.slane %v2211, %v3277
    %v3280 = vunpack.c.l.s4 1414812756
    %v3281 = vunpack.c.0.s8 %v3280
    %v3282 = vlaneseq
    %v3283 = vshrl.u32 %v3282, 7
    %v3284 = vsub.s32 %v3281, %v3283
    %v3285 = vrot.slane %v2211, %v3284
    %v3287 = vunpack.c.l.s4 1987475062
    %v3288 = vunpack.c.0.s8 %v3287
    %v3289 = vlaneseq
    %v3290 = vshrl.u32 %v3289, 7
    %v3291 = vsub.s32 %v3288, %v3290
    %v3292 = vrot.slane %v2211, %v3291
    %v3294 = vunpack.c.l.s4 269488144
    %v3295 = vunpack.c.0.s8 %v3294
    %v3296 = vlaneseq
    %v3297 = vshrl.u32 %v3296, 7
    %v3298 = vsub.s32 %v3295, %v3297
    %v3299 = vrot.slane %v2214, %v3298
    %v3301 = vunpack.c.l.s4 842150450
    %v3302 = vunpack.c.0.s8 %v3301
    %v3303 = vlaneseq
    %v3304 = vshrl.u32 %v3303, 7
    %v3305 = vsub.s32 %v3302, %v3304
    %v3306 = vrot.slane %v2214, %v3305
    %v3308 = vunpack.c.l.s4 1414812756
    %v3309 = vunpack.c.0.s8 %v3308
    %v3310 = vlaneseq
    %v3311 = vshrl.u32 %v3310, 7
    %v3312 = vsub.s32 %v3309, %v3311
    %v3313 = vrot.slane %v2214, %v3312
    %v3315 = vunpack.c.l.s4 1987475062
    %v3316 = vunpack.c.0.s8 %v3315
    %v3317 = vlaneseq
    %v3318 = vshrl.u32 %v3317, 7
    %v3319 = vsub.s32 %v3316, %v3318
    %v3320 = vrot.slane %v2214, %v3319
    %v3322 = vunpack.c.l.s4 269488144
    %v3323 = vunpack.c.0.s8 %v3322
    %v3324 = vlaneseq
    %v3325 = vshrl.u32 %v3324, 7
    %v3326 = vsub.s32 %v3323, %v3325
    %v3327 = vrot.slane %v2217, %v3326
    %v3329 = vunpack.c.l.s4 842150450
    %v3330 = vunpack.c.0.s8 %v3329
    %v3331 = vlaneseq
    %v3332 = vshrl.u32 %v3331, 7
    %v3333 = vsub.s32 %v3330, %v3332
    %v3334 = vrot.slane %v2217, %v3333
    %v3336 = vunpack.c.l.s4 1414812756
    %v3337 = vunpack.c.0.s8 %v3336
    %v3338 = vlaneseq
    %v3339 = vshrl.u32 %v3338, 7
    %v3340 = vsub.s32 %v3337, %v3339
    %v3341 = vrot.slane %v2217, %v3340
    %v3343 = vunpack.c.l.s4 1987475062
    %v3344 = vunpack.c.0.s8 %v3343
    %v3345 = vlaneseq
    %v3346 = vshrl.u32 %v3345, 7
    %v3347 = vsub.s32 %v3344, %v3346
    %v3348 = vrot.slane %v2217, %v3347
    %v3350 = vunpack.c.l.s4 269488144
    %v3351 = vunpack.c.0.s8 %v3350
    %v3352 = vlaneseq
    %v3353 = vshrl.u32 %v3352, 7
    %v3354 = vsub.s32 %v3351, %v3353
    %v3355 = vrot.slane %v2220, %v3354
    %v3357 = vunpack.c.l.s4 842150450
    %v3358 = vunpack.c.0.s8 %v3357
    %v3359 = vlaneseq
    %v3360 = vshrl.u32 %v3359, 7
    %v3361 = vsub.s32 %v3358, %v3360
    %v3362 = vrot.slane %v2220, %v3361
    %v3364 = vunpack.c.l.s4 1414812756
    %v3365 = vunpack.c.0.s8 %v3364
    %v3366 = vlaneseq
    %v3367 = vshrl.u32 %v3366, 7
    %v3368 = vsub.s32 %v3365, %v3367
    %v3369 = vrot.slane %v2220, %v3368
    %v3371 = vunpack.c.l.s4 1987475062
    %v3372 = vunpack.c.0.s8 %v3371
    %v3373 = vlaneseq
    %v3374 = vshrl.u32 %v3373, 7
    %v3375 = vsub.s32 %v3372, %v3374
    %v3376 = vrot.slane %v2220, %v3375
    %v3378 = vunpack.c.l.s4 269488144
    %v3379 = vunpack.c.0.s8 %v3378
    %v3380 = vlaneseq
    %v3381 = vshrl.u32 %v3380, 7
    %v3382 = vsub.s32 %v3379, %v3381
    %v3383 = vrot.slane %v2223, %v3382
    %v3385 = vunpack.c.l.s4 842150450
    %v3386 = vunpack.c.0.s8 %v3385
    %v3387 = vlaneseq
    %v3388 = vshrl.u32 %v3387, 7
    %v3389 = vsub.s32 %v3386, %v3388
    %v3390 = vrot.slane %v2223, %v3389
    %v3392 = vunpack.c.l.s4 1414812756
    %v3393 = vunpack.c.0.s8 %v3392
    %v3394 = vlaneseq
    %v3395 = vshrl.u32 %v3394, 7
    %v3396 = vsub.s32 %v3393, %v3395
    %v3397 = vrot.slane %v2223, %v3396
    %v3399 = vunpack.c.l.s4 1987475062
    %v3400 = vunpack.c.0.s8 %v3399
    %v3401 = vlaneseq
    %v3402 = vshrl.u32 %v3401, 7
    %v3403 = vsub.s32 %v3400, %v3402
    %v3404 = vrot.slane %v2223, %v3403
    %v3406 = vunpack.c.l.s4 269488144
    %v3407 = vunpack.c.0.s8 %v3406
    %v3408 = vlaneseq
    %v3409 = vshrl.u32 %v3408, 7
    %v3410 = vsub.s32 %v3407, %v3409
    %v3411 = vrot.slane %v2226, %v3410
    %v3413 = vunpack.c.l.s4 842150450
    %v3414 = vunpack.c.0.s8 %v3413
    %v3415 = vlaneseq
    %v3416 = vshrl.u32 %v3415, 7
    %v3417 = vsub.s32 %v3414, %v3416
    %v3418 = vrot.slane %v2226, %v3417
    %v3420 = vunpack.c.l.s4 1414812756
    %v3421 = vunpack.c.0.s8 %v3420
    %v3422 = vlaneseq
    %v3423 = vshrl.u32 %v3422, 7
    %v3424 = vsub.s32 %v3421, %v3423
    %v3425 = vrot.slane %v2226, %v3424
    %v3427 = vunpack.c.l.s4 1987475062
    %v3428 = vunpack.c.0.s8 %v3427
    %v3429 = vlaneseq
    %v3430 = vshrl.u32 %v3429, 7
    %v3431 = vsub.s32 %v3428, %v3430
    %v3432 = vrot.slane %v2226, %v3431
    %v3434 = vunpack.c.l.s4 269488144
    %v3435 = vunpack.c.0.s8 %v3434
    %v3436 = vlaneseq
    %v3437 = vshrl.u32 %v3436, 7
    %v3438 = vsub.s32 %v3435, %v3437
    %v3439 = vrot.slane %v2229, %v3438
    %v3441 = vunpack.c.l.s4 842150450
    %v3442 = vunpack.c.0.s8 %v3441
    %v3443 = vlaneseq
    %v3444 = vshrl.u32 %v3443, 7
    %v3445 = vsub.s32 %v3442, %v3444
    %v3446 = vrot.slane %v2229, %v3445
    %v3448 = vunpack.c.l.s4 1414812756
    %v3449 = vunpack.c.0.s8 %v3448
    %v3450 = vlaneseq
    %v3451 = vshrl.u32 %v3450, 7
    %v3452 = vsub.s32 %v3449, %v3451
    %v3453 = vrot.slane %v2229, %v3452
    %v3455 = vunpack.c.l.s4 1987475062
    %v3456 = vunpack.c.0.s8 %v3455
    %v3457 = vlaneseq
    %v3458 = vshrl.u32 %v3457, 7
    %v3459 = vsub.s32 %v3456, %v3458
    %v3460 = vrot.slane %v2229, %v3459
    %v3462 = vunpack.c.l.s4 269488144
    %v3463 = vunpack.c.0.s8 %v3462
    %v3464 = vlaneseq
    %v3465 = vshrl.u32 %v3464, 7
    %v3466 = vsub.s32 %v3463, %v3465
    %v3467 = vrot.slane %v2232, %v3466
    %v3469 = vunpack.c.l.s4 842150450
    %v3470 = vunpack.c.0.s8 %v3469
    %v3471 = vlaneseq
    %v3472 = vshrl.u32 %v3471, 7
    %v3473 = vsub.s32 %v3470, %v3472
    %v3474 = vrot.slane %v2232, %v3473
    %v3476 = vunpack.c.l.s4 1414812756
    %v3477 = vunpack.c.0.s8 %v3476
    %v3478 = vlaneseq
    %v3479 = vshrl.u32 %v3478, 7
    %v3480 = vsub.s32 %v3477, %v3479
    %v3481 = vrot.slane %v2232, %v3480
    %v3483 = vunpack.c.l.s4 1987475062
    %v3484 = vunpack.c.0.s8 %v3483
    %v3485 = vlaneseq
    %v3486 = vshrl.u32 %v3485, 7
    %v3487 = vsub.s32 %v3484, %v3486
    %v3488 = vrot.slane %v2232, %v3487
    %v3490 = vunpack.c.l.s4 269488144
    %v3491 = vunpack.c.0.s8 %v3490
    %v3492 = vlaneseq
    %v3493 = vshrl.u32 %v3492, 7
    %v3494 = vsub.s32 %v3491, %v3493
    %v3495 = vrot.slane %v2235, %v3494
    %v3497 = vunpack.c.l.s4 842150450
    %v3498 = vunpack.c.0.s8 %v3497
    %v3499 = vlaneseq
    %v3500 = vshrl.u32 %v3499, 7
    %v3501 = vsub.s32 %v3498, %v3500
    %v3502 = vrot.slane %v2235, %v3501
    %v3504 = vunpack.c.l.s4 1414812756
    %v3505 = vunpack.c.0.s8 %v3504
    %v3506 = vlaneseq
    %v3507 = vshrl.u32 %v3506, 7
    %v3508 = vsub.s32 %v3505, %v3507
    %v3509 = vrot.slane %v2235, %v3508
    %v3511 = vunpack.c.l.s4 1987475062
    %v3512 = vunpack.c.0.s8 %v3511
    %v3513 = vlaneseq
    %v3514 = vshrl.u32 %v3513, 7
    %v3515 = vsub.s32 %v3512, %v3514
    %v3516 = vrot.slane %v2235, %v3515
    %v3518 = vunpack.c.l.s4 269488144
    %v3519 = vunpack.c.0.s8 %v3518
    %v3520 = vlaneseq
    %v3521 = vshrl.u32 %v3520, 7
    %v3522 = vsub.s32 %v3519, %v3521
    %v3523 = vrot.slane %v2238, %v3522
    %v3525 = vunpack.c.l.s4 842150450
    %v3526 = vunpack.c.0.s8 %v3525
    %v3527 = vlaneseq
    %v3528 = vshrl.u32 %v3527, 7
    %v3529 = vsub.s32 %v3526, %v3528
    %v3530 = vrot.slane %v2238, %v3529
    %v3532 = vunpack.c.l.s4 1414812756
    %v3533 = vunpack.c.0.s8 %v3532
    %v3534 = vlaneseq
    %v3535 = vshrl.u32 %v3534, 7
    %v3536 = vsub.s32 %v3533, %v3535
    %v3537 = vrot.slane %v2238, %v3536
    %v3539 = vunpack.c.l.s4 1987475062
    %v3540 = vunpack.c.0.s8 %v3539
    %v3541 = vlaneseq
    %v3542 = vshrl.u32 %v3541, 7
    %v3543 = vsub.s32 %v3540, %v3542
    %v3544 = vrot.slane %v2238, %v3543
    %v3546 = vunpack.c.l.s4 269488144
    %v3547 = vunpack.c.0.s8 %v3546
    %v3548 = vlaneseq
    %v3549 = vshrl.u32 %v3548, 7
    %v3550 = vsub.s32 %v3547, %v3549
    %v3551 = vrot.slane %v2241, %v3550
    %v3553 = vunpack.c.l.s4 842150450
    %v3554 = vunpack.c.0.s8 %v3553
    %v3555 = vlaneseq
    %v3556 = vshrl.u32 %v3555, 7
    %v3557 = vsub.s32 %v3554, %v3556
    %v3558 = vrot.slane %v2241, %v3557
    %v3560 = vunpack.c.l.s4 1414812756
    %v3561 = vunpack.c.0.s8 %v3560
    %v3562 = vlaneseq
    %v3563 = vshrl.u32 %v3562, 7
    %v3564 = vsub.s32 %v3561, %v3563
    %v3565 = vrot.slane %v2241, %v3564
    %v3567 = vunpack.c.l.s4 1987475062
    %v3568 = vunpack.c.0.s8 %v3567
    %v3569 = vlaneseq
    %v3570 = vshrl.u32 %v3569, 7
    %v3571 = vsub.s32 %v3568, %v3570
    %v3572 = vrot.slane %v2241, %v3571
    %v3574 = vunpack.c.l.s4 269488144
    %v3575 = vunpack.c.0.s8 %v3574
    %v3576 = vlaneseq
    %v3577 = vshrl.u32 %v3576, 7
    %v3578 = vsub.s32 %v3575, %v3577
    %v3579 = vrot.slane %v2244, %v3578
    %v3581 = vunpack.c.l.s4 842150450
    %v3582 = vunpack.c.0.s8 %v3581
    %v3583 = vlaneseq
    %v3584 = vshrl.u32 %v3583, 7
    %v3585 = vsub.s32 %v3582, %v3584
    %v3586 = vrot.slane %v2244, %v3585
    %v3588 = vunpack.c.l.s4 1414812756
    %v3589 = vunpack.c.0.s8 %v3588
    %v3590 = vlaneseq
    %v3591 = vshrl.u32 %v3590, 7
    %v3592 = vsub.s32 %v3589, %v3591
    %v3593 = vrot.slane %v2244, %v3592
    %v3595 = vunpack.c.l.s4 1987475062
    %v3596 = vunpack.c.0.s8 %v3595
    %v3597 = vlaneseq
    %v3598 = vshrl.u32 %v3597, 7
    %v3599 = vsub.s32 %v3596, %v3598
    %v3600 = vrot.slane %v2244, %v3599
    %v3602 = vunpack.c.l.s4 269488144
    %v3603 = vunpack.c.0.s8 %v3602
    %v3604 = vlaneseq
    %v3605 = vshrl.u32 %v3604, 7
    %v3606 = vsub.s32 %v3603, %v3605
    %v3607 = vrot.slane %v2247, %v3606
    %v3609 = vunpack.c.l.s4 842150450
    %v3610 = vunpack.c.0.s8 %v3609
    %v3611 = vlaneseq
    %v3612 = vshrl.u32 %v3611, 7
    %v3613 = vsub.s32 %v3610, %v3612
    %v3614 = vrot.slane %v2247, %v3613
    %v3616 = vunpack.c.l.s4 1414812756
    %v3617 = vunpack.c.0.s8 %v3616
    %v3618 = vlaneseq
    %v3619 = vshrl.u32 %v3618, 7
    %v3620 = vsub.s32 %v3617, %v3619
    %v3621 = vrot.slane %v2247, %v3620
    %v3623 = vunpack.c.l.s4 1987475062
    %v3624 = vunpack.c.0.s8 %v3623
    %v3625 = vlaneseq
    %v3626 = vshrl.u32 %v3625, 7
    %v3627 = vsub.s32 %v3624, %v3626
    %v3628 = vrot.slane %v2247, %v3627
    %v3630 = vunpack.c.l.s4 269488144
    %v3631 = vunpack.c.0.s8 %v3630
    %v3632 = vlaneseq
    %v3633 = vshrl.u32 %v3632, 7
    %v3634 = vsub.s32 %v3631, %v3633
    %v3635 = vrot.slane %v2250, %v3634
    %v3637 = vunpack.c.l.s4 842150450
    %v3638 = vunpack.c.0.s8 %v3637
    %v3639 = vlaneseq
    %v3640 = vshrl.u32 %v3639, 7
    %v3641 = vsub.s32 %v3638, %v3640
    %v3642 = vrot.slane %v2250, %v3641
    %v3644 = vunpack.c.l.s4 1414812756
    %v3645 = vunpack.c.0.s8 %v3644
    %v3646 = vlaneseq
    %v3647 = vshrl.u32 %v3646, 7
    %v3648 = vsub.s32 %v3645, %v3647
    %v3649 = vrot.slane %v2250, %v3648
    %v3651 = vunpack.c.l.s4 1987475062
    %v3652 = vunpack.c.0.s8 %v3651
    %v3653 = vlaneseq
    %v3654 = vshrl.u32 %v3653, 7
    %v3655 = vsub.s32 %v3652, %v3654
    %v3656 = vrot.slane %v2250, %v3655
    %v3658 = vunpack.c.l.s4 269488144
    %v3659 = vunpack.c.0.s8 %v3658
    %v3660 = vlaneseq
    %v3661 = vshrl.u32 %v3660, 7
    %v3662 = vsub.s32 %v3659, %v3661
    %v3663 = vrot.slane %v2253, %v3662
    %v3665 = vunpack.c.l.s4 842150450
    %v3666 = vunpack.c.0.s8 %v3665
    %v3667 = vlaneseq
    %v3668 = vshrl.u32 %v3667, 7
    %v3669 = vsub.s32 %v3666, %v3668
    %v3670 = vrot.slane %v2253, %v3669
    %v3672 = vunpack.c.l.s4 1414812756
    %v3673 = vunpack.c.0.s8 %v3672
    %v3674 = vlaneseq
    %v3675 = vshrl.u32 %v3674, 7
    %v3676 = vsub.s32 %v3673, %v3675
    %v3677 = vrot.slane %v2253, %v3676
    %v3679 = vunpack.c.l.s4 1987475062
    %v3680 = vunpack.c.0.s8 %v3679
    %v3681 = vlaneseq
    %v3682 = vshrl.u32 %v3681, 7
    %v3683 = vsub.s32 %v3680, %v3682
    %v3684 = vrot.slane %v2253, %v3683
    %v3686 = vunpack.c.l.s4 269488144
    %v3687 = vunpack.c.0.s8 %v3686
    %v3688 = vlaneseq
    %v3689 = vshrl.u32 %v3688, 7
    %v3690 = vsub.s32 %v3687, %v3689
    %v3691 = vrot.slane %v2256, %v3690
    %v3693 = vunpack.c.l.s4 842150450
    %v3694 = vunpack.c.0.s8 %v3693
    %v3695 = vlaneseq
    %v3696 = vshrl.u32 %v3695, 7
    %v3697 = vsub.s32 %v3694, %v3696
    %v3698 = vrot.slane %v2256, %v3697
    %v3700 = vunpack.c.l.s4 1414812756
    %v3701 = vunpack.c.0.s8 %v3700
    %v3702 = vlaneseq
    %v3703 = vshrl.u32 %v3702, 7
    %v3704 = vsub.s32 %v3701, %v3703
    %v3705 = vrot.slane %v2256, %v3704
    %v3707 = vunpack.c.l.s4 1987475062
    %v3708 = vunpack.c.0.s8 %v3707
    %v3709 = vlaneseq
    %v3710 = vshrl.u32 %v3709, 7
    %v3711 = vsub.s32 %v3708, %v3710
    %v3712 = vrot.slane %v2256, %v3711
    %v3714 = vunpack.c.l.s4 269488144
    %v3715 = vunpack.c.0.s8 %v3714
    %v3716 = vlaneseq
    %v3717 = vshrl.u32 %v3716, 7
    %v3718 = vsub.s32 %v3715, %v3717
    %v3719 = vrot.slane %v2259, %v3718
    %v3721 = vunpack.c.l.s4 842150450
    %v3722 = vunpack.c.0.s8 %v3721
    %v3723 = vlaneseq
    %v3724 = vshrl.u32 %v3723, 7
    %v3725 = vsub.s32 %v3722, %v3724
    %v3726 = vrot.slane %v2259, %v3725
    %v3728 = vunpack.c.l.s4 1414812756
    %v3729 = vunpack.c.0.s8 %v3728
    %v3730 = vlaneseq
    %v3731 = vshrl.u32 %v3730, 7
    %v3732 = vsub.s32 %v3729, %v3731
    %v3733 = vrot.slane %v2259, %v3732
    %v3735 = vunpack.c.l.s4 1987475062
    %v3736 = vunpack.c.0.s8 %v3735
    %v3737 = vlaneseq
    %v3738 = vshrl.u32 %v3737, 7
    %v3739 = vsub.s32 %v3736, %v3738
    %v3740 = vrot.slane %v2259, %v3739
    %v3742 = vunpack.c.l.s4 269488144
    %v3743 = vunpack.c.0.s8 %v3742
    %v3744 = vlaneseq
    %v3745 = vshrl.u32 %v3744, 7
    %v3746 = vsub.s32 %v3743, %v3745
    %v3747 = vrot.slane %v2262, %v3746
    %v3749 = vunpack.c.l.s4 842150450
    %v3750 = vunpack.c.0.s8 %v3749
    %v3751 = vlaneseq
    %v3752 = vshrl.u32 %v3751, 7
    %v3753 = vsub.s32 %v3750, %v3752
    %v3754 = vrot.slane %v2262, %v3753
    %v3756 = vunpack.c.l.s4 1414812756
    %v3757 = vunpack.c.0.s8 %v3756
    %v3758 = vlaneseq
    %v3759 = vshrl.u32 %v3758, 7
    %v3760 = vsub.s32 %v3757, %v3759
    %v3761 = vrot.slane %v2262, %v3760
    %v3763 = vunpack.c.l.s4 1987475062
    %v3764 = vunpack.c.0.s8 %v3763
    %v3765 = vlaneseq
    %v3766 = vshrl.u32 %v3765, 7
    %v3767 = vsub.s32 %v3764, %v3766
    %v3768 = vrot.slane %v2262, %v3767
    %v3770 = vunpack.c.l.s4 269488144
    %v3771 = vunpack.c.0.s8 %v3770
    %v3772 = vlaneseq
    %v3773 = vshrl.u32 %v3772, 7
    %v3774 = vsub.s32 %v3771, %v3773
    %v3775 = vrot.slane %v2265, %v3774
    %v3777 = vunpack.c.l.s4 842150450
    %v3778 = vunpack.c.0.s8 %v3777
    %v3779 = vlaneseq
    %v3780 = vshrl.u32 %v3779, 7
    %v3781 = vsub.s32 %v3778, %v3780
    %v3782 = vrot.slane %v2265, %v3781
    %v3784 = vunpack.c.l.s4 1414812756
    %v3785 = vunpack.c.0.s8 %v3784
    %v3786 = vlaneseq
    %v3787 = vshrl.u32 %v3786, 7
    %v3788 = vsub.s32 %v3785, %v3787
    %v3789 = vrot.slane %v2265, %v3788
    %v3791 = vunpack.c.l.s4 1987475062
    %v3792 = vunpack.c.0.s8 %v3791
    %v3793 = vlaneseq
    %v3794 = vshrl.u32 %v3793, 7
    %v3795 = vsub.s32 %v3792, %v3794
    %v3796 = vrot.slane %v2265, %v3795
    %v3798 = vunpack.c.l.s4 269488144
    %v3799 = vunpack.c.0.s8 %v3798
    %v3800 = vlaneseq
    %v3801 = vshrl.u32 %v3800, 7
    %v3802 = vsub.s32 %v3799, %v3801
    %v3803 = vrot.slane %v2268, %v3802
    %v3805 = vunpack.c.l.s4 842150450
    %v3806 = vunpack.c.0.s8 %v3805
    %v3807 = vlaneseq
    %v3808 = vshrl.u32 %v3807, 7
    %v3809 = vsub.s32 %v3806, %v3808
    %v3810 = vrot.slane %v2268, %v3809
    %v3812 = vunpack.c.l.s4 1414812756
    %v3813 = vunpack.c.0.s8 %v3812
    %v3814 = vlaneseq
    %v3815 = vshrl.u32 %v3814, 7
    %v3816 = vsub.s32 %v3813, %v3815
    %v3817 = vrot.slane %v2268, %v3816
    %v3819 = vunpack.c.l.s4 1987475062
    %v3820 = vunpack.c.0.s8 %v3819
    %v3821 = vlaneseq
    %v3822 = vshrl.u32 %v3821, 7
    %v3823 = vsub.s32 %v3820, %v3822
    %v3824 = vrot.slane %v2268, %v3823
    %v3826 = vunpack.c.l.s4 269488144
    %v3827 = vunpack.c.0.s8 %v3826
    %v3828 = vlaneseq
    %v3829 = vshrl.u32 %v3828, 7
    %v3830 = vsub.s32 %v3827, %v3829
    %v3831 = vrot.slane %v2271, %v3830
    %v3833 = vunpack.c.l.s4 842150450
    %v3834 = vunpack.c.0.s8 %v3833
    %v3835 = vlaneseq
    %v3836 = vshrl.u32 %v3835, 7
    %v3837 = vsub.s32 %v3834, %v3836
    %v3838 = vrot.slane %v2271, %v3837
    %v3840 = vunpack.c.l.s4 1414812756
    %v3841 = vunpack.c.0.s8 %v3840
    %v3842 = vlaneseq
    %v3843 = vshrl.u32 %v3842, 7
    %v3844 = vsub.s32 %v3841, %v3843
    %v3845 = vrot.slane %v2271, %v3844
    %v3847 = vunpack.c.l.s4 1987475062
    %v3848 = vunpack.c.0.s8 %v3847
    %v3849 = vlaneseq
    %v3850 = vshrl.u32 %v3849, 7
    %v3851 = vsub.s32 %v3848, %v3850
    %v3852 = vrot.slane %v2271, %v3851
    %v3854 = vunpack.c.l.s4 269488144
    %v3855 = vunpack.c.0.s8 %v3854
    %v3856 = vlaneseq
    %v3857 = vshrl.u32 %v3856, 7
    %v3858 = vsub.s32 %v3855, %v3857
    %v3859 = vrot.slane %v2274, %v3858
    %v3861 = vunpack.c.l.s4 842150450
    %v3862 = vunpack.c.0.s8 %v3861
    %v3863 = vlaneseq
    %v3864 = vshrl.u32 %v3863, 7
    %v3865 = vsub.s32 %v3862, %v3864
    %v3866 = vrot.slane %v2274, %v3865
    %v3868 = vunpack.c.l.s4 1414812756
    %v3869 = vunpack.c.0.s8 %v3868
    %v3870 = vlaneseq
    %v3871 = vshrl.u32 %v3870, 7
    %v3872 = vsub.s32 %v3869, %v3871
    %v3873 = vrot.slane %v2274, %v3872
    %v3875 = vunpack.c.l.s4 1987475062
    %v3876 = vunpack.c.0.s8 %v3875
    %v3877 = vlaneseq
    %v3878 = vshrl.u32 %v3877, 7
    %v3879 = vsub.s32 %v3876, %v3878
    %v3880 = vrot.slane %v2274, %v3879
    %v3882 = vunpack.c.l.s4 269488144
    %v3883 = vunpack.c.0.s8 %v3882
    %v3884 = vlaneseq
    %v3885 = vshrl.u32 %v3884, 7
    %v3886 = vsub.s32 %v3883, %v3885
    %v3887 = vrot.slane %v2277, %v3886
    %v3889 = vunpack.c.l.s4 842150450
    %v3890 = vunpack.c.0.s8 %v3889
    %v3891 = vlaneseq
    %v3892 = vshrl.u32 %v3891, 7
    %v3893 = vsub.s32 %v3890, %v3892
    %v3894 = vrot.slane %v2277, %v3893
    %v3896 = vunpack.c.l.s4 1414812756
    %v3897 = vunpack.c.0.s8 %v3896
    %v3898 = vlaneseq
    %v3899 = vshrl.u32 %v3898, 7
    %v3900 = vsub.s32 %v3897, %v3899
    %v3901 = vrot.slane %v2277, %v3900
    %v3903 = vunpack.c.l.s4 1987475062
    %v3904 = vunpack.c.0.s8 %v3903
    %v3905 = vlaneseq
    %v3906 = vshrl.u32 %v3905, 7
    %v3907 = vsub.s32 %v3904, %v3906
    %v3908 = vrot.slane %v2277, %v3907
    %v3910 = vunpack.c.l.s4 269488144
    %v3911 = vunpack.c.0.s8 %v3910
    %v3912 = vlaneseq
    %v3913 = vshrl.u32 %v3912, 7
    %v3914 = vsub.s32 %v3911, %v3913
    %v3915 = vrot.slane %v2280, %v3914
    %v3917 = vunpack.c.l.s4 842150450
    %v3918 = vunpack.c.0.s8 %v3917
    %v3919 = vlaneseq
    %v3920 = vshrl.u32 %v3919, 7
    %v3921 = vsub.s32 %v3918, %v3920
    %v3922 = vrot.slane %v2280, %v3921
    %v3924 = vunpack.c.l.s4 1414812756
    %v3925 = vunpack.c.0.s8 %v3924
    %v3926 = vlaneseq
    %v3927 = vshrl.u32 %v3926, 7
    %v3928 = vsub.s32 %v3925, %v3927
    %v3929 = vrot.slane %v2280, %v3928
    %v3931 = vunpack.c.l.s4 1987475062
    %v3932 = vunpack.c.0.s8 %v3931
    %v3933 = vlaneseq
    %v3934 = vshrl.u32 %v3933, 7
    %v3935 = vsub.s32 %v3932, %v3934
    %v3936 = vrot.slane %v2280, %v3935
    %v3938 = vunpack.c.l.s4 269488144
    %v3939 = vunpack.c.0.s8 %v3938
    %v3940 = vlaneseq
    %v3941 = vshrl.u32 %v3940, 7
    %v3942 = vsub.s32 %v3939, %v3941
    %v3943 = vrot.slane %v2283, %v3942
    %v3945 = vunpack.c.l.s4 842150450
    %v3946 = vunpack.c.0.s8 %v3945
    %v3947 = vlaneseq
    %v3948 = vshrl.u32 %v3947, 7
    %v3949 = vsub.s32 %v3946, %v3948
    %v3950 = vrot.slane %v2283, %v3949
    %v3952 = vunpack.c.l.s4 1414812756
    %v3953 = vunpack.c.0.s8 %v3952
    %v3954 = vlaneseq
    %v3955 = vshrl.u32 %v3954, 7
    %v3956 = vsub.s32 %v3953, %v3955
    %v3957 = vrot.slane %v2283, %v3956
    %v3959 = vunpack.c.l.s4 1987475062
    %v3960 = vunpack.c.0.s8 %v3959
    %v3961 = vlaneseq
    %v3962 = vshrl.u32 %v3961, 7
    %v3963 = vsub.s32 %v3960, %v3962
    %v3964 = vrot.slane %v2283, %v3963
    %v3966 = vunpack.c.l.s4 269488144
    %v3967 = vunpack.c.0.s8 %v3966
    %v3968 = vlaneseq
    %v3969 = vshrl.u32 %v3968, 7
    %v3970 = vsub.s32 %v3967, %v3969
    %v3971 = vrot.slane %v2286, %v3970
    %v3973 = vunpack.c.l.s4 842150450
    %v3974 = vunpack.c.0.s8 %v3973
    %v3975 = vlaneseq
    %v3976 = vshrl.u32 %v3975, 7
    %v3977 = vsub.s32 %v3974, %v3976
    %v3978 = vrot.slane %v2286, %v3977
    %v3980 = vunpack.c.l.s4 1414812756
    %v3981 = vunpack.c.0.s8 %v3980
    %v3982 = vlaneseq
    %v3983 = vshrl.u32 %v3982, 7
    %v3984 = vsub.s32 %v3981, %v3983
    %v3985 = vrot.slane %v2286, %v3984
    %v3987 = vunpack.c.l.s4 1987475062
    %v3988 = vunpack.c.0.s8 %v3987
    %v3989 = vlaneseq
    %v3990 = vshrl.u32 %v3989, 7
    %v3991 = vsub.s32 %v3988, %v3990
    %v3992 = vrot.slane %v2286, %v3991
    %v3994 = vunpack.c.l.s4 269488144
    %v3995 = vunpack.c.0.s8 %v3994
    %v3996 = vlaneseq
    %v3997 = vshrl.u32 %v3996, 7
    %v3998 = vsub.s32 %v3995, %v3997
    %v3999 = vrot.slane %v2289, %v3998
    %v4001 = vunpack.c.l.s4 842150450
    %v4002 = vunpack.c.0.s8 %v4001
    %v4003 = vlaneseq
    %v4004 = vshrl.u32 %v4003, 7
    %v4005 = vsub.s32 %v4002, %v4004
    %v4006 = vrot.slane %v2289, %v4005
    %v4008 = vunpack.c.l.s4 1414812756
    %v4009 = vunpack.c.0.s8 %v4008
    %v4010 = vlaneseq
    %v4011 = vshrl.u32 %v4010, 7
    %v4012 = vsub.s32 %v4009, %v4011
    %v4013 = vrot.slane %v2289, %v4012
    %v4015 = vunpack.c.l.s4 1987475062
    %v4016 = vunpack.c.0.s8 %v4015
    %v4017 = vlaneseq
    %v4018 = vshrl.u32 %v4017, 7
    %v4019 = vsub.s32 %v4016, %v4018
    %v4020 = vrot.slane %v2289, %v4019
    %v4022 = vunpack.c.l.s4 269488144
    %v4023 = vunpack.c.0.s8 %v4022
    %v4024 = vlaneseq
    %v4025 = vshrl.u32 %v4024, 7
    %v4026 = vsub.s32 %v4023, %v4025
    %v4027 = vrot.slane %v2292, %v4026
    %v4029 = vunpack.c.l.s4 842150450
    %v4030 = vunpack.c.0.s8 %v4029
    %v4031 = vlaneseq
    %v4032 = vshrl.u32 %v4031, 7
    %v4033 = vsub.s32 %v4030, %v4032
    %v4034 = vrot.slane %v2292, %v4033
    %v4036 = vunpack.c.l.s4 1414812756
    %v4037 = vunpack.c.0.s8 %v4036
    %v4038 = vlaneseq
    %v4039 = vshrl.u32 %v4038, 7
    %v4040 = vsub.s32 %v4037, %v4039
    %v4041 = vrot.slane %v2292, %v4040
    %v4043 = vunpack.c.l.s4 1987475062
    %v4044 = vunpack.c.0.s8 %v4043
    %v4045 = vlaneseq
    %v4046 = vshrl.u32 %v4045, 7
    %v4047 = vsub.s32 %v4044, %v4046
    %v4048 = vrot.slane %v2292, %v4047
    %v4050 = vunpack.c.l.s4 269488144
    %v4051 = vunpack.c.0.s8 %v4050
    %v4052 = vlaneseq
    %v4053 = vshrl.u32 %v4052, 7
    %v4054 = vsub.s32 %v4051, %v4053
    %v4055 = vrot.slane %v2295, %v4054
    %v4057 = vunpack.c.l.s4 842150450
    %v4058 = vunpack.c.0.s8 %v4057
    %v4059 = vlaneseq
    %v4060 = vshrl.u32 %v4059, 7
    %v4061 = vsub.s32 %v4058, %v4060
    %v4062 = vrot.slane %v2295, %v4061
    %v4064 = vunpack.c.l.s4 1414812756
    %v4065 = vunpack.c.0.s8 %v4064
    %v4066 = vlaneseq
    %v4067 = vshrl.u32 %v4066, 7
    %v4068 = vsub.s32 %v4065, %v4067
    %v4069 = vrot.slane %v2295, %v4068
    %v4071 = vunpack.c.l.s4 1987475062
    %v4072 = vunpack.c.0.s8 %v4071
    %v4073 = vlaneseq
    %v4074 = vshrl.u32 %v4073, 7
    %v4075 = vsub.s32 %v4072, %v4074
    %v4076 = vrot.slane %v2295, %v4075
    %v4078 = vunpack.c.l.s4 269488144
    %v4079 = vunpack.c.0.s8 %v4078
    %v4080 = vlaneseq
    %v4081 = vshrl.u32 %v4080, 7
    %v4082 = vsub.s32 %v4079, %v4081
    %v4083 = vrot.slane %v2298, %v4082
    %v4085 = vunpack.c.l.s4 842150450
    %v4086 = vunpack.c.0.s8 %v4085
    %v4087 = vlaneseq
    %v4088 = vshrl.u32 %v4087, 7
    %v4089 = vsub.s32 %v4086, %v4088
    %v4090 = vrot.slane %v2298, %v4089
    %v4092 = vunpack.c.l.s4 1414812756
    %v4093 = vunpack.c.0.s8 %v4092
    %v4094 = vlaneseq
    %v4095 = vshrl.u32 %v4094, 7
    %v4096 = vsub.s32 %v4093, %v4095
    %v4097 = vrot.slane %v2298, %v4096
    %v4099 = vunpack.c.l.s4 1987475062
    %v4100 = vunpack.c.0.s8 %v4099
    %v4101 = vlaneseq
    %v4102 = vshrl.u32 %v4101, 7
    %v4103 = vsub.s32 %v4100, %v4102
    %v4104 = vrot.slane %v2298, %v4103
    %v4106 = vunpack.c.l.s4 269488144
    %v4107 = vunpack.c.0.s8 %v4106
    %v4108 = vlaneseq
    %v4109 = vshrl.u32 %v4108, 7
    %v4110 = vsub.s32 %v4107, %v4109
    %v4111 = vrot.slane %v2301, %v4110
    %v4113 = vunpack.c.l.s4 842150450
    %v4114 = vunpack.c.0.s8 %v4113
    %v4115 = vlaneseq
    %v4116 = vshrl.u32 %v4115, 7
    %v4117 = vsub.s32 %v4114, %v4116
    %v4118 = vrot.slane %v2301, %v4117
    %v4120 = vunpack.c.l.s4 1414812756
    %v4121 = vunpack.c.0.s8 %v4120
    %v4122 = vlaneseq
    %v4123 = vshrl.u32 %v4122, 7
    %v4124 = vsub.s32 %v4121, %v4123
    %v4125 = vrot.slane %v2301, %v4124
    %v4127 = vunpack.c.l.s4 1987475062
    %v4128 = vunpack.c.0.s8 %v4127
    %v4129 = vlaneseq
    %v4130 = vshrl.u32 %v4129, 7
    %v4131 = vsub.s32 %v4128, %v4130
    %v4132 = vrot.slane %v2301, %v4131
    %v4134 = vunpack.c.l.s4 269488144
    %v4135 = vunpack.c.0.s8 %v4134
    %v4136 = vlaneseq
    %v4137 = vshrl.u32 %v4136, 7
    %v4138 = vsub.s32 %v4135, %v4137
    %v4139 = vrot.slane %v2304, %v4138
    %v4141 = vunpack.c.l.s4 842150450
    %v4142 = vunpack.c.0.s8 %v4141
    %v4143 = vlaneseq
    %v4144 = vshrl.u32 %v4143, 7
    %v4145 = vsub.s32 %v4142, %v4144
    %v4146 = vrot.slane %v2304, %v4145
    %v4148 = vunpack.c.l.s4 1414812756
    %v4149 = vunpack.c.0.s8 %v4148
    %v4150 = vlaneseq
    %v4151 = vshrl.u32 %v4150, 7
    %v4152 = vsub.s32 %v4149, %v4151
    %v4153 = vrot.slane %v2304, %v4152
    %v4155 = vunpack.c.l.s4 1987475062
    %v4156 = vunpack.c.0.s8 %v4155
    %v4157 = vlaneseq
    %v4158 = vshrl.u32 %v4157, 7
    %v4159 = vsub.s32 %v4156, %v4158
    %v4160 = vrot.slane %v2304, %v4159
    %v4161 = vcombine.low %v2375, %v2382
    %v4162 = vcombine.low %v2389, %v2396
    %v4164 = vunpack.c.l.s4 1983009808
    %v4165 = vunpack.c.0.s8 %v4164
    %v4166 = vlaneseq
    %v4167 = vshrl.u32 %v4166, 7
    %v4168 = vsub.s32 %v4165, %v4167
    %v4169 = vrot.slane %v4161, %v4168
    %v4171 = vunpack.c.l.s4 1983009808
    %v4172 = vunpack.c.0.s8 %v4171
    %v4173 = vlaneseq
    %v4174 = vshrl.u32 %v4173, 7
    %v4175 = vsub.s32 %v4172, %v4174
    %v4176 = vrot.slane %v4162, %v4175
    %v4177 = vcombine.low %v4169, %v4176
    %v4178 = vcombine.low %v2403, %v2410
    %v4179 = vcombine.low %v2417, %v2424
    %v4181 = vunpack.c.l.s4 1983009808
    %v4182 = vunpack.c.0.s8 %v4181
    %v4183 = vlaneseq
    %v4184 = vshrl.u32 %v4183, 7
    %v4185 = vsub.s32 %v4182, %v4184
    %v4186 = vrot.slane %v4178, %v4185
    %v4188 = vunpack.c.l.s4 1983009808
    %v4189 = vunpack.c.0.s8 %v4188
    %v4190 = vlaneseq
    %v4191 = vshrl.u32 %v4190, 7
    %v4192 = vsub.s32 %v4189, %v4191
    %v4193 = vrot.slane %v4179, %v4192
    %v4194 = vcombine.low %v4186, %v4193
    %v4195 = vcombine.low %v2431, %v2438
    %v4196 = vcombine.low %v2445, %v2452
    %v4198 = vunpack.c.l.s4 1983009808
    %v4199 = vunpack.c.0.s8 %v4198
    %v4200 = vlaneseq
    %v4201 = vshrl.u32 %v4200, 7
    %v4202 = vsub.s32 %v4199, %v4201
    %v4203 = vrot.slane %v4195, %v4202
    %v4205 = vunpack.c.l.s4 1983009808
    %v4206 = vunpack.c.0.s8 %v4205
    %v4207 = vlaneseq
    %v4208 = vshrl.u32 %v4207, 7
    %v4209 = vsub.s32 %v4206, %v4208
    %v4210 = vrot.slane %v4196, %v4209
    %v4211 = vcombine.low %v4203, %v4210
    %v4212 = vcombine.low %v2459, %v2466
    %v4213 = vcombine.low %v2473, %v2480
    %v4215 = vunpack.c.l.s4 1983009808
    %v4216 = vunpack.c.0.s8 %v4215
    %v4217 = vlaneseq
    %v4218 = vshrl.u32 %v4217, 7
    %v4219 = vsub.s32 %v4216, %v4218
    %v4220 = vrot.slane %v4212, %v4219
    %v4222 = vunpack.c.l.s4 1983009808
    %v4223 = vunpack.c.0.s8 %v4222
    %v4224 = vlaneseq
    %v4225 = vshrl.u32 %v4224, 7
    %v4226 = vsub.s32 %v4223, %v4225
    %v4227 = vrot.slane %v4213, %v4226
    %v4228 = vcombine.low %v4220, %v4227
    %v4229 = vcombine.low %v2487, %v2494
    %v4230 = vcombine.low %v2501, %v2508
    %v4232 = vunpack.c.l.s4 1983009808
    %v4233 = vunpack.c.0.s8 %v4232
    %v4234 = vlaneseq
    %v4235 = vshrl.u32 %v4234, 7
    %v4236 = vsub.s32 %v4233, %v4235
    %v4237 = vrot.slane %v4229, %v4236
    %v4239 = vunpack.c.l.s4 1983009808
    %v4240 = vunpack.c.0.s8 %v4239
    %v4241 = vlaneseq
    %v4242 = vshrl.u32 %v4241, 7
    %v4243 = vsub.s32 %v4240, %v4242
    %v4244 = vrot.slane %v4230, %v4243
    %v4245 = vcombine.low %v4237, %v4244
    %v4246 = vcombine.low %v2515, %v2522
    %v4247 = vcombine.low %v2529, %v2536
    %v4249 = vunpack.c.l.s4 1983009808
    %v4250 = vunpack.c.0.s8 %v4249
    %v4251 = vlaneseq
    %v4252 = vshrl.u32 %v4251, 7
    %v4253 = vsub.s32 %v4250, %v4252
    %v4254 = vrot.slane %v4246, %v4253
    %v4256 = vunpack.c.l.s4 1983009808
    %v4257 = vunpack.c.0.s8 %v4256
    %v4258 = vlaneseq
    %v4259 = vshrl.u32 %v4258, 7
    %v4260 = vsub.s32 %v4257, %v4259
    %v4261 = vrot.slane %v4247, %v4260
    %v4262 = vcombine.low %v4254, %v4261
    %v4263 = vcombine.low %v2543, %v2550
    %v4264 = vcombine.low %v2557, %v2564
    %v4266 = vunpack.c.l.s4 1983009808
    %v4267 = vunpack.c.0.s8 %v4266
    %v4268 = vlaneseq
    %v4269 = vshrl.u32 %v4268, 7
    %v4270 = vsub.s32 %v4267, %v4269
    %v4271 = vrot.slane %v4263, %v4270
    %v4273 = vunpack.c.l.s4 1983009808
    %v4274 = vunpack.c.0.s8 %v4273
    %v4275 = vlaneseq
    %v4276 = vshrl.u32 %v4275, 7
    %v4277 = vsub.s32 %v4274, %v4276
    %v4278 = vrot.slane %v4264, %v4277
    %v4279 = vcombine.low %v4271, %v4278
    %v4280 = vcombine.low %v2571, %v2578
    %v4281 = vcombine.low %v2585, %v2592
    %v4283 = vunpack.c.l.s4 1983009808
    %v4284 = vunpack.c.0.s8 %v4283
    %v4285 = vlaneseq
    %v4286 = vshrl.u32 %v4285, 7
    %v4287 = vsub.s32 %v4284, %v4286
    %v4288 = vrot.slane %v4280, %v4287
    %v4290 = vunpack.c.l.s4 1983009808
    %v4291 = vunpack.c.0.s8 %v4290
    %v4292 = vlaneseq
    %v4293 = vshrl.u32 %v4292, 7
    %v4294 = vsub.s32 %v4291, %v4293
    %v4295 = vrot.slane %v4281, %v4294
    %v4296 = vcombine.low %v4288, %v4295
    %v4297 = vcombine.low %v2599, %v2606
    %v4298 = vcombine.low %v2613, %v2620
    %v4300 = vunpack.c.l.s4 1983009808
    %v4301 = vunpack.c.0.s8 %v4300
    %v4302 = vlaneseq
    %v4303 = vshrl.u32 %v4302, 7
    %v4304 = vsub.s32 %v4301, %v4303
    %v4305 = vrot.slane %v4297, %v4304
    %v4307 = vunpack.c.l.s4 1983009808
    %v4308 = vunpack.c.0.s8 %v4307
    %v4309 = vlaneseq
    %v4310 = vshrl.u32 %v4309, 7
    %v4311 = vsub.s32 %v4308, %v4310
    %v4312 = vrot.slane %v4298, %v4311
    %v4313 = vcombine.low %v4305, %v4312
    %v4314 = vcombine.low %v2627, %v2634
    %v4315 = vcombine.low %v2641, %v2648
    %v4317 = vunpack.c.l.s4 1983009808
    %v4318 = vunpack.c.0.s8 %v4317
    %v4319 = vlaneseq
    %v4320 = vshrl.u32 %v4319, 7
    %v4321 = vsub.s32 %v4318, %v4320
    %v4322 = vrot.slane %v4314, %v4321
    %v4324 = vunpack.c.l.s4 1983009808
    %v4325 = vunpack.c.0.s8 %v4324
    %v4326 = vlaneseq
    %v4327 = vshrl.u32 %v4326, 7
    %v4328 = vsub.s32 %v4325, %v4327
    %v4329 = vrot.slane %v4315, %v4328
    %v4330 = vcombine.low %v4322, %v4329
    %v4331 = vcombine.low %v2655, %v2662
    %v4332 = vcombine.low %v2669, %v2676
    %v4334 = vunpack.c.l.s4 1983009808
    %v4335 = vunpack.c.0.s8 %v4334
    %v4336 = vlaneseq
    %v4337 = vshrl.u32 %v4336, 7
    %v4338 = vsub.s32 %v4335, %v4337
    %v4339 = vrot.slane %v4331, %v4338
    %v4341 = vunpack.c.l.s4 1983009808
    %v4342 = vunpack.c.0.s8 %v4341
    %v4343 = vlaneseq
    %v4344 = vshrl.u32 %v4343, 7
    %v4345 = vsub.s32 %v4342, %v4344
    %v4346 = vrot.slane %v4332, %v4345
    %v4347 = vcombine.low %v4339, %v4346
    %v4348 = vcombine.low %v2683, %v2690
    %v4349 = vcombine.low %v2697, %v2704
    %v4351 = vunpack.c.l.s4 1983009808
    %v4352 = vunpack.c.0.s8 %v4351
    %v4353 = vlaneseq
    %v4354 = vshrl.u32 %v4353, 7
    %v4355 = vsub.s32 %v4352, %v4354
    %v4356 = vrot.slane %v4348, %v4355
    %v4358 = vunpack.c.l.s4 1983009808
    %v4359 = vunpack.c.0.s8 %v4358
    %v4360 = vlaneseq
    %v4361 = vshrl.u32 %v4360, 7
    %v4362 = vsub.s32 %v4359, %v4361
    %v4363 = vrot.slane %v4349, %v4362
    %v4364 = vcombine.low %v4356, %v4363
    %v4365 = vcombine.low %v2711, %v2718
    %v4366 = vcombine.low %v2725, %v2732
    %v4368 = vunpack.c.l.s4 1983009808
    %v4369 = vunpack.c.0.s8 %v4368
    %v4370 = vlaneseq
    %v4371 = vshrl.u32 %v4370, 7
    %v4372 = vsub.s32 %v4369, %v4371
    %v4373 = vrot.slane %v4365, %v4372
    %v4375 = vunpack.c.l.s4 1983009808
    %v4376 = vunpack.c.0.s8 %v4375
    %v4377 = vlaneseq
    %v4378 = vshrl.u32 %v4377, 7
    %v4379 = vsub.s32 %v4376, %v4378
    %v4380 = vrot.slane %v4366, %v4379
    %v4381 = vcombine.low %v4373, %v4380
    %v4382 = vcombine.low %v2739, %v2746
    %v4383 = vcombine.low %v2753, %v2760
    %v4385 = vunpack.c.l.s4 1983009808
    %v4386 = vunpack.c.0.s8 %v4385
    %v4387 = vlaneseq
    %v4388 = vshrl.u32 %v4387, 7
    %v4389 = vsub.s32 %v4386, %v4388
    %v4390 = vrot.slane %v4382, %v4389
    %v4392 = vunpack.c.l.s4 1983009808
    %v4393 = vunpack.c.0.s8 %v4392
    %v4394 = vlaneseq
    %v4395 = vshrl.u32 %v4394, 7
    %v4396 = vsub.s32 %v4393, %v4395
    %v4397 = vrot.slane %v4383, %v4396
    %v4398 = vcombine.low %v4390, %v4397
    %v4399 = vcombine.low %v2767, %v2774
    %v4400 = vcombine.low %v2781, %v2788
    %v4402 = vunpack.c.l.s4 1983009808
    %v4403 = vunpack.c.0.s8 %v4402
    %v4404 = vlaneseq
    %v4405 = vshrl.u32 %v4404, 7
    %v4406 = vsub.s32 %v4403, %v4405
    %v4407 = vrot.slane %v4399, %v4406
    %v4409 = vunpack.c.l.s4 1983009808
    %v4410 = vunpack.c.0.s8 %v4409
    %v4411 = vlaneseq
    %v4412 = vshrl.u32 %v4411, 7
    %v4413 = vsub.s32 %v4410, %v4412
    %v4414 = vrot.slane %v4400, %v4413
    %v4415 = vcombine.low %v4407, %v4414
    %v4416 = vcombine.low %v2795, %v2802
    %v4417 = vcombine.low %v2809, %v2816
    %v4419 = vunpack.c.l.s4 1983009808
    %v4420 = vunpack.c.0.s8 %v4419
    %v4421 = vlaneseq
    %v4422 = vshrl.u32 %v4421, 7
    %v4423 = vsub.s32 %v4420, %v4422
    %v4424 = vrot.slane %v4416, %v4423
    %v4426 = vunpack.c.l.s4 1983009808
    %v4427 = vunpack.c.0.s8 %v4426
    %v4428 = vlaneseq
    %v4429 = vshrl.u32 %v4428, 7
    %v4430 = vsub.s32 %v4427, %v4429
    %v4431 = vrot.slane %v4417, %v4430
    %v4432 = vcombine.low %v4424, %v4431
    %v4433 = vcombine.low %v2823, %v2830
    %v4434 = vcombine.low %v2837, %v2844
    %v4436 = vunpack.c.l.s4 1983009808
    %v4437 = vunpack.c.0.s8 %v4436
    %v4438 = vlaneseq
    %v4439 = vshrl.u32 %v4438, 7
    %v4440 = vsub.s32 %v4437, %v4439
    %v4441 = vrot.slane %v4433, %v4440
    %v4443 = vunpack.c.l.s4 1983009808
    %v4444 = vunpack.c.0.s8 %v4443
    %v4445 = vlaneseq
    %v4446 = vshrl.u32 %v4445, 7
    %v4447 = vsub.s32 %v4444, %v4446
    %v4448 = vrot.slane %v4434, %v4447
    %v4449 = vcombine.low %v4441, %v4448
    %v4450 = vcombine.low %v2851, %v2858
    %v4451 = vcombine.low %v2865, %v2872
    %v4453 = vunpack.c.l.s4 1983009808
    %v4454 = vunpack.c.0.s8 %v4453
    %v4455 = vlaneseq
    %v4456 = vshrl.u32 %v4455, 7
    %v4457 = vsub.s32 %v4454, %v4456
    %v4458 = vrot.slane %v4450, %v4457
    %v4460 = vunpack.c.l.s4 1983009808
    %v4461 = vunpack.c.0.s8 %v4460
    %v4462 = vlaneseq
    %v4463 = vshrl.u32 %v4462, 7
    %v4464 = vsub.s32 %v4461, %v4463
    %v4465 = vrot.slane %v4451, %v4464
    %v4466 = vcombine.low %v4458, %v4465
    %v4467 = vcombine.low %v2879, %v2886
    %v4468 = vcombine.low %v2893, %v2900
    %v4470 = vunpack.c.l.s4 1983009808
    %v4471 = vunpack.c.0.s8 %v4470
    %v4472 = vlaneseq
    %v4473 = vshrl.u32 %v4472, 7
    %v4474 = vsub.s32 %v4471, %v4473
    %v4475 = vrot.slane %v4467, %v4474
    %v4477 = vunpack.c.l.s4 1983009808
    %v4478 = vunpack.c.0.s8 %v4477
    %v4479 = vlaneseq
    %v4480 = vshrl.u32 %v4479, 7
    %v4481 = vsub.s32 %v4478, %v4480
    %v4482 = vrot.slane %v4468, %v4481
    %v4483 = vcombine.low %v4475, %v4482
    %v4484 = vcombine.low %v2907, %v2914
    %v4485 = vcombine.low %v2921, %v2928
    %v4487 = vunpack.c.l.s4 1983009808
    %v4488 = vunpack.c.0.s8 %v4487
    %v4489 = vlaneseq
    %v4490 = vshrl.u32 %v4489, 7
    %v4491 = vsub.s32 %v4488, %v4490
    %v4492 = vrot.slane %v4484, %v4491
    %v4494 = vunpack.c.l.s4 1983009808
    %v4495 = vunpack.c.0.s8 %v4494
    %v4496 = vlaneseq
    %v4497 = vshrl.u32 %v4496, 7
    %v4498 = vsub.s32 %v4495, %v4497
    %v4499 = vrot.slane %v4485, %v4498
    %v4500 = vcombine.low %v4492, %v4499
    %v4501 = vcombine.low %v2935, %v2942
    %v4502 = vcombine.low %v2949, %v2956
    %v4504 = vunpack.c.l.s4 1983009808
    %v4505 = vunpack.c.0.s8 %v4504
    %v4506 = vlaneseq
    %v4507 = vshrl.u32 %v4506, 7
    %v4508 = vsub.s32 %v4505, %v4507
    %v4509 = vrot.slane %v4501, %v4508
    %v4511 = vunpack.c.l.s4 1983009808
    %v4512 = vunpack.c.0.s8 %v4511
    %v4513 = vlaneseq
    %v4514 = vshrl.u32 %v4513, 7
    %v4515 = vsub.s32 %v4512, %v4514
    %v4516 = vrot.slane %v4502, %v4515
    %v4517 = vcombine.low %v4509, %v4516
    %v4518 = vcombine.low %v2963, %v2970
    %v4519 = vcombine.low %v2977, %v2984
    %v4521 = vunpack.c.l.s4 1983009808
    %v4522 = vunpack.c.0.s8 %v4521
    %v4523 = vlaneseq
    %v4524 = vshrl.u32 %v4523, 7
    %v4525 = vsub.s32 %v4522, %v4524
    %v4526 = vrot.slane %v4518, %v4525
    %v4528 = vunpack.c.l.s4 1983009808
    %v4529 = vunpack.c.0.s8 %v4528
    %v4530 = vlaneseq
    %v4531 = vshrl.u32 %v4530, 7
    %v4532 = vsub.s32 %v4529, %v4531
    %v4533 = vrot.slane %v4519, %v4532
    %v4534 = vcombine.low %v4526, %v4533
    %v4535 = vcombine.low %v2991, %v2998
    %v4536 = vcombine.low %v3005, %v3012
    %v4538 = vunpack.c.l.s4 1983009808
    %v4539 = vunpack.c.0.s8 %v4538
    %v4540 = vlaneseq
    %v4541 = vshrl.u32 %v4540, 7
    %v4542 = vsub.s32 %v4539, %v4541
    %v4543 = vrot.slane %v4535, %v4542
    %v4545 = vunpack.c.l.s4 1983009808
    %v4546 = vunpack.c.0.s8 %v4545
    %v4547 = vlaneseq
    %v4548 = vshrl.u32 %v4547, 7
    %v4549 = vsub.s32 %v4546, %v4548
    %v4550 = vrot.slane %v4536, %v4549
    %v4551 = vcombine.low %v4543, %v4550
    %v4552 = vcombine.low %v3019, %v3026
    %v4553 = vcombine.low %v3033, %v3040
    %v4555 = vunpack.c.l.s4 1983009808
    %v4556 = vunpack.c.0.s8 %v4555
    %v4557 = vlaneseq
    %v4558 = vshrl.u32 %v4557, 7
    %v4559 = vsub.s32 %v4556, %v4558
    %v4560 = vrot.slane %v4552, %v4559
    %v4562 = vunpack.c.l.s4 1983009808
    %v4563 = vunpack.c.0.s8 %v4562
    %v4564 = vlaneseq
    %v4565 = vshrl.u32 %v4564, 7
    %v4566 = vsub.s32 %v4563, %v4565
    %v4567 = vrot.slane %v4553, %v4566
    %v4568 = vcombine.low %v4560, %v4567
    %v4569 = vcombine.low %v3047, %v3054
    %v4570 = vcombine.low %v3061, %v3068
    %v4572 = vunpack.c.l.s4 1983009808
    %v4573 = vunpack.c.0.s8 %v4572
    %v4574 = vlaneseq
    %v4575 = vshrl.u32 %v4574, 7
    %v4576 = vsub.s32 %v4573, %v4575
    %v4577 = vrot.slane %v4569, %v4576
    %v4579 = vunpack.c.l.s4 1983009808
    %v4580 = vunpack.c.0.s8 %v4579
    %v4581 = vlaneseq
    %v4582 = vshrl.u32 %v4581, 7
    %v4583 = vsub.s32 %v4580, %v4582
    %v4584 = vrot.slane %v4570, %v4583
    %v4585 = vcombine.low %v4577, %v4584
    %v4586 = vcombine.low %v3075, %v3082
    %v4587 = vcombine.low %v3089, %v3096
    %v4589 = vunpack.c.l.s4 1983009808
    %v4590 = vunpack.c.0.s8 %v4589
    %v4591 = vlaneseq
    %v4592 = vshrl.u32 %v4591, 7
    %v4593 = vsub.s32 %v4590, %v4592
    %v4594 = vrot.slane %v4586, %v4593
    %v4596 = vunpack.c.l.s4 1983009808
    %v4597 = vunpack.c.0.s8 %v4596
    %v4598 = vlaneseq
    %v4599 = vshrl.u32 %v4598, 7
    %v4600 = vsub.s32 %v4597, %v4599
    %v4601 = vrot.slane %v4587, %v4600
    %v4602 = vcombine.low %v4594, %v4601
    %v4603 = vcombine.low %v3103, %v3110
    %v4604 = vcombine.low %v3117, %v3124
    %v4606 = vunpack.c.l.s4 1983009808
    %v4607 = vunpack.c.0.s8 %v4606
    %v4608 = vlaneseq
    %v4609 = vshrl.u32 %v4608, 7
    %v4610 = vsub.s32 %v4607, %v4609
    %v4611 = vrot.slane %v4603, %v4610
    %v4613 = vunpack.c.l.s4 1983009808
    %v4614 = vunpack.c.0.s8 %v4613
    %v4615 = vlaneseq
    %v4616 = vshrl.u32 %v4615, 7
    %v4617 = vsub.s32 %v4614, %v4616
    %v4618 = vrot.slane %v4604, %v4617
    %v4619 = vcombine.low %v4611, %v4618
    %v4620 = vcombine.low %v3131, %v3138
    %v4621 = vcombine.low %v3145, %v3152
    %v4623 = vunpack.c.l.s4 1983009808
    %v4624 = vunpack.c.0.s8 %v4623
    %v4625 = vlaneseq
    %v4626 = vshrl.u32 %v4625, 7
    %v4627 = vsub.s32 %v4624, %v4626
    %v4628 = vrot.slane %v4620, %v4627
    %v4630 = vunpack.c.l.s4 1983009808
    %v4631 = vunpack.c.0.s8 %v4630
    %v4632 = vlaneseq
    %v4633 = vshrl.u32 %v4632, 7
    %v4634 = vsub.s32 %v4631, %v4633
    %v4635 = vrot.slane %v4621, %v4634
    %v4636 = vcombine.low %v4628, %v4635
    %v4637 = vcombine.low %v3159, %v3166
    %v4638 = vcombine.low %v3173, %v3180
    %v4640 = vunpack.c.l.s4 1983009808
    %v4641 = vunpack.c.0.s8 %v4640
    %v4642 = vlaneseq
    %v4643 = vshrl.u32 %v4642, 7
    %v4644 = vsub.s32 %v4641, %v4643
    %v4645 = vrot.slane %v4637, %v4644
    %v4647 = vunpack.c.l.s4 1983009808
    %v4648 = vunpack.c.0.s8 %v4647
    %v4649 = vlaneseq
    %v4650 = vshrl.u32 %v4649, 7
    %v4651 = vsub.s32 %v4648, %v4650
    %v4652 = vrot.slane %v4638, %v4651
    %v4653 = vcombine.low %v4645, %v4652
    %v4654 = vcombine.low %v3187, %v3194
    %v4655 = vcombine.low %v3201, %v3208
    %v4657 = vunpack.c.l.s4 1983009808
    %v4658 = vunpack.c.0.s8 %v4657
    %v4659 = vlaneseq
    %v4660 = vshrl.u32 %v4659, 7
    %v4661 = vsub.s32 %v4658, %v4660
    %v4662 = vrot.slane %v4654, %v4661
    %v4664 = vunpack.c.l.s4 1983009808
    %v4665 = vunpack.c.0.s8 %v4664
    %v4666 = vlaneseq
    %v4667 = vshrl.u32 %v4666, 7
    %v4668 = vsub.s32 %v4665, %v4667
    %v4669 = vrot.slane %v4655, %v4668
    %v4670 = vcombine.low %v4662, %v4669
    %v4671 = vcombine.low %v3215, %v3222
    %v4672 = vcombine.low %v3229, %v3236
    %v4674 = vunpack.c.l.s4 1983009808
    %v4675 = vunpack.c.0.s8 %v4674
    %v4676 = vlaneseq
    %v4677 = vshrl.u32 %v4676, 7
    %v4678 = vsub.s32 %v4675, %v4677
    %v4679 = vrot.slane %v4671, %v4678
    %v4681 = vunpack.c.l.s4 1983009808
    %v4682 = vunpack.c.0.s8 %v4681
    %v4683 = vlaneseq
    %v4684 = vshrl.u32 %v4683, 7
    %v4685 = vsub.s32 %v4682, %v4684
    %v4686 = vrot.slane %v4672, %v4685
    %v4687 = vcombine.low %v4679, %v4686
    %v4688 = vcombine.low %v3243, %v3250
    %v4689 = vcombine.low %v3257, %v3264
    %v4691 = vunpack.c.l.s4 1983009808
    %v4692 = vunpack.c.0.s8 %v4691
    %v4693 = vlaneseq
    %v4694 = vshrl.u32 %v4693, 7
    %v4695 = vsub.s32 %v4692, %v4694
    %v4696 = vrot.slane %v4688, %v4695
    %v4698 = vunpack.c.l.s4 1983009808
    %v4699 = vunpack.c.0.s8 %v4698
    %v4700 = vlaneseq
    %v4701 = vshrl.u32 %v4700, 7
    %v4702 = vsub.s32 %v4699, %v4701
    %v4703 = vrot.slane %v4689, %v4702
    %v4704 = vcombine.low %v4696, %v4703
    %v4705 = vcombine.low %v3271, %v3278
    %v4706 = vcombine.low %v3285, %v3292
    %v4708 = vunpack.c.l.s4 1983009808
    %v4709 = vunpack.c.0.s8 %v4708
    %v4710 = vlaneseq
    %v4711 = vshrl.u32 %v4710, 7
    %v4712 = vsub.s32 %v4709, %v4711
    %v4713 = vrot.slane %v4705, %v4712
    %v4715 = vunpack.c.l.s4 1983009808
    %v4716 = vunpack.c.0.s8 %v4715
    %v4717 = vlaneseq
    %v4718 = vshrl.u32 %v4717, 7
    %v4719 = vsub.s32 %v4716, %v4718
    %v4720 = vrot.slane %v4706, %v4719
    %v4721 = vcombine.low %v4713, %v4720
    %v4722 = vcombine.low %v3299, %v3306
    %v4723 = vcombine.low %v3313, %v3320
    %v4725 = vunpack.c.l.s4 1983009808
    %v4726 = vunpack.c.0.s8 %v4725
    %v4727 = vlaneseq
    %v4728 = vshrl.u32 %v4727, 7
    %v4729 = vsub.s32 %v4726, %v4728
    %v4730 = vrot.slane %v4722, %v4729
    %v4732 = vunpack.c.l.s4 1983009808
    %v4733 = vunpack.c.0.s8 %v4732
    %v4734 = vlaneseq
    %v4735 = vshrl.u32 %v4734, 7
    %v4736 = vsub.s32 %v4733, %v4735
    %v4737 = vrot.slane %v4723, %v4736
    %v4738 = vcombine.low %v4730, %v4737
    %v4739 = vcombine.low %v3327, %v3334
    %v4740 = vcombine.low %v3341, %v3348
    %v4742 = vunpack.c.l.s4 1983009808
    %v4743 = vunpack.c.0.s8 %v4742
    %v4744 = vlaneseq
    %v4745 = vshrl.u32 %v4744, 7
    %v4746 = vsub.s32 %v4743, %v4745
    %v4747 = vrot.slane %v4739, %v4746
    %v4749 = vunpack.c.l.s4 1983009808
    %v4750 = vunpack.c.0.s8 %v4749
    %v4751 = vlaneseq
    %v4752 = vshrl.u32 %v4751, 7
    %v4753 = vsub.s32 %v4750, %v4752
    %v4754 = vrot.slane %v4740, %v4753
    %v4755 = vcombine.low %v4747, %v4754
    %v4756 = vcombine.low %v3355, %v3362
    %v4757 = vcombine.low %v3369, %v3376
    %v4759 = vunpack.c.l.s4 1983009808
    %v4760 = vunpack.c.0.s8 %v4759
    %v4761 = vlaneseq
    %v4762 = vshrl.u32 %v4761, 7
    %v4763 = vsub.s32 %v4760, %v4762
    %v4764 = vrot.slane %v4756, %v4763
    %v4766 = vunpack.c.l.s4 1983009808
    %v4767 = vunpack.c.0.s8 %v4766
    %v4768 = vlaneseq
    %v4769 = vshrl.u32 %v4768, 7
    %v4770 = vsub.s32 %v4767, %v4769
    %v4771 = vrot.slane %v4757, %v4770
    %v4772 = vcombine.low %v4764, %v4771
    %v4773 = vcombine.low %v3383, %v3390
    %v4774 = vcombine.low %v3397, %v3404
    %v4776 = vunpack.c.l.s4 1983009808
    %v4777 = vunpack.c.0.s8 %v4776
    %v4778 = vlaneseq
    %v4779 = vshrl.u32 %v4778, 7
    %v4780 = vsub.s32 %v4777, %v4779
    %v4781 = vrot.slane %v4773, %v4780
    %v4783 = vunpack.c.l.s4 1983009808
    %v4784 = vunpack.c.0.s8 %v4783
    %v4785 = vlaneseq
    %v4786 = vshrl.u32 %v4785, 7
    %v4787 = vsub.s32 %v4784, %v4786
    %v4788 = vrot.slane %v4774, %v4787
    %v4789 = vcombine.low %v4781, %v4788
    %v4790 = vcombine.low %v3411, %v3418
    %v4791 = vcombine.low %v3425, %v3432
    %v4793 = vunpack.c.l.s4 1983009808
    %v4794 = vunpack.c.0.s8 %v4793
    %v4795 = vlaneseq
    %v4796 = vshrl.u32 %v4795, 7
    %v4797 = vsub.s32 %v4794, %v4796
    %v4798 = vrot.slane %v4790, %v4797
    %v4800 = vunpack.c.l.s4 1983009808
    %v4801 = vunpack.c.0.s8 %v4800
    %v4802 = vlaneseq
    %v4803 = vshrl.u32 %v4802, 7
    %v4804 = vsub.s32 %v4801, %v4803
    %v4805 = vrot.slane %v4791, %v4804
    %v4806 = vcombine.low %v4798, %v4805
    %v4807 = vcombine.low %v3439, %v3446
    %v4808 = vcombine.low %v3453, %v3460
    %v4810 = vunpack.c.l.s4 1983009808
    %v4811 = vunpack.c.0.s8 %v4810
    %v4812 = vlaneseq
    %v4813 = vshrl.u32 %v4812, 7
    %v4814 = vsub.s32 %v4811, %v4813
    %v4815 = vrot.slane %v4807, %v4814
    %v4817 = vunpack.c.l.s4 1983009808
    %v4818 = vunpack.c.0.s8 %v4817
    %v4819 = vlaneseq
    %v4820 = vshrl.u32 %v4819, 7
    %v4821 = vsub.s32 %v4818, %v4820
    %v4822 = vrot.slane %v4808, %v4821
    %v4823 = vcombine.low %v4815, %v4822
    %v4824 = vcombine.low %v3467, %v3474
    %v4825 = vcombine.low %v3481, %v3488
    %v4827 = vunpack.c.l.s4 1983009808
    %v4828 = vunpack.c.0.s8 %v4827
    %v4829 = vlaneseq
    %v4830 = vshrl.u32 %v4829, 7
    %v4831 = vsub.s32 %v4828, %v4830
    %v4832 = vrot.slane %v4824, %v4831
    %v4834 = vunpack.c.l.s4 1983009808
    %v4835 = vunpack.c.0.s8 %v4834
    %v4836 = vlaneseq
    %v4837 = vshrl.u32 %v4836, 7
    %v4838 = vsub.s32 %v4835, %v4837
    %v4839 = vrot.slane %v4825, %v4838
    %v4840 = vcombine.low %v4832, %v4839
    %v4841 = vcombine.low %v3495, %v3502
    %v4842 = vcombine.low %v3509, %v3516
    %v4844 = vunpack.c.l.s4 1983009808
    %v4845 = vunpack.c.0.s8 %v4844
    %v4846 = vlaneseq
    %v4847 = vshrl.u32 %v4846, 7
    %v4848 = vsub.s32 %v4845, %v4847
    %v4849 = vrot.slane %v4841, %v4848
    %v4851 = vunpack.c.l.s4 1983009808
    %v4852 = vunpack.c.0.s8 %v4851
    %v4853 = vlaneseq
    %v4854 = vshrl.u32 %v4853, 7
    %v4855 = vsub.s32 %v4852, %v4854
    %v4856 = vrot.slane %v4842, %v4855
    %v4857 = vcombine.low %v4849, %v4856
    %v4858 = vcombine.low %v3523, %v3530
    %v4859 = vcombine.low %v3537, %v3544
    %v4861 = vunpack.c.l.s4 1983009808
    %v4862 = vunpack.c.0.s8 %v4861
    %v4863 = vlaneseq
    %v4864 = vshrl.u32 %v4863, 7
    %v4865 = vsub.s32 %v4862, %v4864
    %v4866 = vrot.slane %v4858, %v4865
    %v4868 = vunpack.c.l.s4 1983009808
    %v4869 = vunpack.c.0.s8 %v4868
    %v4870 = vlaneseq
    %v4871 = vshrl.u32 %v4870, 7
    %v4872 = vsub.s32 %v4869, %v4871
    %v4873 = vrot.slane %v4859, %v4872
    %v4874 = vcombine.low %v4866, %v4873
    %v4875 = vcombine.low %v3551, %v3558
    %v4876 = vcombine.low %v3565, %v3572
    %v4878 = vunpack.c.l.s4 1983009808
    %v4879 = vunpack.c.0.s8 %v4878
    %v4880 = vlaneseq
    %v4881 = vshrl.u32 %v4880, 7
    %v4882 = vsub.s32 %v4879, %v4881
    %v4883 = vrot.slane %v4875, %v4882
    %v4885 = vunpack.c.l.s4 1983009808
    %v4886 = vunpack.c.0.s8 %v4885
    %v4887 = vlaneseq
    %v4888 = vshrl.u32 %v4887, 7
    %v4889 = vsub.s32 %v4886, %v4888
    %v4890 = vrot.slane %v4876, %v4889
    %v4891 = vcombine.low %v4883, %v4890
    %v4892 = vcombine.low %v3579, %v3586
    %v4893 = vcombine.low %v3593, %v3600
    %v4895 = vunpack.c.l.s4 1983009808
    %v4896 = vunpack.c.0.s8 %v4895
    %v4897 = vlaneseq
    %v4898 = vshrl.u32 %v4897, 7
    %v4899 = vsub.s32 %v4896, %v4898
    %v4900 = vrot.slane %v4892, %v4899
    %v4902 = vunpack.c.l.s4 1983009808
    %v4903 = vunpack.c.0.s8 %v4902
    %v4904 = vlaneseq
    %v4905 = vshrl.u32 %v4904, 7
    %v4906 = vsub.s32 %v4903, %v4905
    %v4907 = vrot.slane %v4893, %v4906
    %v4908 = vcombine.low %v4900, %v4907
    %v4909 = vcombine.low %v3607, %v3614
    %v4910 = vcombine.low %v3621, %v3628
    %v4912 = vunpack.c.l.s4 1983009808
    %v4913 = vunpack.c.0.s8 %v4912
    %v4914 = vlaneseq
    %v4915 = vshrl.u32 %v4914, 7
    %v4916 = vsub.s32 %v4913, %v4915
    %v4917 = vrot.slane %v4909, %v4916
    %v4919 = vunpack.c.l.s4 1983009808
    %v4920 = vunpack.c.0.s8 %v4919
    %v4921 = vlaneseq
    %v4922 = vshrl.u32 %v4921, 7
    %v4923 = vsub.s32 %v4920, %v4922
    %v4924 = vrot.slane %v4910, %v4923
    %v4925 = vcombine.low %v4917, %v4924
    %v4926 = vcombine.low %v3635, %v3642
    %v4927 = vcombine.low %v3649, %v3656
    %v4929 = vunpack.c.l.s4 1983009808
    %v4930 = vunpack.c.0.s8 %v4929
    %v4931 = vlaneseq
    %v4932 = vshrl.u32 %v4931, 7
    %v4933 = vsub.s32 %v4930, %v4932
    %v4934 = vrot.slane %v4926, %v4933
    %v4936 = vunpack.c.l.s4 1983009808
    %v4937 = vunpack.c.0.s8 %v4936
    %v4938 = vlaneseq
    %v4939 = vshrl.u32 %v4938, 7
    %v4940 = vsub.s32 %v4937, %v4939
    %v4941 = vrot.slane %v4927, %v4940
    %v4942 = vcombine.low %v4934, %v4941
    %v4943 = vcombine.low %v3663, %v3670
    %v4944 = vcombine.low %v3677, %v3684
    %v4946 = vunpack.c.l.s4 1983009808
    %v4947 = vunpack.c.0.s8 %v4946
    %v4948 = vlaneseq
    %v4949 = vshrl.u32 %v4948, 7
    %v4950 = vsub.s32 %v4947, %v4949
    %v4951 = vrot.slane %v4943, %v4950
    %v4953 = vunpack.c.l.s4 1983009808
    %v4954 = vunpack.c.0.s8 %v4953
    %v4955 = vlaneseq
    %v4956 = vshrl.u32 %v4955, 7
    %v4957 = vsub.s32 %v4954, %v4956
    %v4958 = vrot.slane %v4944, %v4957
    %v4959 = vcombine.low %v4951, %v4958
    %v4960 = vcombine.low %v3691, %v3698
    %v4961 = vcombine.low %v3705, %v3712
    %v4963 = vunpack.c.l.s4 1983009808
    %v4964 = vunpack.c.0.s8 %v4963
    %v4965 = vlaneseq
    %v4966 = vshrl.u32 %v4965, 7
    %v4967 = vsub.s32 %v4964, %v4966
    %v4968 = vrot.slane %v4960, %v4967
    %v4970 = vunpack.c.l.s4 1983009808
    %v4971 = vunpack.c.0.s8 %v4970
    %v4972 = vlaneseq
    %v4973 = vshrl.u32 %v4972, 7
    %v4974 = vsub.s32 %v4971, %v4973
    %v4975 = vrot.slane %v4961, %v4974
    %v4976 = vcombine.low %v4968, %v4975
    %v4977 = vcombine.low %v3719, %v3726
    %v4978 = vcombine.low %v3733, %v3740
    %v4980 = vunpack.c.l.s4 1983009808
    %v4981 = vunpack.c.0.s8 %v4980
    %v4982 = vlaneseq
    %v4983 = vshrl.u32 %v4982, 7
    %v4984 = vsub.s32 %v4981, %v4983
    %v4985 = vrot.slane %v4977, %v4984
    %v4987 = vunpack.c.l.s4 1983009808
    %v4988 = vunpack.c.0.s8 %v4987
    %v4989 = vlaneseq
    %v4990 = vshrl.u32 %v4989, 7
    %v4991 = vsub.s32 %v4988, %v4990
    %v4992 = vrot.slane %v4978, %v4991
    %v4993 = vcombine.low %v4985, %v4992
    %v4994 = vcombine.low %v3747, %v3754
    %v4995 = vcombine.low %v3761, %v3768
    %v4997 = vunpack.c.l.s4 1983009808
    %v4998 = vunpack.c.0.s8 %v4997
    %v4999 = vlaneseq
    %v5000 = vshrl.u32 %v4999, 7
    %v5001 = vsub.s32 %v4998, %v5000
    %v5002 = vrot.slane %v4994, %v5001
    %v5004 = vunpack.c.l.s4 1983009808
    %v5005 = vunpack.c.0.s8 %v5004
    %v5006 = vlaneseq
    %v5007 = vshrl.u32 %v5006, 7
    %v5008 = vsub.s32 %v5005, %v5007
    %v5009 = vrot.slane %v4995, %v5008
    %v5010 = vcombine.low %v5002, %v5009
    %v5011 = vcombine.low %v3775, %v3782
    %v5012 = vcombine.low %v3789, %v3796
    %v5014 = vunpack.c.l.s4 1983009808
    %v5015 = vunpack.c.0.s8 %v5014
    %v5016 = vlaneseq
    %v5017 = vshrl.u32 %v5016, 7
    %v5018 = vsub.s32 %v5015, %v5017
    %v5019 = vrot.slane %v5011, %v5018
    %v5021 = vunpack.c.l.s4 1983009808
    %v5022 = vunpack.c.0.s8 %v5021
    %v5023 = vlaneseq
    %v5024 = vshrl.u32 %v5023, 7
    %v5025 = vsub.s32 %v5022, %v5024
    %v5026 = vrot.slane %v5012, %v5025
    %v5027 = vcombine.low %v5019, %v5026
    %v5028 = vcombine.low %v3803, %v3810
    %v5029 = vcombine.low %v3817, %v3824
    %v5031 = vunpack.c.l.s4 1983009808
    %v5032 = vunpack.c.0.s8 %v5031
    %v5033 = vlaneseq
    %v5034 = vshrl.u32 %v5033, 7
    %v5035 = vsub.s32 %v5032, %v5034
    %v5036 = vrot.slane %v5028, %v5035
    %v5038 = vunpack.c.l.s4 1983009808
    %v5039 = vunpack.c.0.s8 %v5038
    %v5040 = vlaneseq
    %v5041 = vshrl.u32 %v5040, 7
    %v5042 = vsub.s32 %v5039, %v5041
    %v5043 = vrot.slane %v5029, %v5042
    %v5044 = vcombine.low %v5036, %v5043
    %v5045 = vcombine.low %v3831, %v3838
    %v5046 = vcombine.low %v3845, %v3852
    %v5048 = vunpack.c.l.s4 1983009808
    %v5049 = vunpack.c.0.s8 %v5048
    %v5050 = vlaneseq
    %v5051 = vshrl.u32 %v5050, 7
    %v5052 = vsub.s32 %v5049, %v5051
    %v5053 = vrot.slane %v5045, %v5052
    %v5055 = vunpack.c.l.s4 1983009808
    %v5056 = vunpack.c.0.s8 %v5055
    %v5057 = vlaneseq
    %v5058 = vshrl.u32 %v5057, 7
    %v5059 = vsub.s32 %v5056, %v5058
    %v5060 = vrot.slane %v5046, %v5059
    %v5061 = vcombine.low %v5053, %v5060
    %v5062 = vcombine.low %v3859, %v3866
    %v5063 = vcombine.low %v3873, %v3880
    %v5065 = vunpack.c.l.s4 1983009808
    %v5066 = vunpack.c.0.s8 %v5065
    %v5067 = vlaneseq
    %v5068 = vshrl.u32 %v5067, 7
    %v5069 = vsub.s32 %v5066, %v5068
    %v5070 = vrot.slane %v5062, %v5069
    %v5072 = vunpack.c.l.s4 1983009808
    %v5073 = vunpack.c.0.s8 %v5072
    %v5074 = vlaneseq
    %v5075 = vshrl.u32 %v5074, 7
    %v5076 = vsub.s32 %v5073, %v5075
    %v5077 = vrot.slane %v5063, %v5076
    %v5078 = vcombine.low %v5070, %v5077
    %v5079 = vcombine.low %v3887, %v3894
    %v5080 = vcombine.low %v3901, %v3908
    %v5082 = vunpack.c.l.s4 1983009808
    %v5083 = vunpack.c.0.s8 %v5082
    %v5084 = vlaneseq
    %v5085 = vshrl.u32 %v5084, 7
    %v5086 = vsub.s32 %v5083, %v5085
    %v5087 = vrot.slane %v5079, %v5086
    %v5089 = vunpack.c.l.s4 1983009808
    %v5090 = vunpack.c.0.s8 %v5089
    %v5091 = vlaneseq
    %v5092 = vshrl.u32 %v5091, 7
    %v5093 = vsub.s32 %v5090, %v5092
    %v5094 = vrot.slane %v5080, %v5093
    %v5095 = vcombine.low %v5087, %v5094
    %v5096 = vcombine.low %v3915, %v3922
    %v5097 = vcombine.low %v3929, %v3936
    %v5099 = vunpack.c.l.s4 1983009808
    %v5100 = vunpack.c.0.s8 %v5099
    %v5101 = vlaneseq
    %v5102 = vshrl.u32 %v5101, 7
    %v5103 = vsub.s32 %v5100, %v5102
    %v5104 = vrot.slane %v5096, %v5103
    %v5106 = vunpack.c.l.s4 1983009808
    %v5107 = vunpack.c.0.s8 %v5106
    %v5108 = vlaneseq
    %v5109 = vshrl.u32 %v5108, 7
    %v5110 = vsub.s32 %v5107, %v5109
    %v5111 = vrot.slane %v5097, %v5110
    %v5112 = vcombine.low %v5104, %v5111
    %v5113 = vcombine.low %v3943, %v3950
    %v5114 = vcombine.low %v3957, %v3964
    %v5116 = vunpack.c.l.s4 1983009808
    %v5117 = vunpack.c.0.s8 %v5116
    %v5118 = vlaneseq
    %v5119 = vshrl.u32 %v5118, 7
    %v5120 = vsub.s32 %v5117, %v5119
    %v5121 = vrot.slane %v5113, %v5120
    %v5123 = vunpack.c.l.s4 1983009808
    %v5124 = vunpack.c.0.s8 %v5123
    %v5125 = vlaneseq
    %v5126 = vshrl.u32 %v5125, 7
    %v5127 = vsub.s32 %v5124, %v5126
    %v5128 = vrot.slane %v5114, %v5127
    %v5129 = vcombine.low %v5121, %v5128
    %v5130 = vcombine.low %v3971, %v3978
    %v5131 = vcombine.low %v3985, %v3992
    %v5133 = vunpack.c.l.s4 1983009808
    %v5134 = vunpack.c.0.s8 %v5133
    %v5135 = vlaneseq
    %v5136 = vshrl.u32 %v5135, 7
    %v5137 = vsub.s32 %v5134, %v5136
    %v5138 = vrot.slane %v5130, %v5137
    %v5140 = vunpack.c.l.s4 1983009808
    %v5141 = vunpack.c.0.s8 %v5140
    %v5142 = vlaneseq
    %v5143 = vshrl.u32 %v5142, 7
    %v5144 = vsub.s32 %v5141, %v5143
    %v5145 = vrot.slane %v5131, %v5144
    %v5146 = vcombine.low %v5138, %v5145
    %v5147 = vcombine.low %v3999, %v4006
    %v5148 = vcombine.low %v4013, %v4020
    %v5150 = vunpack.c.l.s4 1983009808
    %v5151 = vunpack.c.0.s8 %v5150
    %v5152 = vlaneseq
    %v5153 = vshrl.u32 %v5152, 7
    %v5154 = vsub.s32 %v5151, %v5153
    %v5155 = vrot.slane %v5147, %v5154
    %v5157 = vunpack.c.l.s4 1983009808
    %v5158 = vunpack.c.0.s8 %v5157
    %v5159 = vlaneseq
    %v5160 = vshrl.u32 %v5159, 7
    %v5161 = vsub.s32 %v5158, %v5160
    %v5162 = vrot.slane %v5148, %v5161
    %v5163 = vcombine.low %v5155, %v5162
    %v5164 = vcombine.low %v4027, %v4034
    %v5165 = vcombine.low %v4041, %v4048
    %v5167 = vunpack.c.l.s4 1983009808
    %v5168 = vunpack.c.0.s8 %v5167
    %v5169 = vlaneseq
    %v5170 = vshrl.u32 %v5169, 7
    %v5171 = vsub.s32 %v5168, %v5170
    %v5172 = vrot.slane %v5164, %v5171
    %v5174 = vunpack.c.l.s4 1983009808
    %v5175 = vunpack.c.0.s8 %v5174
    %v5176 = vlaneseq
    %v5177 = vshrl.u32 %v5176, 7
    %v5178 = vsub.s32 %v5175, %v5177
    %v5179 = vrot.slane %v5165, %v5178
    %v5180 = vcombine.low %v5172, %v5179
    %v5181 = vcombine.low %v4055, %v4062
    %v5182 = vcombine.low %v4069, %v4076
    %v5184 = vunpack.c.l.s4 1983009808
    %v5185 = vunpack.c.0.s8 %v5184
    %v5186 = vlaneseq
    %v5187 = vshrl.u32 %v5186, 7
    %v5188 = vsub.s32 %v5185, %v5187
    %v5189 = vrot.slane %v5181, %v5188
    %v5191 = vunpack.c.l.s4 1983009808
    %v5192 = vunpack.c.0.s8 %v5191
    %v5193 = vlaneseq
    %v5194 = vshrl.u32 %v5193, 7
    %v5195 = vsub.s32 %v5192, %v5194
    %v5196 = vrot.slane %v5182, %v5195
    %v5197 = vcombine.low %v5189, %v5196
    %v5198 = vcombine.low %v4083, %v4090
    %v5199 = vcombine.low %v4097, %v4104
    %v5201 = vunpack.c.l.s4 1983009808
    %v5202 = vunpack.c.0.s8 %v5201
    %v5203 = vlaneseq
    %v5204 = vshrl.u32 %v5203, 7
    %v5205 = vsub.s32 %v5202, %v5204
    %v5206 = vrot.slane %v5198, %v5205
    %v5208 = vunpack.c.l.s4 1983009808
    %v5209 = vunpack.c.0.s8 %v5208
    %v5210 = vlaneseq
    %v5211 = vshrl.u32 %v5210, 7
    %v5212 = vsub.s32 %v5209, %v5211
    %v5213 = vrot.slane %v5199, %v5212
    %v5214 = vcombine.low %v5206, %v5213
    %v5215 = vcombine.low %v4111, %v4118
    %v5216 = vcombine.low %v4125, %v4132
    %v5218 = vunpack.c.l.s4 1983009808
    %v5219 = vunpack.c.0.s8 %v5218
    %v5220 = vlaneseq
    %v5221 = vshrl.u32 %v5220, 7
    %v5222 = vsub.s32 %v5219, %v5221
    %v5223 = vrot.slane %v5215, %v5222
    %v5225 = vunpack.c.l.s4 1983009808
    %v5226 = vunpack.c.0.s8 %v5225
    %v5227 = vlaneseq
    %v5228 = vshrl.u32 %v5227, 7
    %v5229 = vsub.s32 %v5226, %v5228
    %v5230 = vrot.slane %v5216, %v5229
    %v5231 = vcombine.low %v5223, %v5230
    %v5232 = vcombine.low %v4139, %v4146
    %v5233 = vcombine.low %v4153, %v4160
    %v5235 = vunpack.c.l.s4 1983009808
    %v5236 = vunpack.c.0.s8 %v5235
    %v5237 = vlaneseq
    %v5238 = vshrl.u32 %v5237, 7
    %v5239 = vsub.s32 %v5236, %v5238
    %v5240 = vrot.slane %v5232, %v5239
    %v5242 = vunpack.c.l.s4 1983009808
    %v5243 = vunpack.c.0.s8 %v5242
    %v5244 = vlaneseq
    %v5245 = vshrl.u32 %v5244, 7
    %v5246 = vsub.s32 %v5243, %v5245
    %v5247 = vrot.slane %v5233, %v5246
    %v5248 = vcombine.low %v5240, %v5247
    %5249 = vset.pattern.permute.xlu0 0
    %5250 = vperm.xlu0 %5249, %v4177
    %v5251 = vpop.permute.xlu0 %5250
    %5252 = vset.pattern.permute.xlu0 0
    %5253 = vperm.xlu0 %5252, %v4194
    %v5254 = vpop.permute.xlu0 %5253
    %5255 = vset.pattern.permute.xlu0 0
    %5256 = vperm.xlu0 %5255, %v4211
    %v5257 = vpop.permute.xlu0 %5256
    %5258 = vset.pattern.permute.xlu0 0
    %5259 = vperm.xlu0 %5258, %v4228
    %v5260 = vpop.permute.xlu0 %5259
    %5261 = vset.pattern.permute.xlu0 0
    %5262 = vperm.xlu0 %5261, %v4245
    %v5263 = vpop.permute.xlu0 %5262
    %5264 = vset.pattern.permute.xlu0 0
    %5265 = vperm.xlu0 %5264, %v4262
    %v5266 = vpop.permute.xlu0 %5265
    %5267 = vset.pattern.permute.xlu0 0
    %5268 = vperm.xlu0 %5267, %v4279
    %v5269 = vpop.permute.xlu0 %5268
    %5270 = vset.pattern.permute.xlu0 0
    %5271 = vperm.xlu0 %5270, %v4296
    %v5272 = vpop.permute.xlu0 %5271
    %5273 = vset.pattern.permute.xlu0 0
    %5274 = vperm.xlu0 %5273, %v4313
    %v5275 = vpop.permute.xlu0 %5274
    %5276 = vset.pattern.permute.xlu0 0
    %5277 = vperm.xlu0 %5276, %v4330
    %v5278 = vpop.permute.xlu0 %5277
    %5279 = vset.pattern.permute.xlu0 0
    %5280 = vperm.xlu0 %5279, %v4347
    %v5281 = vpop.permute.xlu0 %5280
    %5282 = vset.pattern.permute.xlu0 0
    %5283 = vperm.xlu0 %5282, %v4364
    %v5284 = vpop.permute.xlu0 %5283
    %5285 = vset.pattern.permute.xlu0 0
    %5286 = vperm.xlu0 %5285, %v4381
    %v5287 = vpop.permute.xlu0 %5286
    %5288 = vset.pattern.permute.xlu0 0
    %5289 = vperm.xlu0 %5288, %v4398
    %v5290 = vpop.permute.xlu0 %5289
    %5291 = vset.pattern.permute.xlu0 0
    %5292 = vperm.xlu0 %5291, %v4415
    %v5293 = vpop.permute.xlu0 %5292
    %5294 = vset.pattern.permute.xlu0 0
    %5295 = vperm.xlu0 %5294, %v4432
    %v5296 = vpop.permute.xlu0 %5295
    %5297 = vset.pattern.permute.xlu0 0
    %5298 = vperm.xlu0 %5297, %v4449
    %v5299 = vpop.permute.xlu0 %5298
    %5300 = vset.pattern.permute.xlu0 0
    %5301 = vperm.xlu0 %5300, %v4466
    %v5302 = vpop.permute.xlu0 %5301
    %5303 = vset.pattern.permute.xlu0 0
    %5304 = vperm.xlu0 %5303, %v4483
    %v5305 = vpop.permute.xlu0 %5304
    %5306 = vset.pattern.permute.xlu0 0
    %5307 = vperm.xlu0 %5306, %v4500
    %v5308 = vpop.permute.xlu0 %5307
    %5309 = vset.pattern.permute.xlu0 0
    %5310 = vperm.xlu0 %5309, %v4517
    %v5311 = vpop.permute.xlu0 %5310
    %5312 = vset.pattern.permute.xlu0 0
    %5313 = vperm.xlu0 %5312, %v4534
    %v5314 = vpop.permute.xlu0 %5313
    %5315 = vset.pattern.permute.xlu0 0
    %5316 = vperm.xlu0 %5315, %v4551
    %v5317 = vpop.permute.xlu0 %5316
    %5318 = vset.pattern.permute.xlu0 0
    %5319 = vperm.xlu0 %5318, %v4568
    %v5320 = vpop.permute.xlu0 %5319
    %5321 = vset.pattern.permute.xlu0 0
    %5322 = vperm.xlu0 %5321, %v4585
    %v5323 = vpop.permute.xlu0 %5322
    %5324 = vset.pattern.permute.xlu0 0
    %5325 = vperm.xlu0 %5324, %v4602
    %v5326 = vpop.permute.xlu0 %5325
    %5327 = vset.pattern.permute.xlu0 0
    %5328 = vperm.xlu0 %5327, %v4619
    %v5329 = vpop.permute.xlu0 %5328
    %5330 = vset.pattern.permute.xlu0 0
    %5331 = vperm.xlu0 %5330, %v4636
    %v5332 = vpop.permute.xlu0 %5331
    %5333 = vset.pattern.permute.xlu0 0
    %5334 = vperm.xlu0 %5333, %v4653
    %v5335 = vpop.permute.xlu0 %5334
    %5336 = vset.pattern.permute.xlu0 0
    %5337 = vperm.xlu0 %5336, %v4670
    %v5338 = vpop.permute.xlu0 %5337
    %5339 = vset.pattern.permute.xlu0 0
    %5340 = vperm.xlu0 %5339, %v4687
    %v5341 = vpop.permute.xlu0 %5340
    %5342 = vset.pattern.permute.xlu0 0
    %5343 = vperm.xlu0 %5342, %v4704
    %v5344 = vpop.permute.xlu0 %5343
    %5345 = vset.pattern.permute.xlu0 0
    %5346 = vperm.xlu0 %5345, %v4721
    %v5347 = vpop.permute.xlu0 %5346
    %5348 = vset.pattern.permute.xlu0 0
    %5349 = vperm.xlu0 %5348, %v4738
    %v5350 = vpop.permute.xlu0 %5349
    %5351 = vset.pattern.permute.xlu0 0
    %5352 = vperm.xlu0 %5351, %v4755
    %v5353 = vpop.permute.xlu0 %5352
    %5354 = vset.pattern.permute.xlu0 0
    %5355 = vperm.xlu0 %5354, %v4772
    %v5356 = vpop.permute.xlu0 %5355
    %5357 = vset.pattern.permute.xlu0 0
    %5358 = vperm.xlu0 %5357, %v4789
    %v5359 = vpop.permute.xlu0 %5358
    %5360 = vset.pattern.permute.xlu0 0
    %5361 = vperm.xlu0 %5360, %v4806
    %v5362 = vpop.permute.xlu0 %5361
    %5363 = vset.pattern.permute.xlu0 0
    %5364 = vperm.xlu0 %5363, %v4823
    %v5365 = vpop.permute.xlu0 %5364
    %5366 = vset.pattern.permute.xlu0 0
    %5367 = vperm.xlu0 %5366, %v4840
    %v5368 = vpop.permute.xlu0 %5367
    %5369 = vset.pattern.permute.xlu0 0
    %5370 = vperm.xlu0 %5369, %v4857
    %v5371 = vpop.permute.xlu0 %5370
    %5372 = vset.pattern.permute.xlu0 0
    %5373 = vperm.xlu0 %5372, %v4874
    %v5374 = vpop.permute.xlu0 %5373
    %5375 = vset.pattern.permute.xlu0 0
    %5376 = vperm.xlu0 %5375, %v4891
    %v5377 = vpop.permute.xlu0 %5376
    %5378 = vset.pattern.permute.xlu0 0
    %5379 = vperm.xlu0 %5378, %v4908
    %v5380 = vpop.permute.xlu0 %5379
    %5381 = vset.pattern.permute.xlu0 0
    %5382 = vperm.xlu0 %5381, %v4925
    %v5383 = vpop.permute.xlu0 %5382
    %5384 = vset.pattern.permute.xlu0 0
    %5385 = vperm.xlu0 %5384, %v4942
    %v5386 = vpop.permute.xlu0 %5385
    %5387 = vset.pattern.permute.xlu0 0
    %5388 = vperm.xlu0 %5387, %v4959
    %v5389 = vpop.permute.xlu0 %5388
    %5390 = vset.pattern.permute.xlu0 0
    %5391 = vperm.xlu0 %5390, %v4976
    %v5392 = vpop.permute.xlu0 %5391
    %5393 = vset.pattern.permute.xlu0 0
    %5394 = vperm.xlu0 %5393, %v4993
    %v5395 = vpop.permute.xlu0 %5394
    %5396 = vset.pattern.permute.xlu0 0
    %5397 = vperm.xlu0 %5396, %v5010
    %v5398 = vpop.permute.xlu0 %5397
    %5399 = vset.pattern.permute.xlu0 0
    %5400 = vperm.xlu0 %5399, %v5027
    %v5401 = vpop.permute.xlu0 %5400
    %5402 = vset.pattern.permute.xlu0 0
    %5403 = vperm.xlu0 %5402, %v5044
    %v5404 = vpop.permute.xlu0 %5403
    %5405 = vset.pattern.permute.xlu0 0
    %5406 = vperm.xlu0 %5405, %v5061
    %v5407 = vpop.permute.xlu0 %5406
    %5408 = vset.pattern.permute.xlu0 0
    %5409 = vperm.xlu0 %5408, %v5078
    %v5410 = vpop.permute.xlu0 %5409
    %5411 = vset.pattern.permute.xlu0 0
    %5412 = vperm.xlu0 %5411, %v5095
    %v5413 = vpop.permute.xlu0 %5412
    %5414 = vset.pattern.permute.xlu0 0
    %5415 = vperm.xlu0 %5414, %v5112
    %v5416 = vpop.permute.xlu0 %5415
    %5417 = vset.pattern.permute.xlu0 0
    %5418 = vperm.xlu0 %5417, %v5129
    %v5419 = vpop.permute.xlu0 %5418
    %5420 = vset.pattern.permute.xlu0 0
    %5421 = vperm.xlu0 %5420, %v5146
    %v5422 = vpop.permute.xlu0 %5421
    %5423 = vset.pattern.permute.xlu0 0
    %5424 = vperm.xlu0 %5423, %v5163
    %v5425 = vpop.permute.xlu0 %5424
    %5426 = vset.pattern.permute.xlu0 0
    %5427 = vperm.xlu0 %5426, %v5180
    %v5428 = vpop.permute.xlu0 %5427
    %5429 = vset.pattern.permute.xlu0 0
    %5430 = vperm.xlu0 %5429, %v5197
    %v5431 = vpop.permute.xlu0 %5430
    %5432 = vset.pattern.permute.xlu0 0
    %5433 = vperm.xlu0 %5432, %v5214
    %v5434 = vpop.permute.xlu0 %5433
    %5435 = vset.pattern.permute.xlu0 0
    %5436 = vperm.xlu0 %5435, %v5231
    %v5437 = vpop.permute.xlu0 %5436
    %5438 = vset.pattern.permute.xlu0 0
    %5439 = vperm.xlu0 %5438, %v5248
    %v5440 = vpop.permute.xlu0 %5439
    %v5441 = vlaneseq
    %v5442 = vand.u32 %v5441, 127
    %v5443 = vlaneseq
    %v5444 = vshrl.u32 %v5443, 7
    %v5445 = vsub.s32 %v5442, %v5444
    %v5446 = vrot.slane %v5251, %v5445
    %v5447 = vadd.s32 %v5442, 4294967288
    %v5448 = vlaneseq
    %v5449 = vshrl.u32 %v5448, 7
    %v5450 = vsub.s32 %v5447, %v5449
    %v5451 = vrot.slane %v5254, %v5450
    %vm5452 = vcmask 130112
    %v5453 = vsel %vm5452, %v5451, %v5446
    %v5454 = vadd.s32 %v5442, 4294967280
    %v5455 = vlaneseq
    %v5456 = vshrl.u32 %v5455, 7
    %v5457 = vsub.s32 %v5454, %v5456
    %v5458 = vrot.slane %v5257, %v5457
    %vm5459 = vcmask 195712
    %v5460 = vsel %vm5459, %v5458, %v5453
    %v5461 = vadd.s32 %v5442, 4294967272
    %v5462 = vlaneseq
    %v5463 = vshrl.u32 %v5462, 7
    %v5464 = vsub.s32 %v5461, %v5463
    %v5465 = vrot.slane %v5260, %v5464
    %vm5466 = vcmask 261312
    %v5467 = vsel %vm5466, %v5465, %v5460
    %v5468 = vadd.s32 %v5442, 4294967264
    %v5469 = vlaneseq
    %v5470 = vshrl.u32 %v5469, 7
    %v5471 = vsub.s32 %v5468, %v5470
    %v5472 = vrot.slane %v5263, %v5471
    %vm5473 = vcmask 326912
    %v5474 = vsel %vm5473, %v5472, %v5467
    %v5475 = vadd.s32 %v5442, 4294967256
    %v5476 = vlaneseq
    %v5477 = vshrl.u32 %v5476, 7
    %v5478 = vsub.s32 %v5475, %v5477
    %v5479 = vrot.slane %v5266, %v5478
    %vm5480 = vcmask 392512
    %v5481 = vsel %vm5480, %v5479, %v5474
    %v5482 = vadd.s32 %v5442, 4294967248
    %v5483 = vlaneseq
    %v5484 = vshrl.u32 %v5483, 7
    %v5485 = vsub.s32 %v5482, %v5484
    %v5486 = vrot.slane %v5269, %v5485
    %vm5487 = vcmask 458112
    %v5488 = vsel %vm5487, %v5486, %v5481
    %v5489 = vadd.s32 %v5442, 4294967240
    %v5490 = vlaneseq
    %v5491 = vshrl.u32 %v5490, 7
    %v5492 = vsub.s32 %v5489, %v5491
    %v5493 = vrot.slane %v5272, %v5492
    %vm5494 = vcmask 523712
    %v5495 = vsel %vm5494, %v5493, %v5488
    %v5496 = vadd.s32 %v5442, 4294967232
    %v5497 = vlaneseq
    %v5498 = vshrl.u32 %v5497, 7
    %v5499 = vsub.s32 %v5496, %v5498
    %v5500 = vrot.slane %v5275, %v5499
    %vm5501 = vcmask 589312
    %v5502 = vsel %vm5501, %v5500, %v5495
    %v5503 = vadd.s32 %v5442, 4294967224
    %v5504 = vlaneseq
    %v5505 = vshrl.u32 %v5504, 7
    %v5506 = vsub.s32 %v5503, %v5505
    %v5507 = vrot.slane %v5278, %v5506
    %vm5508 = vcmask 654912
    %v5509 = vsel %vm5508, %v5507, %v5502
    %v5510 = vadd.s32 %v5442, 4294967216
    %v5511 = vlaneseq
    %v5512 = vshrl.u32 %v5511, 7
    %v5513 = vsub.s32 %v5510, %v5512
    %v5514 = vrot.slane %v5281, %v5513
    %vm5515 = vcmask 720512
    %v5516 = vsel %vm5515, %v5514, %v5509
    %v5517 = vadd.s32 %v5442, 4294967208
    %v5518 = vlaneseq
    %v5519 = vshrl.u32 %v5518, 7
    %v5520 = vsub.s32 %v5517, %v5519
    %v5521 = vrot.slane %v5284, %v5520
    %vm5522 = vcmask 786112
    %v5523 = vsel %vm5522, %v5521, %v5516
    %v5524 = vadd.s32 %v5442, 4294967200
    %v5525 = vlaneseq
    %v5526 = vshrl.u32 %v5525, 7
    %v5527 = vsub.s32 %v5524, %v5526
    %v5528 = vrot.slane %v5287, %v5527
    %vm5529 = vcmask 851712
    %v5530 = vsel %vm5529, %v5528, %v5523
    %v5531 = vadd.s32 %v5442, 4294967192
    %v5532 = vlaneseq
    %v5533 = vshrl.u32 %v5532, 7
    %v5534 = vsub.s32 %v5531, %v5533
    %v5535 = vrot.slane %v5290, %v5534
    %vm5536 = vcmask 917312
    %v5537 = vsel %vm5536, %v5535, %v5530
    %v5538 = vadd.s32 %v5442, 4294967184
    %v5539 = vlaneseq
    %v5540 = vshrl.u32 %v5539, 7
    %v5541 = vsub.s32 %v5538, %v5540
    %v5542 = vrot.slane %v5293, %v5541
    %vm5543 = vcmask 982912
    %v5544 = vsel %vm5543, %v5542, %v5537
    %v5545 = vadd.s32 %v5442, 4294967176
    %v5546 = vlaneseq
    %v5547 = vshrl.u32 %v5546, 7
    %v5548 = vsub.s32 %v5545, %v5547
    %v5549 = vrot.slane %v5296, %v5548
    %vm5550 = vcmask 1048512
    %v5551 = vsel %vm5550, %v5549, %v5544
    %v5552 = vlaneseq
    %v5553 = vshrl.u32 %v5552, 7
    %v5554 = vsub.s32 %v5442, %v5553
    %v5555 = vrot.slane %v5299, %v5554
    %v5556 = vlaneseq
    %v5557 = vshrl.u32 %v5556, 7
    %v5558 = vsub.s32 %v5447, %v5557
    %v5559 = vrot.slane %v5302, %v5558
    %v5560 = vsel %vm5452, %v5559, %v5555
    %v5561 = vlaneseq
    %v5562 = vshrl.u32 %v5561, 7
    %v5563 = vsub.s32 %v5454, %v5562
    %v5564 = vrot.slane %v5305, %v5563
    %v5565 = vsel %vm5459, %v5564, %v5560
    %v5566 = vlaneseq
    %v5567 = vshrl.u32 %v5566, 7
    %v5568 = vsub.s32 %v5461, %v5567
    %v5569 = vrot.slane %v5308, %v5568
    %v5570 = vsel %vm5466, %v5569, %v5565
    %v5571 = vlaneseq
    %v5572 = vshrl.u32 %v5571, 7
    %v5573 = vsub.s32 %v5468, %v5572
    %v5574 = vrot.slane %v5311, %v5573
    %v5575 = vsel %vm5473, %v5574, %v5570
    %v5576 = vlaneseq
    %v5577 = vshrl.u32 %v5576, 7
    %v5578 = vsub.s32 %v5475, %v5577
    %v5579 = vrot.slane %v5314, %v5578
    %v5580 = vsel %vm5480, %v5579, %v5575
    %v5581 = vlaneseq
    %v5582 = vshrl.u32 %v5581, 7
    %v5583 = vsub.s32 %v5482, %v5582
    %v5584 = vrot.slane %v5317, %v5583
    %v5585 = vsel %vm5487, %v5584, %v5580
    %v5586 = vlaneseq
    %v5587 = vshrl.u32 %v5586, 7
    %v5588 = vsub.s32 %v5489, %v5587
    %v5589 = vrot.slane %v5320, %v5588
    %v5590 = vsel %vm5494, %v5589, %v5585
    %v5591 = vlaneseq
    %v5592 = vshrl.u32 %v5591, 7
    %v5593 = vsub.s32 %v5496, %v5592
    %v5594 = vrot.slane %v5323, %v5593
    %v5595 = vsel %vm5501, %v5594, %v5590
    %v5596 = vlaneseq
    %v5597 = vshrl.u32 %v5596, 7
    %v5598 = vsub.s32 %v5503, %v5597
    %v5599 = vrot.slane %v5326, %v5598
    %v5600 = vsel %vm5508, %v5599, %v5595
    %v5601 = vlaneseq
    %v5602 = vshrl.u32 %v5601, 7
    %v5603 = vsub.s32 %v5510, %v5602
    %v5604 = vrot.slane %v5329, %v5603
    %v5605 = vsel %vm5515, %v5604, %v5600
    %v5606 = vlaneseq
    %v5607 = vshrl.u32 %v5606, 7
    %v5608 = vsub.s32 %v5517, %v5607
    %v5609 = vrot.slane %v5332, %v5608
    %v5610 = vsel %vm5522, %v5609, %v5605
    %v5611 = vlaneseq
    %v5612 = vshrl.u32 %v5611, 7
    %v5613 = vsub.s32 %v5524, %v5612
    %v5614 = vrot.slane %v5335, %v5613
    %v5615 = vsel %vm5529, %v5614, %v5610
    %v5616 = vlaneseq
    %v5617 = vshrl.u32 %v5616, 7
    %v5618 = vsub.s32 %v5531, %v5617
    %v5619 = vrot.slane %v5338, %v5618
    %v5620 = vsel %vm5536, %v5619, %v5615
    %v5621 = vlaneseq
    %v5622 = vshrl.u32 %v5621, 7
    %v5623 = vsub.s32 %v5538, %v5622
    %v5624 = vrot.slane %v5341, %v5623
    %v5625 = vsel %vm5543, %v5624, %v5620
    %v5626 = vlaneseq
    %v5627 = vshrl.u32 %v5626, 7
    %v5628 = vsub.s32 %v5545, %v5627
    %v5629 = vrot.slane %v5344, %v5628
    %v5630 = vsel %vm5550, %v5629, %v5625
    %v5631 = vlaneseq
    %v5632 = vshrl.u32 %v5631, 7
    %v5633 = vsub.s32 %v5442, %v5632
    %v5634 = vrot.slane %v5347, %v5633
    %v5635 = vlaneseq
    %v5636 = vshrl.u32 %v5635, 7
    %v5637 = vsub.s32 %v5447, %v5636
    %v5638 = vrot.slane %v5350, %v5637
    %v5639 = vsel %vm5452, %v5638, %v5634
    %v5640 = vlaneseq
    %v5641 = vshrl.u32 %v5640, 7
    %v5642 = vsub.s32 %v5454, %v5641
    %v5643 = vrot.slane %v5353, %v5642
    %v5644 = vsel %vm5459, %v5643, %v5639
    %v5645 = vlaneseq
    %v5646 = vshrl.u32 %v5645, 7
    %v5647 = vsub.s32 %v5461, %v5646
    %v5648 = vrot.slane %v5356, %v5647
    %v5649 = vsel %vm5466, %v5648, %v5644
    %v5650 = vlaneseq
    %v5651 = vshrl.u32 %v5650, 7
    %v5652 = vsub.s32 %v5468, %v5651
    %v5653 = vrot.slane %v5359, %v5652
    %v5654 = vsel %vm5473, %v5653, %v5649
    %v5655 = vlaneseq
    %v5656 = vshrl.u32 %v5655, 7
    %v5657 = vsub.s32 %v5475, %v5656
    %v5658 = vrot.slane %v5362, %v5657
    %v5659 = vsel %vm5480, %v5658, %v5654
    %v5660 = vlaneseq
    %v5661 = vshrl.u32 %v5660, 7
    %v5662 = vsub.s32 %v5482, %v5661
    %v5663 = vrot.slane %v5365, %v5662
    %v5664 = vsel %vm5487, %v5663, %v5659
    %v5665 = vlaneseq
    %v5666 = vshrl.u32 %v5665, 7
    %v5667 = vsub.s32 %v5489, %v5666
    %v5668 = vrot.slane %v5368, %v5667
    %v5669 = vsel %vm5494, %v5668, %v5664
    %v5670 = vlaneseq
    %v5671 = vshrl.u32 %v5670, 7
    %v5672 = vsub.s32 %v5496, %v5671
    %v5673 = vrot.slane %v5371, %v5672
    %v5674 = vsel %vm5501, %v5673, %v5669
    %v5675 = vlaneseq
    %v5676 = vshrl.u32 %v5675, 7
    %v5677 = vsub.s32 %v5503, %v5676
    %v5678 = vrot.slane %v5374, %v5677
    %v5679 = vsel %vm5508, %v5678, %v5674
    %v5680 = vlaneseq
    %v5681 = vshrl.u32 %v5680, 7
    %v5682 = vsub.s32 %v5510, %v5681
    %v5683 = vrot.slane %v5377, %v5682
    %v5684 = vsel %vm5515, %v5683, %v5679
    %v5685 = vlaneseq
    %v5686 = vshrl.u32 %v5685, 7
    %v5687 = vsub.s32 %v5517, %v5686
    %v5688 = vrot.slane %v5380, %v5687
    %v5689 = vsel %vm5522, %v5688, %v5684
    %v5690 = vlaneseq
    %v5691 = vshrl.u32 %v5690, 7
    %v5692 = vsub.s32 %v5524, %v5691
    %v5693 = vrot.slane %v5383, %v5692
    %v5694 = vsel %vm5529, %v5693, %v5689
    %v5695 = vlaneseq
    %v5696 = vshrl.u32 %v5695, 7
    %v5697 = vsub.s32 %v5531, %v5696
    %v5698 = vrot.slane %v5386, %v5697
    %v5699 = vsel %vm5536, %v5698, %v5694
    %v5700 = vlaneseq
    %v5701 = vshrl.u32 %v5700, 7
    %v5702 = vsub.s32 %v5538, %v5701
    %v5703 = vrot.slane %v5389, %v5702
    %v5704 = vsel %vm5543, %v5703, %v5699
    %v5705 = vlaneseq
    %v5706 = vshrl.u32 %v5705, 7
    %v5707 = vsub.s32 %v5545, %v5706
    %v5708 = vrot.slane %v5392, %v5707
    %v5709 = vsel %vm5550, %v5708, %v5704
    %v5710 = vlaneseq
    %v5711 = vshrl.u32 %v5710, 7
    %v5712 = vsub.s32 %v5442, %v5711
    %v5713 = vrot.slane %v5395, %v5712
    %v5714 = vlaneseq
    %v5715 = vshrl.u32 %v5714, 7
    %v5716 = vsub.s32 %v5447, %v5715
    %v5717 = vrot.slane %v5398, %v5716
    %v5718 = vsel %vm5452, %v5717, %v5713
    %v5719 = vlaneseq
    %v5720 = vshrl.u32 %v5719, 7
    %v5721 = vsub.s32 %v5454, %v5720
    %v5722 = vrot.slane %v5401, %v5721
    %v5723 = vsel %vm5459, %v5722, %v5718
    %v5724 = vlaneseq
    %v5725 = vshrl.u32 %v5724, 7
    %v5726 = vsub.s32 %v5461, %v5725
    %v5727 = vrot.slane %v5404, %v5726
    %v5728 = vsel %vm5466, %v5727, %v5723
    %v5729 = vlaneseq
    %v5730 = vshrl.u32 %v5729, 7
    %v5731 = vsub.s32 %v5468, %v5730
    %v5732 = vrot.slane %v5407, %v5731
    %v5733 = vsel %vm5473, %v5732, %v5728
    %v5734 = vlaneseq
    %v5735 = vshrl.u32 %v5734, 7
    %v5736 = vsub.s32 %v5475, %v5735
    %v5737 = vrot.slane %v5410, %v5736
    %v5738 = vsel %vm5480, %v5737, %v5733
    %v5739 = vlaneseq
    %v5740 = vshrl.u32 %v5739, 7
    %v5741 = vsub.s32 %v5482, %v5740
    %v5742 = vrot.slane %v5413, %v5741
    %v5743 = vsel %vm5487, %v5742, %v5738
    %v5744 = vlaneseq
    %v5745 = vshrl.u32 %v5744, 7
    %v5746 = vsub.s32 %v5489, %v5745
    %v5747 = vrot.slane %v5416, %v5746
    %v5748 = vsel %vm5494, %v5747, %v5743
    %v5749 = vlaneseq
    %v5750 = vshrl.u32 %v5749, 7
    %v5751 = vsub.s32 %v5496, %v5750
    %v5752 = vrot.slane %v5419, %v5751
    %v5753 = vsel %vm5501, %v5752, %v5748
    %v5754 = vlaneseq
    %v5755 = vshrl.u32 %v5754, 7
    %v5756 = vsub.s32 %v5503, %v5755
    %v5757 = vrot.slane %v5422, %v5756
    %v5758 = vsel %vm5508, %v5757, %v5753
    %v5759 = vlaneseq
    %v5760 = vshrl.u32 %v5759, 7
    %v5761 = vsub.s32 %v5510, %v5760
    %v5762 = vrot.slane %v5425, %v5761
    %v5763 = vsel %vm5515, %v5762, %v5758
    %v5764 = vlaneseq
    %v5765 = vshrl.u32 %v5764, 7
    %v5766 = vsub.s32 %v5517, %v5765
    %v5767 = vrot.slane %v5428, %v5766
    %v5768 = vsel %vm5522, %v5767, %v5763
    %v5769 = vlaneseq
    %v5770 = vshrl.u32 %v5769, 7
    %v5771 = vsub.s32 %v5524, %v5770
    %v5772 = vrot.slane %v5431, %v5771
    %v5773 = vsel %vm5529, %v5772, %v5768
    %v5774 = vlaneseq
    %v5775 = vshrl.u32 %v5774, 7
    %v5776 = vsub.s32 %v5531, %v5775
    %v5777 = vrot.slane %v5434, %v5776
    %v5778 = vsel %vm5536, %v5777, %v5773
    %v5779 = vlaneseq
    %v5780 = vshrl.u32 %v5779, 7
    %v5781 = vsub.s32 %v5538, %v5780
    %v5782 = vrot.slane %v5437, %v5781
    %v5783 = vsel %vm5543, %v5782, %v5778
    %v5784 = vlaneseq
    %v5785 = vshrl.u32 %v5784, 7
    %v5786 = vsub.s32 %v5545, %v5785
    %v5787 = vrot.slane %v5440, %v5786
    %v5788 = vsel %vm5550, %v5787, %v5783
    %vm5789 = vcmask 1041409
    %v5790 = vsel %vm5789, %v5709, %v5551
    %v5791 = vsel %vm5789, %v5788, %v5630
    %v5792 = vcombine.low %v5790, %v5791
    %v5794 = vunpack.c.l.s4 1983009808
    %v5795 = vunpack.c.0.s8 %v5794
    %v5796 = vlaneseq
    %v5797 = vshrl.u32 %v5796, 7
    %v5798 = vsub.s32 %v5795, %v5797
    %v5799 = vrot.slane %v5792, %v5798
    %v5801 = vadd.f32 %v2112, %v5799
    %5802 = vst [vmem:[#allocation2] sm:$0xf] %v5801
    // Predicated region
    $region42: #{squeezenet_plus_latent.1} parent=1 // pred_check
      %p5803 = pneg %p39
    $region43: #{squeezenet_plus_latent.1} parent=1 // pred_check_branch
      %5805 = sbr.rel (%p5803) target = $region45
    $region44: #{squeezenet_plus_latent.1} parent=1 // pred_region
      %v5806 = vld [vmem:[#allocation2] sm:$0xf]
      %v5807 = vmul.f32 %v5806, 0.00390625
      %5808 = vst [vmem:[#allocation3] sm:$0xf] %v5807
      %v5809 = vld [vmem:[%s3] sm:$0xff]
      %v5810 = vld [vmem:[%s3 + $0x8] sm:$0xff]
      %v5811 = vld [vmem:[%s3 + $0x10] sm:$0xff]
      %v5812 = vld [vmem:[%s3 + $0x18] sm:$0xff]
      %v5813 = vld [vmem:[%s3 + $0x20] sm:$0xff]
      %v5814 = vld [vmem:[%s3 + $0x28] sm:$0xff]
      %v5815 = vld [vmem:[%s3 + $0x30] sm:$0xff]
      %v5816 = vld [vmem:[%s3 + $0x38] sm:$0xff]
      %v5817 = vld [vmem:[%s3 + $0x40] sm:$0xff]
      %v5818 = vld [vmem:[%s3 + $0x48] sm:$0xff]
      %v5819 = vld [vmem:[%s3 + $0x50] sm:$0xff]
      %v5820 = vld [vmem:[%s3 + $0x58] sm:$0xff]
      %v5821 = vld [vmem:[%s3 + $0x60] sm:$0xff]
      %v5822 = vld [vmem:[%s3 + $0x68] sm:$0xff]
      %v5823 = vld [vmem:[%s3 + $0x70] sm:$0xff]
      %v5824 = vld [vmem:[%s3 + $0x78] sm:$0xff]
      %v5825 = vld [vmem:[%s3 + $0x80] sm:$0xff]
      %v5826 = vld [vmem:[%s3 + $0x88] sm:$0xff]
      %v5827 = vld [vmem:[%s3 + $0x90] sm:$0xff]
      %v5828 = vld [vmem:[%s3 + $0x98] sm:$0xff]
      %v5829 = vld [vmem:[%s3 + $0xa0] sm:$0xff]
      %v5830 = vld [vmem:[%s3 + $0xa8] sm:$0xff]
      %v5831 = vld [vmem:[%s3 + $0xb0] sm:$0xff]
      %v5832 = vld [vmem:[%s3 + $0xb8] sm:$0xff]
      %v5833 = vld [vmem:[%s3 + $0xc0] sm:$0xff]
      %v5834 = vld [vmem:[%s3 + $0xc8] sm:$0xff]
      %v5835 = vld [vmem:[%s3 + $0xd0] sm:$0xff]
      %v5836 = vld [vmem:[%s3 + $0xd8] sm:$0xff]
      %v5837 = vld [vmem:[%s3 + $0xe0] sm:$0xff]
      %v5838 = vld [vmem:[%s3 + $0xe8] sm:$0xff]
      %v5839 = vld [vmem:[%s3 + $0xf0] sm:$0xff]
      %v5840 = vld [vmem:[%s3 + $0xf8] sm:$0xff]
      %v5841 = vld [vmem:[%s4] sm:$0x1]
      %v5843 = vlaneseq
      %v5844 = vshrl.u32 %v5843, 7
      %v5845 = vsub.s32 0, %v5844
      %v5846 = vrot.slane %v5841, %v5845
      %v5850 = vunpack.c.l.s4 1983009808
      %v5851 = vunpack.c.0.s8 %v5850
      %v5852 = vlaneseq
      %v5853 = vshrl.u32 %v5852, 7
      %v5854 = vsub.s32 %v5851, %v5853
      %v5855 = vrot.slane %v5807, %v5854
      %v5856 = vcombine.high %v5855, %v5855
      %5859 = vmatprep.subr.mxu0 0.0
      %5860 = vmatpush1.msra.mxu0 %v5809
      %5861 = vmatprep.subr.mxu0 0.0
      %5862 = vmatpush1.msra.mxu0 %v5810
      %5863 = vmatprep.subr.mxu0 0.0
      %5864 = vmatpush1.msra.mxu0 %v5811
      %5865 = vmatprep.subr.mxu0 0.0
      %5866 = vmatpush1.msra.mxu0 %v5812
      %5867 = vmatprep.subr.mxu0 0.0
      %5868 = vmatpush1.msra.mxu0 %v5813
      %5869 = vmatprep.subr.mxu0 0.0
      %5870 = vmatpush1.msra.mxu0 %v5814
      %5871 = vmatprep.subr.mxu0 0.0
      %5872 = vmatpush1.msra.mxu0 %v5815
      %5873 = vmatprep.subr.mxu0 0.0
      %5874 = vmatpush1.msra.mxu0 %v5816
      %5875 = vmatprep.subr.mxu0 0.0
      %5876 = vmatpush1.msra.mxu0 %v5817
      %5877 = vmatprep.subr.mxu0 0.0
      %5878 = vmatpush1.msra.mxu0 %v5818
      %5879 = vmatprep.subr.mxu0 0.0
      %5880 = vmatpush1.msra.mxu0 %v5819
      %5881 = vmatprep.subr.mxu0 0.0
      %5882 = vmatpush1.msra.mxu0 %v5820
      %5883 = vmatprep.subr.mxu0 0.0
      %5884 = vmatpush1.msra.mxu0 %v5821
      %5885 = vmatprep.subr.mxu0 0.0
      %5886 = vmatpush1.msra.mxu0 %v5822
      %5887 = vmatprep.subr.mxu0 0.0
      %5888 = vmatpush1.msra.mxu0 %v5823
      %5889 = vmatprep.subr.mxu0 0.0
      %5890 = vmatpush1.msra.mxu0 %v5824
      %5891 = vmatprep.subr.mxu0 0.0
      %5892 = vmatpush1.msra.mxu0 %v5825
      %5893 = vmatprep.subr.mxu0 0.0
      %5894 = vmatpush1.msra.mxu0 %v5826
      %5895 = vmatprep.subr.mxu0 0.0
      %5896 = vmatpush1.msra.mxu0 %v5827
      %5897 = vmatprep.subr.mxu0 0.0
      %5898 = vmatpush1.msra.mxu0 %v5828
      %5899 = vmatprep.subr.mxu0 0.0
      %5900 = vmatpush1.msra.mxu0 %v5829
      %5901 = vmatprep.subr.mxu0 0.0
      %5902 = vmatpush1.msra.mxu0 %v5830
      %5903 = vmatprep.subr.mxu0 0.0
      %5904 = vmatpush1.msra.mxu0 %v5831
      %5905 = vmatprep.subr.mxu0 0.0
      %5906 = vmatpush1.msra.mxu0 %v5832
      %5907 = vmatprep.subr.mxu0 0.0
      %5908 = vmatpush1.msra.mxu0 %v5833
      %5909 = vmatprep.subr.mxu0 0.0
      %5910 = vmatpush1.msra.mxu0 %v5834
      %5911 = vmatprep.subr.mxu0 0.0
      %5912 = vmatpush1.msra.mxu0 %v5835
      %5913 = vmatprep.subr.mxu0 0.0
      %5914 = vmatpush1.msra.mxu0 %v5836
      %5915 = vmatprep.subr.mxu0 0.0
      %5916 = vmatpush1.msra.mxu0 %v5837
      %5917 = vmatprep.subr.mxu0 0.0
      %5918 = vmatpush1.msra.mxu0 %v5838
      %5919 = vmatprep.subr.mxu0 0.0
      %5920 = vmatpush1.msra.mxu0 %v5839
      %5921 = vmatprep.subr.mxu0 0.0
      %5922 = vmatpush1.msra.mxu0 %v5840
      %5923 = vmatprep.mubr.f32.mxu0 %v5856
      %5924 = vmatmul.mubr.f32.gmra.mrb[0].mxu0 %v5855
      %v5925 = vpop.f32.mrb[0].mxu0
      %v5926 = vadd.f32 %v5846, %v5925
      %v5927 = vpop.f32.mrb[0].mxu0
      %5928 = vdwg.mxu0
      %v5929 = vmul.f32 %v5926, 0.5
      %v5930 = vtanh.pop %v5929
      %v5931 = vadd.f32 %v5930, 1.0
      %v5932 = vmul.f32 %v5931, 0.5
      %5933 = vst [vmem:[#allocation5] sm:$0x3] %v5932
      %v5934 = vld [vmem:[%s5] sm:$0xff]
      %v5935 = vld [vmem:[%s5 + $0x8] sm:$0xff]
      %v5936 = vld [vmem:[%s5 + $0x10] sm:$0xff]
      %v5937 = vld [vmem:[%s5 + $0x18] sm:$0xff]
      %v5938 = vld [vmem:[%s5 + $0x20] sm:$0xff]
      %v5939 = vld [vmem:[%s5 + $0x28] sm:$0xff]
      %v5940 = vld [vmem:[%s5 + $0x30] sm:$0xff]
      %v5941 = vld [vmem:[%s5 + $0x38] sm:$0xff]
      %v5942 = vld [vmem:[%s5 + $0x40] sm:$0xff]
      %v5943 = vld [vmem:[%s5 + $0x48] sm:$0xff]
      %v5944 = vld [vmem:[%s5 + $0x50] sm:$0xff]
      %v5945 = vld [vmem:[%s5 + $0x58] sm:$0xff]
      %v5946 = vld [vmem:[%s5 + $0x60] sm:$0xff]
      %v5947 = vld [vmem:[%s5 + $0x68] sm:$0xff]
      %v5948 = vld [vmem:[%s5 + $0x70] sm:$0xff]
      %v5949 = vld [vmem:[%s5 + $0x78] sm:$0xff]
      %v5950 = vld [vmem:[%s5 + $0x80] sm:$0xff]
      %v5951 = vld [vmem:[%s5 + $0x88] sm:$0xff]
      %v5952 = vld [vmem:[%s5 + $0x90] sm:$0xff]
      %v5953 = vld [vmem:[%s5 + $0x98] sm:$0xff]
      %v5954 = vld [vmem:[%s5 + $0xa0] sm:$0xff]
      %v5955 = vld [vmem:[%s5 + $0xa8] sm:$0xff]
      %v5956 = vld [vmem:[%s5 + $0xb0] sm:$0xff]
      %v5957 = vld [vmem:[%s5 + $0xb8] sm:$0xff]
      %v5958 = vld [vmem:[%s5 + $0xc0] sm:$0xff]
      %v5959 = vld [vmem:[%s5 + $0xc8] sm:$0xff]
      %v5960 = vld [vmem:[%s5 + $0xd0] sm:$0xff]
      %v5961 = vld [vmem:[%s5 + $0xd8] sm:$0xff]
      %v5962 = vld [vmem:[%s5 + $0xe0] sm:$0xff]
      %v5963 = vld [vmem:[%s5 + $0xe8] sm:$0xff]
      %v5964 = vld [vmem:[%s5 + $0xf0] sm:$0xff]
      %v5965 = vld [vmem:[%s5 + $0xf8] sm:$0xff]
      %v5966 = vld [vmem:[%s6] sm:$0x3]
      %v5968 = vlaneseq
      %v5969 = vshrl.u32 %v5968, 7
      %v5970 = vsub.s32 0, %v5969
      %v5971 = vrot.slane %v5966, %v5970
      %v5972 = vlaneseq
      %v5973 = vshrl.u32 %v5972, 7
      %v5974 = vsub.s32 1, %v5973
      %v5975 = vrot.slane %v5966, %v5974
      %5978 = vmatprep.subr.mxu0 %v5935
      %5979 = vmatpush1.msra.mxu0 %v5934
      %5980 = vmatprep.subr.mxu0 %v5937
      %5981 = vmatpush1.msra.mxu0 %v5936
      %5982 = vmatprep.subr.mxu0 %v5939
      %5983 = vmatpush1.msra.mxu0 %v5938
      %5984 = vmatprep.subr.mxu0 %v5941
      %5985 = vmatpush1.msra.mxu0 %v5940
      %5986 = vmatprep.subr.mxu0 %v5943
      %5987 = vmatpush1.msra.mxu0 %v5942
      %5988 = vmatprep.subr.mxu0 %v5945
      %5989 = vmatpush1.msra.mxu0 %v5944
      %5990 = vmatprep.subr.mxu0 %v5947
      %5991 = vmatpush1.msra.mxu0 %v5946
      %5992 = vmatprep.subr.mxu0 %v5949
      %5993 = vmatpush1.msra.mxu0 %v5948
      %5994 = vmatprep.subr.mxu0 %v5951
      %5995 = vmatpush1.msra.mxu0 %v5950
      %5996 = vmatprep.subr.mxu0 %v5953
      %5997 = vmatpush1.msra.mxu0 %v5952
      %5998 = vmatprep.subr.mxu0 %v5955
      %5999 = vmatpush1.msra.mxu0 %v5954
      %6000 = vmatprep.subr.mxu0 %v5957
      %6001 = vmatpush1.msra.mxu0 %v5956
      %6002 = vmatprep.subr.mxu0 %v5959
      %6003 = vmatpush1.msra.mxu0 %v5958
      %6004 = vmatprep.subr.mxu0 %v5961
      %6005 = vmatpush1.msra.mxu0 %v5960
      %6006 = vmatprep.subr.mxu0 %v5963
      %6007 = vmatpush1.msra.mxu0 %v5962
      %6008 = vmatprep.subr.mxu0 %v5965
      %6009 = vmatpush1.msra.mxu0 %v5964
      %6010 = vmatprep.subr.mxu0 0.0
      %6011 = vmatpush1.msra.mxu0 0.0
      %6012 = vmatprep.subr.mxu0 0.0
      %6013 = vmatpush1.msra.mxu0 0.0
      %6014 = vmatprep.subr.mxu0 0.0
      %6015 = vmatpush1.msra.mxu0 0.0
      %6016 = vmatprep.subr.mxu0 0.0
      %6017 = vmatpush1.msra.mxu0 0.0
      %6018 = vmatprep.subr.mxu0 0.0
      %6019 = vmatpush1.msra.mxu0 0.0
      %6020 = vmatprep.subr.mxu0 0.0
      %6021 = vmatpush1.msra.mxu0 0.0
      %6022 = vmatprep.subr.mxu0 0.0
      %6023 = vmatpush1.msra.mxu0 0.0
      %6024 = vmatprep.subr.mxu0 0.0
      %6025 = vmatpush1.msra.mxu0 0.0
      %6026 = vmatprep.subr.mxu0 0.0
      %6027 = vmatpush1.msra.mxu0 0.0
      %6028 = vmatprep.subr.mxu0 0.0
      %6029 = vmatpush1.msra.mxu0 0.0
      %6030 = vmatprep.subr.mxu0 0.0
      %6031 = vmatpush1.msra.mxu0 0.0
      %6032 = vmatprep.subr.mxu0 0.0
      %6033 = vmatpush1.msra.mxu0 0.0
      %6034 = vmatprep.subr.mxu0 0.0
      %6035 = vmatpush1.msra.mxu0 0.0
      %6036 = vmatprep.subr.mxu0 0.0
      %6037 = vmatpush1.msra.mxu0 0.0
      %6038 = vmatprep.subr.mxu0 0.0
      %6039 = vmatpush1.msra.mxu0 0.0
      %6040 = vmatprep.subr.mxu0 0.0
      %6041 = vmatpush1.msra.mxu0 0.0
      %6042 = vmatprep.mubr.f32.mxu0 0.0
      %6043 = vmatmul.mubr.f32.gmra.mrb[0].mxu0 %v5932
      %v6044 = vpop.f32.mrb[0].mxu0
      %v6045 = vadd.f32 %v5971, %v6044
      %v6046 = vpop.f32.mrb[0].mxu0
      %v6047 = vadd.f32 %v5975, %v6046
      %6048 = vdwg.mxu0
      %v6051 = vcombine.low %v6045, %v6047
      %v6053 = vunpack.c.l.s4 1983009808
      %v6054 = vunpack.c.0.s8 %v6053
      %v6055 = vlaneseq
      %v6056 = vshrl.u32 %v6055, 7
      %v6057 = vsub.s32 %v6054, %v6056
      %v6058 = vrot.slane %v6051, %v6057
      %6060 = vst [vmem:[#allocation7] sm:$0xf] %v6058
      %v6061 = vmul.f32 %v6045, 0.5
      %v6062 = vmul.f32 %v6047, 0.5
      %v6063 = vtanh.pop %v6061
      %v6064 = vtanh.pop %v6062
      %v6065 = vadd.f32 %v6063, 1.0
      %v6066 = vadd.f32 %v6064, 1.0
      %v6067 = vmul.f32 %v6065, 0.5
      %v6068 = vmul.f32 %v6066, 0.5
      %v6069 = vld [vmem:[%s7] sm:$0xff]
      %v6070 = vld [vmem:[%s7 + $0x8] sm:$0xff]
      %v6071 = vld [vmem:[%s7 + $0x10] sm:$0xff]
      %v6072 = vld [vmem:[%s7 + $0x18] sm:$0xff]
      %v6073 = vld [vmem:[%s7 + $0x20] sm:$0xff]
      %v6074 = vld [vmem:[%s7 + $0x28] sm:$0xff]
      %v6075 = vld [vmem:[%s7 + $0x30] sm:$0xff]
      %v6076 = vld [vmem:[%s7 + $0x38] sm:$0xff]
      %v6077 = vld [vmem:[%s7 + $0x40] sm:$0xff]
      %v6078 = vld [vmem:[%s7 + $0x48] sm:$0xff]
      %v6079 = vld [vmem:[%s7 + $0x50] sm:$0xff]
      %v6080 = vld [vmem:[%s7 + $0x58] sm:$0xff]
      %v6081 = vld [vmem:[%s7 + $0x60] sm:$0xff]
      %v6082 = vld [vmem:[%s7 + $0x68] sm:$0xff]
      %v6083 = vld [vmem:[%s7 + $0x70] sm:$0xff]
      %v6084 = vld [vmem:[%s7 + $0x78] sm:$0xff]
      %v6085 = vld [vmem:[%s7 + $0x80] sm:$0xff]
      %v6086 = vld [vmem:[%s7 + $0x88] sm:$0xff]
      %v6087 = vld [vmem:[%s7 + $0x90] sm:$0xff]
      %v6088 = vld [vmem:[%s7 + $0x98] sm:$0xff]
      %v6089 = vld [vmem:[%s7 + $0xa0] sm:$0xff]
      %v6090 = vld [vmem:[%s7 + $0xa8] sm:$0xff]
      %v6091 = vld [vmem:[%s7 + $0xb0] sm:$0xff]
      %v6092 = vld [vmem:[%s7 + $0xb8] sm:$0xff]
      %v6093 = vld [vmem:[%s7 + $0xc0] sm:$0xff]
      %v6094 = vld [vmem:[%s7 + $0xc8] sm:$0xff]
      %v6095 = vld [vmem:[%s7 + $0xd0] sm:$0xff]
      %v6096 = vld [vmem:[%s7 + $0xd8] sm:$0xff]
      %v6097 = vld [vmem:[%s7 + $0xe0] sm:$0xff]
      %v6098 = vld [vmem:[%s7 + $0xe8] sm:$0xff]
      %v6099 = vld [vmem:[%s7 + $0xf0] sm:$0xff]
      %v6100 = vld [vmem:[%s7 + $0xf8] sm:$0xff]
      %v6101 = vld [vmem:[%s8] sm:$0x1]
      %v6103 = vlaneseq
      %v6104 = vshrl.u32 %v6103, 7
      %v6105 = vsub.s32 0, %v6104
      %v6106 = vrot.slane %v6101, %v6105
      %6108 = vmatprep.subr.mxu0 0.0
      %6109 = vmatpush1.msra.mxu0 %v6069
      %6110 = vmatprep.subr.mxu0 0.0
      %6111 = vmatpush1.msra.mxu0 %v6070
      %6112 = vmatprep.subr.mxu0 0.0
      %6113 = vmatpush1.msra.mxu0 %v6071
      %6114 = vmatprep.subr.mxu0 0.0
      %6115 = vmatpush1.msra.mxu0 %v6072
      %6116 = vmatprep.subr.mxu0 0.0
      %6117 = vmatpush1.msra.mxu0 %v6073
      %6118 = vmatprep.subr.mxu0 0.0
      %6119 = vmatpush1.msra.mxu0 %v6074
      %6120 = vmatprep.subr.mxu0 0.0
      %6121 = vmatpush1.msra.mxu0 %v6075
      %6122 = vmatprep.subr.mxu0 0.0
      %6123 = vmatpush1.msra.mxu0 %v6076
      %6124 = vmatprep.subr.mxu0 0.0
      %6125 = vmatpush1.msra.mxu0 %v6077
      %6126 = vmatprep.subr.mxu0 0.0
      %6127 = vmatpush1.msra.mxu0 %v6078
      %6128 = vmatprep.subr.mxu0 0.0
      %6129 = vmatpush1.msra.mxu0 %v6079
      %6130 = vmatprep.subr.mxu0 0.0
      %6131 = vmatpush1.msra.mxu0 %v6080
      %6132 = vmatprep.subr.mxu0 0.0
      %6133 = vmatpush1.msra.mxu0 %v6081
      %6134 = vmatprep.subr.mxu0 0.0
      %6135 = vmatpush1.msra.mxu0 %v6082
      %6136 = vmatprep.subr.mxu0 0.0
      %6137 = vmatpush1.msra.mxu0 %v6083
      %6138 = vmatprep.subr.mxu0 0.0
      %6139 = vmatpush1.msra.mxu0 %v6084
      %6140 = vmatprep.subr.mxu0 0.0
      %6141 = vmatpush1.msra.mxu0 %v6085
      %6142 = vmatprep.subr.mxu0 0.0
      %6143 = vmatpush1.msra.mxu0 %v6086
      %6144 = vmatprep.subr.mxu0 0.0
      %6145 = vmatpush1.msra.mxu0 %v6087
      %6146 = vmatprep.subr.mxu0 0.0
      %6147 = vmatpush1.msra.mxu0 %v6088
      %6148 = vmatprep.subr.mxu0 0.0
      %6149 = vmatpush1.msra.mxu0 %v6089
      %6150 = vmatprep.subr.mxu0 0.0
      %6151 = vmatpush1.msra.mxu0 %v6090
      %6152 = vmatprep.subr.mxu0 0.0
      %6153 = vmatpush1.msra.mxu0 %v6091
      %6154 = vmatprep.subr.mxu0 0.0
      %6155 = vmatpush1.msra.mxu0 %v6092
      %6156 = vmatprep.subr.mxu0 0.0
      %6157 = vmatpush1.msra.mxu0 %v6093
      %6158 = vmatprep.subr.mxu0 0.0
      %6159 = vmatpush1.msra.mxu0 %v6094
      %6160 = vmatprep.subr.mxu0 0.0
      %6161 = vmatpush1.msra.mxu0 %v6095
      %6162 = vmatprep.subr.mxu0 0.0
      %6163 = vmatpush1.msra.mxu0 %v6096
      %6164 = vmatprep.subr.mxu0 0.0
      %6165 = vmatpush1.msra.mxu0 %v6097
      %6166 = vmatprep.subr.mxu0 0.0
      %6167 = vmatpush1.msra.mxu0 %v6098
      %6168 = vmatprep.subr.mxu0 0.0
      %6169 = vmatpush1.msra.mxu0 %v6099
      %6170 = vmatprep.subr.mxu0 0.0
      %6171 = vmatpush1.msra.mxu0 %v6100
      %6172 = vmatprep.mubr.f32.mxu0 %v6068
      %6173 = vmatmul.mubr.f32.gmra.mrb[0].mxu0 %v6067
      %v6174 = vpop.f32.mrb[0].mxu0
      %v6175 = vadd.f32 %v6106, %v6174
      %v6176 = vpop.f32.mrb[0].mxu0
      %6177 = vdwg.mxu0
      %6178 = vst [vmem:[#allocation8] sm:$0x3] %v6175
    $region45: #{squeezenet_plus_latent.1} parent=1 // pred_fallthru
      _
    // Predicated region
    $region46: #{squeezenet_plus_latent.1} parent=1 // pred_check
      _
    $region47: #{squeezenet_plus_latent.1} parent=1 // pred_check_branch
      %6180 = sbr.rel (0) target = $region49
    $region48: #{squeezenet_plus_latent.1} parent=1 // pred_region
      %s6182 = ssub.s32 64, 64
      %6183 = vsyncadd [#allocation4], %s6182
      %s6185 = sshll.u32 [#allocation3], 4
      %s6186 = int_to_ptr.vmem [resolvable:$true] %s6185
      %6188 = dma.vmem_to_hbm [thread:$0]  %s6186, 64, %s9, [#allocation4]
    $region49: #{squeezenet_plus_latent.1} parent=1 // pred_fallthru
      _
    // Predicated region
    $region50: #{squeezenet_plus_latent.1} parent=1 // pred_check
      _
    $region51: #{squeezenet_plus_latent.1} parent=1 // pred_check_branch
      %6190 = sbr.rel (0) target = $region53
    $region52: #{squeezenet_plus_latent.1} parent=1 // pred_region
      %s6192 = ssub.s32 32, 32
      %6193 = vsyncadd [#allocation6], %s6192
      %s6195 = sshll.u32 [#allocation5], 4
      %s6196 = int_to_ptr.vmem [resolvable:$true] %s6195
      %6198 = dma.vmem_to_hbm [thread:$0]  %s6196, 32, %s10, [#allocation6]
    $region53: #{squeezenet_plus_latent.1} parent=1 // pred_fallthru
      _
    // Predicated region
    $region54: #{squeezenet_plus_latent.1} parent=1 // pred_check
      _
    $region55: #{squeezenet_plus_latent.1} parent=1 // pred_check_branch
      %6200 = sbr.rel (0) target = $region57
    $region56: #{squeezenet_plus_latent.1} parent=1 // pred_region
      %s6202 = ssub.s32 64, 64
      %6203 = vsyncadd [#allocation6], %s6202
      %s6205 = sshll.u32 [#allocation7], 4
      %s6206 = int_to_ptr.vmem [resolvable:$true] %s6205
      %6208 = dma.vmem_to_hbm [thread:$0]  %s6206, 64, %s11, [#allocation6]
    $region57: #{squeezenet_plus_latent.1} parent=1 // pred_fallthru
      _
    // Predicated region
    $region58: #{squeezenet_plus_latent.1} parent=1 // pred_check
      _
    $region59: #{squeezenet_plus_latent.1} parent=1 // pred_check_branch
      %6210 = sbr.rel (0) target = $region61
    $region60: #{squeezenet_plus_latent.1} parent=1 // pred_region
      %s6212 = ssub.s32 32, 32
      %6213 = vsyncadd [#allocation9], %s6212
      %s6215 = sshll.u32 [#allocation8], 4
      %s6216 = int_to_ptr.vmem [resolvable:$true] %s6215
      %6218 = dma.vmem_to_hbm [thread:$0]  %s6216, 32, %s12, [#allocation9]
    $region61: #{squeezenet_plus_latent.1} parent=1 // pred_fallthru
      _
    // Predicated region
    $region62: #{squeezenet_plus_latent.1} parent=1 // pred_check
      _
    $region63: #{squeezenet_plus_latent.1} parent=1 // pred_check_branch
      %6220 = sbr.rel (0) target = $region65
    $region64: #{squeezenet_plus_latent.1} parent=1 // pred_region
      %6221 = dma.done [#allocation4], 64
    $region65: #{squeezenet_plus_latent.1} parent=1 // pred_fallthru
      _
    // Predicated region
    $region66: #{squeezenet_plus_latent.1} parent=1 // pred_check
      _
    $region67: #{squeezenet_plus_latent.1} parent=1 // pred_check_branch
      %6223 = sbr.rel (0) target = $region69
    $region68: #{squeezenet_plus_latent.1} parent=1 // pred_region
      %6224 = dma.done [#allocation6], 32
    $region69: #{squeezenet_plus_latent.1} parent=1 // pred_fallthru
      _
    // Predicated region
    $region70: #{squeezenet_plus_latent.1} parent=1 // pred_check
      _
    $region71: #{squeezenet_plus_latent.1} parent=1 // pred_check_branch
      %6226 = sbr.rel (0) target = $region73
    $region72: #{squeezenet_plus_latent.1} parent=1 // pred_region
      %6227 = dma.done [#allocation6], 64
    $region73: #{squeezenet_plus_latent.1} parent=1 // pred_fallthru
      _
    // Predicated region
    $region74: #{squeezenet_plus_latent.1} parent=1 // pred_check
      _
    $region75: #{squeezenet_plus_latent.1} parent=1 // pred_check_branch
      %6229 = sbr.rel (0) target = $region77
    $region76: #{squeezenet_plus_latent.1} parent=1 // pred_region
      %6230 = dma.done [#allocation9], 32
    $region77: #{squeezenet_plus_latent.1} parent=1 // pred_fallthru
      _
    %6231 = vsyncpa [#allocation4], 1
    %6232 = vsyncpa [#allocation6], 1
    %6233 = vsyncpa [#allocation9], 1

</llo_original>
